<compile_context>
chip_gen: v6e
topology: v6e:2x2x1
jax: 0.10.0
libtpu: 0.0.40
codegen_flags: <defaults>
</compile_context>

<pallas_src>
import functools

import jax
import jax.numpy as jnp
import numpy as np
from jax.experimental import pallas as pl
from jax.experimental.pallas import tpu as pltpu

LN_EPS = 1e-5
BN_EPS = 1e-5


# ----------------------------------------------------------------------------
# Fused kernel
# ----------------------------------------------------------------------------
def _layer_norm(h, g, b):
    mu = jnp.mean(h, axis=-1, keepdims=True)
    var = jnp.mean(jnp.square(h - mu), axis=-1, keepdims=True)
    return (h - mu) * jax.lax.rsqrt(var + LN_EPS) * g + b


def _fused_forward_kernel(*refs, num_layers):
    x_ref = refs[0]
    o_ref = refs[-1]
    params = refs[1:-1]
    idx = 0

    def take(n):
        nonlocal idx
        out = params[idx:idx + n]
        idx += n
        return out

    # ---- embedding: nn.Linear(num_features, D) ----
    emb_w, emb_b = take(2)
    h = jnp.dot(x_ref[...], emb_w[...], preferred_element_type=jnp.float32) + emb_b[...]

    # ---- nn.TransformerEncoder (seq_len == 1), layer loop unrolled in Python ----
    for _ in range(num_layers):
        aw, ab, g1, be1, w1, b1, w2, b2, g2, be2 = take(10)
        # attention collapsed offline to a single affine map (exact for seq_len == 1)
        sa = jnp.dot(h, aw[...], preferred_element_type=jnp.float32) + ab[...]
        h = _layer_norm(h + sa, g1[...], be1[...])              # dropout1 == identity
        ff = jnp.dot(h, w1[...], preferred_element_type=jnp.float32) + b1[...]
        ff = jnp.maximum(ff, 0.0)                               # ReLU
        ff = jnp.dot(ff, w2[...], preferred_element_type=jnp.float32) + b2[...]
        h = _layer_norm(h + ff, g2[...], be2[...])              # dropout2 == identity

    # ---- MLP head (BatchNorm folded into the Linears at prep time) ----
    m1w, m1b, m2w, m2b, m3w, m3b, mow, mob = take(8)
    h = jnp.maximum(jnp.dot(h, m1w[...], preferred_element_type=jnp.float32) + m1b[...], 0.0)
    # TODO(synk): Dropout(0.6) is stochastic in train mode; identity here (eval-mode semantics).
    h = jnp.maximum(jnp.dot(h, m2w[...], preferred_element_type=jnp.float32) + m2b[...], 0.0)
    h = jnp.maximum(jnp.dot(h, m3w[...], preferred_element_type=jnp.float32) + m3b[...], 0.0)
    y = jnp.dot(h, mow[...], preferred_element_type=jnp.float32) + mob[...]
    o_ref[...] = y.astype(o_ref.dtype)


# ----------------------------------------------------------------------------
# One-time parameter preparation (transposes / attention & BN folding)
# ----------------------------------------------------------------------------
def prepare_params(params):
    """Flatten + pre-transpose + fold params once, outside the hot path."""
    flat = []

    def row(v):
        return jnp.asarray(v, jnp.float32).reshape(1, -1)

    # embedding
    flat += [params["emb_w"].T, row(params["emb_b"])]

    # encoder layers
    for p in params["layers"]:
        # fold seq_len==1 attention:  sa = x @ (Wv^T Wo^T) + (bv Wo^T + bo)
        aw = p["wv"].T @ p["wo"].T                       # (D, D)
        ab = p["bv"] @ p["wo"].T + p["bo"]               # (D,)
        flat += [
            aw, row(ab),
            row(p["ln1_g"]), row(p["ln1_b"]),
            p["w1"].T, row(p["b1"]),
            p["w2"].T, row(p["b2"]),
            row(p["ln2_g"]), row(p["ln2_b"]),
        ]

    # MLP head with BatchNorm folded into the preceding Linear
    m = params["mlp"]

    def fold(w, b, s, t):
        return w.T * s[None, :], row(b * s + t)

    w1f, b1f = fold(m["w1"], m["b1"], m["s1"], m["t1"])
    w2f, b2f = fold(m["w2"], m["b2"], m["s2"], m["t2"])
    w3f, b3f = fold(m["w3"], m["b3"], m["s3"], m["t3"])
    flat += [w1f, b1f, w2f, b2f, w3f, b3f, m["wo"].T, row(m["bo"])]

    flat = [jnp.asarray(a, jnp.float32) for a in flat]
    return flat, len(params["layers"])


# ----------------------------------------------------------------------------
# Forward wrapper: single pallas_call, batch tiled over a parallel grid
# ----------------------------------------------------------------------------
def _round_up(n, m):
    return ((n + m - 1) // m) * m


def tab_transformer_forward(x, prepared):
    flat, num_layers = prepared
    B, F = x.shape

    # Batch tile: multiple of 8 sublanes, capped at 128 rows (fills the MXU M dim,
    # bounds the live (bm, 2048) FF intermediate to 1 MiB -> safe on v5e/v6e/v7x).
    bm = min(128, _round_up(B, 8))
    B_pad = _round_up(B, bm)
    if B_pad != B:
        x = jnp.pad(x, ((0, B_pad - B), (0, 0)))

    in_specs = [pl.BlockSpec((bm, F), lambda i: (i, 0))]
    # Weights are grid-invariant: full-extent blocks, same (0, 0) block every step.
    in_specs += [pl.BlockSpec(a.shape, lambda i: (0, 0)) for a in flat]

    out = pl.pallas_call(
        functools.partial(_fused_forward_kernel, num_layers=num_layers),
        out_shape=jax.ShapeDtypeStruct((B_pad, 1), x.dtype),
        grid=(pl.cdiv(B_pad, bm),),
        in_specs=in_specs,
        out_specs=pl.BlockSpec((bm, 1), lambda i: (i, 0)),
        compiler_params=pltpu.CompilerParams(dimension_semantics=("parallel",)),
    )(x, *flat)
    return out[:B]


# ----------------------------------------------------------------------------
# Deterministic parameter initialization (shapes follow the PyTorch __init__)
# ----------------------------------------------------------------------------
def init_params(key, num_features, dim_embedding, num_heads, num_layers, dim_ff=2048):
    del num_heads  # heads divide D; unused because seq_len==1 collapses attention exactly
    keys = iter(jax.random.split(key, 512))

    def dense(out_dim, in_dim):
        scale = 1.0 / np.sqrt(in_dim)
        w = jax.random.uniform(next(keys), (out_dim, in_dim), jnp.float32, -scale, scale)
        b = jax.random.uniform(next(keys), (out_dim,), jnp.float32, -scale, scale)
        return w, b

    def bn_folded(n):
        gamma = 1.0 + 0.1 * jax.random.normal(next(keys), (n,), jnp.float32)
        beta = 0.1 * jax.random.normal(next(keys), (n,), jnp.float32)
        running_mean = 0.1 * jax.random.normal(next(keys), (n,), jnp.float32)
        running_var = jax.random.uniform(next(keys), (n,), jnp.float32, 0.5, 1.5)
        scale = gamma / jnp.sqrt(running_var + BN_EPS)
        shift = beta - running_mean * scale
        return scale, shift

    D = dim_embedding
    params = {}
    params["emb_w"], params["emb_b"] = dense(D, num_features)

    layers = []
    for _ in range(num_layers):
        in_w, in_b = dense(3 * D, D)          # MultiheadAttention in_proj (q,k,v stacked)
        wo, bo = dense(D, D)                  # out_proj
        w1, b1 = dense(dim_ff, D)             # linear1
        w2, b2 = dense(D, dim_ff)             # linear2
        layers.append(dict(
            wv=in_w[2 * D:3 * D], bv=in_b[2 * D:3 * D],
            wo=wo, bo=bo, w1=w1, b1=b1, w2=w2, b2=b2,
            ln1_g=1.0 + 0.05 * jax.random.normal(next(keys), (D,), jnp.float32),
            ln1_b=0.05 * jax.random.normal(next(keys), (D,), jnp.float32),
            ln2_g=1.0 + 0.05 * jax.random.normal(next(keys), (D,), jnp.float32),
            ln2_b=0.05 * jax.random.normal(next(keys), (D,), jnp.float32),
        ))
    params["layers"] = layers

    mlp = {}
    mlp["w1"], mlp["b1"] = dense(64, D)
    mlp["s1"], mlp["t1"] = bn_folded(64)
    mlp["w2"], mlp["b2"] = dense(32, 64)
    mlp["s2"], mlp["t2"] = bn_folded(32)
    mlp["w3"], mlp["b3"] = dense(16, 32)
    mlp["s3"], mlp["t3"] = bn_folded(16)
    mlp["wo"], mlp["bo"] = dense(1, 16)
    params["mlp"] = mlp
    return params


# ----------------------------------------------------------------------------
# Pure-JAX reference (same math, XLA ops) for a sanity check
# ----------------------------------------------------------------------------
def reference_forward(x, params):
    def lin(h, w, b):
        return h @ w.T + b

    def ln(h, g, b):
        mu = h.mean(-1, keepdims=True)
        var = ((h - mu) ** 2).mean(-1, keepdims=True)
        return (h - mu) / jnp.sqrt(var + LN_EPS) * g + b

    h = lin(x, params["emb_w"], params["emb_b"])
    for p in params["layers"]:
        sa = lin(lin(h, p["wv"], p["bv"]), p["wo"], p["bo"])
        y = ln(h + sa, p["ln1_g"], p["ln1_b"])
        ff = lin(jnp.maximum(lin(y, p["w1"], p["b1"]), 0.0), p["w2"], p["b2"])
        h = ln(y + ff, p["ln2_g"], p["ln2_b"])
    m = params["mlp"]
    h = jnp.maximum(lin(h, m["w1"], m["b1"]) * m["s1"] + m["t1"], 0.0)
    h = jnp.maximum(lin(h, m["w2"], m["b2"]) * m["s2"] + m["t2"], 0.0)
    h = jnp.maximum(lin(h, m["w3"], m["b3"]) * m["s3"] + m["t3"], 0.0)
    return lin(h, m["wo"], m["bo"])


if __name__ == "__main__":
    key = jax.random.PRNGKey(0)
    kx, kp = jax.random.split(key)

    batch, num_features, dim_embedding, num_heads, num_layers = 8, 32, 64, 4, 2
    x = jax.random.normal(kx, (batch, num_features), jnp.float32)
    params = init_params(kp, num_features, dim_embedding, num_heads, num_layers)

    prepared = prepare_params(params)            # one-time: transpose / fold weights
    out = jax.block_until_ready(tab_transformer_forward(x, prepared))
    assert out.shape == (batch, 1) and out.dtype == jnp.float32

    ref = jax.block_until_ready(reference_forward(x, params))
    np.testing.assert_allclose(np.asarray(out), np.asarray(ref), rtol=3e-2, atol=3e-2)

    print("KERNEL_OK")
</pallas_src>

<mosaic_0001>
module attributes {stable_mosaic.version = 11 : i64} {
  func.func @_fused_forward_kernel(%arg0: i32, %arg1: memref<8x32xf32, #tpu.memory_space<vmem>>, %arg2: memref<32x64xf32, #tpu.memory_space<vmem>>, %arg3: memref<1x64xf32, #tpu.memory_space<vmem>>, %arg4: memref<64x64xf32, #tpu.memory_space<vmem>>, %arg5: memref<1x64xf32, #tpu.memory_space<vmem>>, %arg6: memref<1x64xf32, #tpu.memory_space<vmem>>, %arg7: memref<1x64xf32, #tpu.memory_space<vmem>>, %arg8: memref<64x2048xf32, #tpu.memory_space<vmem>>, %arg9: memref<1x2048xf32, #tpu.memory_space<vmem>>, %arg10: memref<2048x64xf32, #tpu.memory_space<vmem>>, %arg11: memref<1x64xf32, #tpu.memory_space<vmem>>, %arg12: memref<1x64xf32, #tpu.memory_space<vmem>>, %arg13: memref<1x64xf32, #tpu.memory_space<vmem>>, %arg14: memref<64x64xf32, #tpu.memory_space<vmem>>, %arg15: memref<1x64xf32, #tpu.memory_space<vmem>>, %arg16: memref<1x64xf32, #tpu.memory_space<vmem>>, %arg17: memref<1x64xf32, #tpu.memory_space<vmem>>, %arg18: memref<64x2048xf32, #tpu.memory_space<vmem>>, %arg19: memref<1x2048xf32, #tpu.memory_space<vmem>>, %arg20: memref<2048x64xf32, #tpu.memory_space<vmem>>, %arg21: memref<1x64xf32, #tpu.memory_space<vmem>>, %arg22: memref<1x64xf32, #tpu.memory_space<vmem>>, %arg23: memref<1x64xf32, #tpu.memory_space<vmem>>, %arg24: memref<64x64xf32, #tpu.memory_space<vmem>>, %arg25: memref<1x64xf32, #tpu.memory_space<vmem>>, %arg26: memref<64x32xf32, #tpu.memory_space<vmem>>, %arg27: memref<1x32xf32, #tpu.memory_space<vmem>>, %arg28: memref<32x16xf32, #tpu.memory_space<vmem>>, %arg29: memref<1x16xf32, #tpu.memory_space<vmem>>, %arg30: memref<16x1xf32, #tpu.memory_space<vmem>>, %arg31: memref<1x1xf32, #tpu.memory_space<vmem>>, %arg32: memref<8x1xf32, #tpu.memory_space<vmem>>) attributes {dimension_semantics = [#tpu.dimension_semantics<parallel>], iteration_bounds = array<i64: 1>, scalar_prefetch = 0 : i64, scratch_operands = 0 : i64, tpu.core_type = #tpu.core_type<tc>, window_params = [{transform_indices = @transform_0, window_bounds = array<i64: 8, 32>}, {pipeline_mode = #tpu.pipeline_mode<synchronous>, transform_indices = @transform_1, window_bounds = array<i64: 32, 64>}, {pipeline_mode = #tpu.pipeline_mode<synchronous>, transform_indices = @transform_2, window_bounds = array<i64: 1, 64>}, {pipeline_mode = #tpu.pipeline_mode<synchronous>, transform_indices = @transform_3, window_bounds = array<i64: 64, 64>}, {pipeline_mode = #tpu.pipeline_mode<synchronous>, transform_indices = @transform_4, window_bounds = array<i64: 1, 64>}, {pipeline_mode = #tpu.pipeline_mode<synchronous>, transform_indices = @transform_5, window_bounds = array<i64: 1, 64>}, {pipeline_mode = #tpu.pipeline_mode<synchronous>, transform_indices = @transform_6, window_bounds = array<i64: 1, 64>}, {pipeline_mode = #tpu.pipeline_mode<synchronous>, transform_indices = @transform_7, window_bounds = array<i64: 64, 2048>}, {pipeline_mode = #tpu.pipeline_mode<synchronous>, transform_indices = @transform_8, window_bounds = array<i64: 1, 2048>}, {pipeline_mode = #tpu.pipeline_mode<synchronous>, transform_indices = @transform_9, window_bounds = array<i64: 2048, 64>}, {pipeline_mode = #tpu.pipeline_mode<synchronous>, transform_indices = @transform_10, window_bounds = array<i64: 1, 64>}, {pipeline_mode = #tpu.pipeline_mode<synchronous>, transform_indices = @transform_11, window_bounds = array<i64: 1, 64>}, {pipeline_mode = #tpu.pipeline_mode<synchronous>, transform_indices = @transform_12, window_bounds = array<i64: 1, 64>}, {pipeline_mode = #tpu.pipeline_mode<synchronous>, transform_indices = @transform_13, window_bounds = array<i64: 64, 64>}, {pipeline_mode = #tpu.pipeline_mode<synchronous>, transform_indices = @transform_14, window_bounds = array<i64: 1, 64>}, {pipeline_mode = #tpu.pipeline_mode<synchronous>, transform_indices = @transform_15, window_bounds = array<i64: 1, 64>}, {pipeline_mode = #tpu.pipeline_mode<synchronous>, transform_indices = @transform_16, window_bounds = array<i64: 1, 64>}, {pipeline_mode = #tpu.pipeline_mode<synchronous>, transform_indices = @transform_17, window_bounds = array<i64: 64, 2048>}, {pipeline_mode = #tpu.pipeline_mode<synchronous>, transform_indices = @transform_18, window_bounds = array<i64: 1, 2048>}, {pipeline_mode = #tpu.pipeline_mode<synchronous>, transform_indices = @transform_19, window_bounds = array<i64: 2048, 64>}, {pipeline_mode = #tpu.pipeline_mode<synchronous>, transform_indices = @transform_20, window_bounds = array<i64: 1, 64>}, {pipeline_mode = #tpu.pipeline_mode<synchronous>, transform_indices = @transform_21, window_bounds = array<i64: 1, 64>}, {pipeline_mode = #tpu.pipeline_mode<synchronous>, transform_indices = @transform_22, window_bounds = array<i64: 1, 64>}, {pipeline_mode = #tpu.pipeline_mode<synchronous>, transform_indices = @transform_23, window_bounds = array<i64: 64, 64>}, {pipeline_mode = #tpu.pipeline_mode<synchronous>, transform_indices = @transform_24, window_bounds = array<i64: 1, 64>}, {pipeline_mode = #tpu.pipeline_mode<synchronous>, transform_indices = @transform_25, window_bounds = array<i64: 64, 32>}, {pipeline_mode = #tpu.pipeline_mode<synchronous>, transform_indices = @transform_26, window_bounds = array<i64: 1, 32>}, {pipeline_mode = #tpu.pipeline_mode<synchronous>, transform_indices = @transform_27, window_bounds = array<i64: 32, 16>}, {pipeline_mode = #tpu.pipeline_mode<synchronous>, transform_indices = @transform_28, window_bounds = array<i64: 1, 16>}, {pipeline_mode = #tpu.pipeline_mode<synchronous>, transform_indices = @transform_29, window_bounds = array<i64: 16, 1>}, {pipeline_mode = #tpu.pipeline_mode<synchronous>, transform_indices = @transform_30, window_bounds = array<i64: 1, 1>}, {transform_indices = @transform_31, window_bounds = array<i64: 8, 1>}]} {
    %c0 = arith.constant 0 : index
    %c0_0 = arith.constant 0 : index
    %0 = vector.load %arg1[%c0, %c0_0] : memref<8x32xf32, #tpu.memory_space<vmem>>, vector<8x32xf32>
    %c0_1 = arith.constant 0 : index
    %c0_2 = arith.constant 0 : index
    %1 = vector.load %arg2[%c0_1, %c0_2] : memref<32x64xf32, #tpu.memory_space<vmem>>, vector<32x64xf32>
    %cst = arith.constant dense<0.000000e+00> : vector<8x64xf32>
    %2 = tpu.matmul %0, %1, %cst {dimension_numbers = #tpu.dot_dimension_numbers<[1], [0], [0], [1], [0, 0, 1, 1], [], []>} : vector<8x32xf32>, vector<32x64xf32>, vector<8x64xf32> -> vector<8x64xf32>
    %c0_3 = arith.constant 0 : index
    %c0_4 = arith.constant 0 : index
    %3 = vector.load %arg3[%c0_3, %c0_4] : memref<1x64xf32, #tpu.memory_space<vmem>>, vector<1x64xf32>
    %4 = vector.broadcast %3 : vector<1x64xf32> to vector<8x64xf32>
    %5 = arith.addf %2, %4 : vector<8x64xf32>
    %c0_5 = arith.constant 0 : index
    %c0_6 = arith.constant 0 : index
    %6 = vector.load %arg4[%c0_5, %c0_6] : memref<64x64xf32, #tpu.memory_space<vmem>>, vector<64x64xf32>
    %cst_7 = arith.constant dense<0.000000e+00> : vector<8x64xf32>
    %7 = tpu.matmul %5, %6, %cst_7 {dimension_numbers = #tpu.dot_dimension_numbers<[1], [0], [0], [1], [0, 0, 1, 1], [], []>} : vector<8x64xf32>, vector<64x64xf32>, vector<8x64xf32> -> vector<8x64xf32>
    %c0_8 = arith.constant 0 : index
    %c0_9 = arith.constant 0 : index
    %8 = vector.load %arg5[%c0_8, %c0_9] : memref<1x64xf32, #tpu.memory_space<vmem>>, vector<1x64xf32>
    %9 = vector.broadcast %8 : vector<1x64xf32> to vector<8x64xf32>
    %10 = arith.addf %7, %9 : vector<8x64xf32>
    %11 = arith.addf %5, %10 : vector<8x64xf32>
    %c0_10 = arith.constant 0 : index
    %c0_11 = arith.constant 0 : index
    %12 = vector.load %arg6[%c0_10, %c0_11] : memref<1x64xf32, #tpu.memory_space<vmem>>, vector<1x64xf32>
    %c0_12 = arith.constant 0 : index
    %c0_13 = arith.constant 0 : index
    %13 = vector.load %arg7[%c0_12, %c0_13] : memref<1x64xf32, #tpu.memory_space<vmem>>, vector<1x64xf32>
    %cst_14 = arith.constant dense<0.000000e+00> : vector<8xf32>
    %14 = vector.multi_reduction <add>, %11, %cst_14 [1] : vector<8x64xf32> to vector<8xf32>
    %15 = vector.shape_cast %14 : vector<8xf32> to vector<8x1xf32>
    %cst_15 = arith.constant 6.400000e+01 : f32
    %16 = vector.broadcast %cst_15 : f32 to vector<8x1xf32>
    %17 = arith.divf %15, %16 : vector<8x1xf32>
    %18 = vector.broadcast %17 : vector<8x1xf32> to vector<8x64xf32>
    %19 = arith.subf %11, %18 : vector<8x64xf32>
    %20 = arith.mulf %19, %19 : vector<8x64xf32>
    %cst_16 = arith.constant dense<0.000000e+00> : vector<8xf32>
    %21 = vector.multi_reduction <add>, %20, %cst_16 [1] : vector<8x64xf32> to vector<8xf32>
    %22 = vector.shape_cast %21 : vector<8xf32> to vector<8x1xf32>
    %cst_17 = arith.constant 6.400000e+01 : f32
    %23 = vector.broadcast %cst_17 : f32 to vector<8x1xf32>
    %24 = arith.divf %22, %23 : vector<8x1xf32>
    %25 = vector.broadcast %17 : vector<8x1xf32> to vector<8x64xf32>
    %26 = arith.subf %11, %25 : vector<8x64xf32>
    %cst_18 = arith.constant 9.99999974E-6 : f32
    %27 = vector.broadcast %cst_18 : f32 to vector<8x1xf32>
    %28 = arith.addf %24, %27 : vector<8x1xf32>
    %29 = math.rsqrt %28 : vector<8x1xf32>
    %30 = vector.broadcast %29 : vector<8x1xf32> to vector<8x64xf32>
    %31 = arith.mulf %26, %30 : vector<8x64xf32>
    %32 = vector.broadcast %12 : vector<1x64xf32> to vector<8x64xf32>
    %33 = arith.mulf %31, %32 : vector<8x64xf32>
    %34 = vector.broadcast %13 : vector<1x64xf32> to vector<8x64xf32>
    %35 = arith.addf %33, %34 : vector<8x64xf32>
    %c0_19 = arith.constant 0 : index
    %c0_20 = arith.constant 0 : index
    %36 = vector.load %arg8[%c0_19, %c0_20] : memref<64x2048xf32, #tpu.memory_space<vmem>>, vector<64x2048xf32>
    %cst_21 = arith.constant dense<0.000000e+00> : vector<8x2048xf32>
    %37 = tpu.matmul %35, %36, %cst_21 {dimension_numbers = #tpu.dot_dimension_numbers<[1], [0], [0], [1], [0, 0, 1, 1], [], []>} : vector<8x64xf32>, vector<64x2048xf32>, vector<8x2048xf32> -> vector<8x2048xf32>
    %c0_22 = arith.constant 0 : index
    %c0_23 = arith.constant 0 : index
    %38 = vector.load %arg9[%c0_22, %c0_23] : memref<1x2048xf32, #tpu.memory_space<vmem>>, vector<1x2048xf32>
    %39 = vector.broadcast %38 : vector<1x2048xf32> to vector<8x2048xf32>
    %40 = arith.addf %37, %39 : vector<8x2048xf32>
    %cst_24 = arith.constant 0.000000e+00 : f32
    %41 = vector.broadcast %cst_24 : f32 to vector<8x2048xf32>
    %42 = arith.maximumf %40, %41 : vector<8x2048xf32>
    %c0_25 = arith.constant 0 : index
    %c0_26 = arith.constant 0 : index
    %43 = vector.load %arg10[%c0_25, %c0_26] : memref<2048x64xf32, #tpu.memory_space<vmem>>, vector<2048x64xf32>
    %cst_27 = arith.constant dense<0.000000e+00> : vector<8x64xf32>
    %44 = tpu.matmul %42, %43, %cst_27 {dimension_numbers = #tpu.dot_dimension_numbers<[1], [0], [0], [1], [0, 0, 1, 1], [], []>} : vector<8x2048xf32>, vector<2048x64xf32>, vector<8x64xf32> -> vector<8x64xf32>
    %c0_28 = arith.constant 0 : index
    %c0_29 = arith.constant 0 : index
    %45 = vector.load %arg11[%c0_28, %c0_29] : memref<1x64xf32, #tpu.memory_space<vmem>>, vector<1x64xf32>
    %46 = vector.broadcast %45 : vector<1x64xf32> to vector<8x64xf32>
    %47 = arith.addf %44, %46 : vector<8x64xf32>
    %48 = arith.addf %35, %47 : vector<8x64xf32>
    %c0_30 = arith.constant 0 : index
    %c0_31 = arith.constant 0 : index
    %49 = vector.load %arg12[%c0_30, %c0_31] : memref<1x64xf32, #tpu.memory_space<vmem>>, vector<1x64xf32>
    %c0_32 = arith.constant 0 : index
    %c0_33 = arith.constant 0 : index
    %50 = vector.load %arg13[%c0_32, %c0_33] : memref<1x64xf32, #tpu.memory_space<vmem>>, vector<1x64xf32>
    %cst_34 = arith.constant dense<0.000000e+00> : vector<8xf32>
    %51 = vector.multi_reduction <add>, %48, %cst_34 [1] : vector<8x64xf32> to vector<8xf32>
    %52 = vector.shape_cast %51 : vector<8xf32> to vector<8x1xf32>
    %cst_35 = arith.constant 6.400000e+01 : f32
    %53 = vector.broadcast %cst_35 : f32 to vector<8x1xf32>
    %54 = arith.divf %52, %53 : vector<8x1xf32>
    %55 = vector.broadcast %54 : vector<8x1xf32> to vector<8x64xf32>
    %56 = arith.subf %48, %55 : vector<8x64xf32>
    %57 = arith.mulf %56, %56 : vector<8x64xf32>
    %cst_36 = arith.constant dense<0.000000e+00> : vector<8xf32>
    %58 = vector.multi_reduction <add>, %57, %cst_36 [1] : vector<8x64xf32> to vector<8xf32>
    %59 = vector.shape_cast %58 : vector<8xf32> to vector<8x1xf32>
    %cst_37 = arith.constant 6.400000e+01 : f32
    %60 = vector.broadcast %cst_37 : f32 to vector<8x1xf32>
    %61 = arith.divf %59, %60 : vector<8x1xf32>
    %62 = vector.broadcast %54 : vector<8x1xf32> to vector<8x64xf32>
    %63 = arith.subf %48, %62 : vector<8x64xf32>
    %cst_38 = arith.constant 9.99999974E-6 : f32
    %64 = vector.broadcast %cst_38 : f32 to vector<8x1xf32>
    %65 = arith.addf %61, %64 : vector<8x1xf32>
    %66 = math.rsqrt %65 : vector<8x1xf32>
    %67 = vector.broadcast %66 : vector<8x1xf32> to vector<8x64xf32>
    %68 = arith.mulf %63, %67 : vector<8x64xf32>
    %69 = vector.broadcast %49 : vector<1x64xf32> to vector<8x64xf32>
    %70 = arith.mulf %68, %69 : vector<8x64xf32>
    %71 = vector.broadcast %50 : vector<1x64xf32> to vector<8x64xf32>
    %72 = arith.addf %70, %71 : vector<8x64xf32>
    %c0_39 = arith.constant 0 : index
    %c0_40 = arith.constant 0 : index
    %73 = vector.load %arg14[%c0_39, %c0_40] : memref<64x64xf32, #tpu.memory_space<vmem>>, vector<64x64xf32>
    %cst_41 = arith.constant dense<0.000000e+00> : vector<8x64xf32>
    %74 = tpu.matmul %72, %73, %cst_41 {dimension_numbers = #tpu.dot_dimension_numbers<[1], [0], [0], [1], [0, 0, 1, 1], [], []>} : vector<8x64xf32>, vector<64x64xf32>, vector<8x64xf32> -> vector<8x64xf32>
    %c0_42 = arith.constant 0 : index
    %c0_43 = arith.constant 0 : index
    %75 = vector.load %arg15[%c0_42, %c0_43] : memref<1x64xf32, #tpu.memory_space<vmem>>, vector<1x64xf32>
    %76 = vector.broadcast %75 : vector<1x64xf32> to vector<8x64xf32>
    %77 = arith.addf %74, %76 : vector<8x64xf32>
    %78 = arith.addf %72, %77 : vector<8x64xf32>
    %c0_44 = arith.constant 0 : index
    %c0_45 = arith.constant 0 : index
    %79 = vector.load %arg16[%c0_44, %c0_45] : memref<1x64xf32, #tpu.memory_space<vmem>>, vector<1x64xf32>
    %c0_46 = arith.constant 0 : index
    %c0_47 = arith.constant 0 : index
    %80 = vector.load %arg17[%c0_46, %c0_47] : memref<1x64xf32, #tpu.memory_space<vmem>>, vector<1x64xf32>
    %cst_48 = arith.constant dense<0.000000e+00> : vector<8xf32>
    %81 = vector.multi_reduction <add>, %78, %cst_48 [1] : vector<8x64xf32> to vector<8xf32>
    %82 = vector.shape_cast %81 : vector<8xf32> to vector<8x1xf32>
    %cst_49 = arith.constant 6.400000e+01 : f32
    %83 = vector.broadcast %cst_49 : f32 to vector<8x1xf32>
    %84 = arith.divf %82, %83 : vector<8x1xf32>
    %85 = vector.broadcast %84 : vector<8x1xf32> to vector<8x64xf32>
    %86 = arith.subf %78, %85 : vector<8x64xf32>
    %87 = arith.mulf %86, %86 : vector<8x64xf32>
    %cst_50 = arith.constant dense<0.000000e+00> : vector<8xf32>
    %88 = vector.multi_reduction <add>, %87, %cst_50 [1] : vector<8x64xf32> to vector<8xf32>
    %89 = vector.shape_cast %88 : vector<8xf32> to vector<8x1xf32>
    %cst_51 = arith.constant 6.400000e+01 : f32
    %90 = vector.broadcast %cst_51 : f32 to vector<8x1xf32>
    %91 = arith.divf %89, %90 : vector<8x1xf32>
    %92 = vector.broadcast %84 : vector<8x1xf32> to vector<8x64xf32>
    %93 = arith.subf %78, %92 : vector<8x64xf32>
    %cst_52 = arith.constant 9.99999974E-6 : f32
    %94 = vector.broadcast %cst_52 : f32 to vector<8x1xf32>
    %95 = arith.addf %91, %94 : vector<8x1xf32>
    %96 = math.rsqrt %95 : vector<8x1xf32>
    %97 = vector.broadcast %96 : vector<8x1xf32> to vector<8x64xf32>
    %98 = arith.mulf %93, %97 : vector<8x64xf32>
    %99 = vector.broadcast %79 : vector<1x64xf32> to vector<8x64xf32>
    %100 = arith.mulf %98, %99 : vector<8x64xf32>
    %101 = vector.broadcast %80 : vector<1x64xf32> to vector<8x64xf32>
    %102 = arith.addf %100, %101 : vector<8x64xf32>
    %c0_53 = arith.constant 0 : index
    %c0_54 = arith.constant 0 : index
    %103 = vector.load %arg18[%c0_53, %c0_54] : memref<64x2048xf32, #tpu.memory_space<vmem>>, vector<64x2048xf32>
    %cst_55 = arith.constant dense<0.000000e+00> : vector<8x2048xf32>
    %104 = tpu.matmul %102, %103, %cst_55 {dimension_numbers = #tpu.dot_dimension_numbers<[1], [0], [0], [1], [0, 0, 1, 1], [], []>} : vector<8x64xf32>, vector<64x2048xf32>, vector<8x2048xf32> -> vector<8x2048xf32>
    %c0_56 = arith.constant 0 : index
    %c0_57 = arith.constant 0 : index
    %105 = vector.load %arg19[%c0_56, %c0_57] : memref<1x2048xf32, #tpu.memory_space<vmem>>, vector<1x2048xf32>
    %106 = vector.broadcast %105 : vector<1x2048xf32> to vector<8x2048xf32>
    %107 = arith.addf %104, %106 : vector<8x2048xf32>
    %cst_58 = arith.constant 0.000000e+00 : f32
    %108 = vector.broadcast %cst_58 : f32 to vector<8x2048xf32>
    %109 = arith.maximumf %107, %108 : vector<8x2048xf32>
    %c0_59 = arith.constant 0 : index
    %c0_60 = arith.constant 0 : index
    %110 = vector.load %arg20[%c0_59, %c0_60] : memref<2048x64xf32, #tpu.memory_space<vmem>>, vector<2048x64xf32>
    %cst_61 = arith.constant dense<0.000000e+00> : vector<8x64xf32>
    %111 = tpu.matmul %109, %110, %cst_61 {dimension_numbers = #tpu.dot_dimension_numbers<[1], [0], [0], [1], [0, 0, 1, 1], [], []>} : vector<8x2048xf32>, vector<2048x64xf32>, vector<8x64xf32> -> vector<8x64xf32>
    %c0_62 = arith.constant 0 : index
    %c0_63 = arith.constant 0 : index
    %112 = vector.load %arg21[%c0_62, %c0_63] : memref<1x64xf32, #tpu.memory_space<vmem>>, vector<1x64xf32>
    %113 = vector.broadcast %112 : vector<1x64xf32> to vector<8x64xf32>
    %114 = arith.addf %111, %113 : vector<8x64xf32>
    %115 = arith.addf %102, %114 : vector<8x64xf32>
    %c0_64 = arith.constant 0 : index
    %c0_65 = arith.constant 0 : index
    %116 = vector.load %arg22[%c0_64, %c0_65] : memref<1x64xf32, #tpu.memory_space<vmem>>, vector<1x64xf32>
    %c0_66 = arith.constant 0 : index
    %c0_67 = arith.constant 0 : index
    %117 = vector.load %arg23[%c0_66, %c0_67] : memref<1x64xf32, #tpu.memory_space<vmem>>, vector<1x64xf32>
    %cst_68 = arith.constant dense<0.000000e+00> : vector<8xf32>
    %118 = vector.multi_reduction <add>, %115, %cst_68 [1] : vector<8x64xf32> to vector<8xf32>
    %119 = vector.shape_cast %118 : vector<8xf32> to vector<8x1xf32>
    %cst_69 = arith.constant 6.400000e+01 : f32
    %120 = vector.broadcast %cst_69 : f32 to vector<8x1xf32>
    %121 = arith.divf %119, %120 : vector<8x1xf32>
    %122 = vector.broadcast %121 : vector<8x1xf32> to vector<8x64xf32>
    %123 = arith.subf %115, %122 : vector<8x64xf32>
    %124 = arith.mulf %123, %123 : vector<8x64xf32>
    %cst_70 = arith.constant dense<0.000000e+00> : vector<8xf32>
    %125 = vector.multi_reduction <add>, %124, %cst_70 [1] : vector<8x64xf32> to vector<8xf32>
    %126 = vector.shape_cast %125 : vector<8xf32> to vector<8x1xf32>
    %cst_71 = arith.constant 6.400000e+01 : f32
    %127 = vector.broadcast %cst_71 : f32 to vector<8x1xf32>
    %128 = arith.divf %126, %127 : vector<8x1xf32>
    %129 = vector.broadcast %121 : vector<8x1xf32> to vector<8x64xf32>
    %130 = arith.subf %115, %129 : vector<8x64xf32>
    %cst_72 = arith.constant 9.99999974E-6 : f32
    %131 = vector.broadcast %cst_72 : f32 to vector<8x1xf32>
    %132 = arith.addf %128, %131 : vector<8x1xf32>
    %133 = math.rsqrt %132 : vector<8x1xf32>
    %134 = vector.broadcast %133 : vector<8x1xf32> to vector<8x64xf32>
    %135 = arith.mulf %130, %134 : vector<8x64xf32>
    %136 = vector.broadcast %116 : vector<1x64xf32> to vector<8x64xf32>
    %137 = arith.mulf %135, %136 : vector<8x64xf32>
    %138 = vector.broadcast %117 : vector<1x64xf32> to vector<8x64xf32>
    %139 = arith.addf %137, %138 : vector<8x64xf32>
    %c0_73 = arith.constant 0 : index
    %c0_74 = arith.constant 0 : index
    %140 = vector.load %arg24[%c0_73, %c0_74] : memref<64x64xf32, #tpu.memory_space<vmem>>, vector<64x64xf32>
    %cst_75 = arith.constant dense<0.000000e+00> : vector<8x64xf32>
    %141 = tpu.matmul %139, %140, %cst_75 {dimension_numbers = #tpu.dot_dimension_numbers<[1], [0], [0], [1], [0, 0, 1, 1], [], []>} : vector<8x64xf32>, vector<64x64xf32>, vector<8x64xf32> -> vector<8x64xf32>
    %c0_76 = arith.constant 0 : index
    %c0_77 = arith.constant 0 : index
    %142 = vector.load %arg25[%c0_76, %c0_77] : memref<1x64xf32, #tpu.memory_space<vmem>>, vector<1x64xf32>
    %143 = vector.broadcast %142 : vector<1x64xf32> to vector<8x64xf32>
    %144 = arith.addf %141, %143 : vector<8x64xf32>
    %cst_78 = arith.constant 0.000000e+00 : f32
    %145 = vector.broadcast %cst_78 : f32 to vector<8x64xf32>
    %146 = arith.maximumf %144, %145 : vector<8x64xf32>
    %c0_79 = arith.constant 0 : index
    %c0_80 = arith.constant 0 : index
    %147 = vector.load %arg26[%c0_79, %c0_80] : memref<64x32xf32, #tpu.memory_space<vmem>>, vector<64x32xf32>
    %cst_81 = arith.constant dense<0.000000e+00> : vector<8x32xf32>
    %148 = tpu.matmul %146, %147, %cst_81 {dimension_numbers = #tpu.dot_dimension_numbers<[1], [0], [0], [1], [0, 0, 1, 1], [], []>} : vector<8x64xf32>, vector<64x32xf32>, vector<8x32xf32> -> vector<8x32xf32>
    %c0_82 = arith.constant 0 : index
    %c0_83 = arith.constant 0 : index
    %149 = vector.load %arg27[%c0_82, %c0_83] : memref<1x32xf32, #tpu.memory_space<vmem>>, vector<1x32xf32>
    %150 = vector.broadcast %149 : vector<1x32xf32> to vector<8x32xf32>
    %151 = arith.addf %148, %150 : vector<8x32xf32>
    %cst_84 = arith.constant 0.000000e+00 : f32
    %152 = vector.broadcast %cst_84 : f32 to vector<8x32xf32>
    %153 = arith.maximumf %151, %152 : vector<8x32xf32>
    %c0_85 = arith.constant 0 : index
    %c0_86 = arith.constant 0 : index
    %154 = vector.load %arg28[%c0_85, %c0_86] : memref<32x16xf32, #tpu.memory_space<vmem>>, vector<32x16xf32>
    %cst_87 = arith.constant dense<0.000000e+00> : vector<8x16xf32>
    %155 = tpu.matmul %153, %154, %cst_87 {dimension_numbers = #tpu.dot_dimension_numbers<[1], [0], [0], [1], [0, 0, 1, 1], [], []>} : vector<8x32xf32>, vector<32x16xf32>, vector<8x16xf32> -> vector<8x16xf32>
    %c0_88 = arith.constant 0 : index
    %c0_89 = arith.constant 0 : index
    %156 = vector.load %arg29[%c0_88, %c0_89] : memref<1x16xf32, #tpu.memory_space<vmem>>, vector<1x16xf32>
    %157 = vector.broadcast %156 : vector<1x16xf32> to vector<8x16xf32>
    %158 = arith.addf %155, %157 : vector<8x16xf32>
    %cst_90 = arith.constant 0.000000e+00 : f32
    %159 = vector.broadcast %cst_90 : f32 to vector<8x16xf32>
    %160 = arith.maximumf %158, %159 : vector<8x16xf32>
    %c0_91 = arith.constant 0 : index
    %c0_92 = arith.constant 0 : index
    %161 = vector.load %arg30[%c0_91, %c0_92] : memref<16x1xf32, #tpu.memory_space<vmem>>, vector<16x1xf32>
    %cst_93 = arith.constant dense<0.000000e+00> : vector<8x1xf32>
    %162 = tpu.matmul %160, %161, %cst_93 {dimension_numbers = #tpu.dot_dimension_numbers<[1], [0], [0], [1], [0, 0, 1, 1], [], []>} : vector<8x16xf32>, vector<16x1xf32>, vector<8x1xf32> -> vector<8x1xf32>
    %c0_94 = arith.constant 0 : index
    %c0_95 = arith.constant 0 : index
    %163 = vector.load %arg31[%c0_94, %c0_95] : memref<1x1xf32, #tpu.memory_space<vmem>>, vector<1x1xf32>
    %164 = vector.broadcast %163 : vector<1x1xf32> to vector<8x1xf32>
    %165 = arith.addf %162, %164 : vector<8x1xf32>
    %c0_96 = arith.constant 0 : index
    %c0_97 = arith.constant 0 : index
    %166 = vector.load %arg32[%c0_96, %c0_97] : memref<8x1xf32, #tpu.memory_space<vmem>>, vector<8x1xf32>
    tpu.vector_store %arg32[%c0_96, %c0_97], %165 {strides = array<i32>} : memref<8x1xf32, #tpu.memory_space<vmem>>, vector<8x1xf32>,
    return
  }
  func.func @transform_0(%arg0: i32) -> (i32, i32) {
    %c0_i32 = arith.constant 0 : i32
    %c0_i32_0 = arith.constant 0 : i32
    return %arg0, %c0_i32 : i32, i32
  }
  func.func @transform_1(%arg0: i32) -> (i32, i32) {
    %c0_i32 = arith.constant 0 : i32
    %c0_i32_0 = arith.constant 0 : i32
    %c0_i32_1 = arith.constant 0 : i32
    return %c0_i32, %c0_i32_0 : i32, i32
  }
  func.func @transform_2(%arg0: i32) -> (i32, i32) {
    %c0_i32 = arith.constant 0 : i32
    %c0_i32_0 = arith.constant 0 : i32
    %c0_i32_1 = arith.constant 0 : i32
    return %c0_i32, %c0_i32_0 : i32, i32
  }
  func.func @transform_3(%arg0: i32) -> (i32, i32) {
    %c0_i32 = arith.constant 0 : i32
    %c0_i32_0 = arith.constant 0 : i32
    %c0_i32_1 = arith.constant 0 : i32
    return %c0_i32, %c0_i32_0 : i32, i32
  }
  func.func @transform_4(%arg0: i32) -> (i32, i32) {
    %c0_i32 = arith.constant 0 : i32
    %c0_i32_0 = arith.constant 0 : i32
    %c0_i32_1 = arith.constant 0 : i32
    return %c0_i32, %c0_i32_0 : i32, i32
  }
  func.func @transform_5(%arg0: i32) -> (i32, i32) {
    %c0_i32 = arith.constant 0 : i32
    %c0_i32_0 = arith.constant 0 : i32
    %c0_i32_1 = arith.constant 0 : i32
    return %c0_i32, %c0_i32_0 : i32, i32
  }
  func.func @transform_6(%arg0: i32) -> (i32, i32) {
    %c0_i32 = arith.constant 0 : i32
    %c0_i32_0 = arith.constant 0 : i32
    %c0_i32_1 = arith.constant 0 : i32
    return %c0_i32, %c0_i32_0 : i32, i32
  }
  func.func @transform_7(%arg0: i32) -> (i32, i32) {
    %c0_i32 = arith.constant 0 : i32
    %c0_i32_0 = arith.constant 0 : i32
    %c0_i32_1 = arith.constant 0 : i32
    return %c0_i32, %c0_i32_0 : i32, i32
  }
  func.func @transform_8(%arg0: i32) -> (i32, i32) {
    %c0_i32 = arith.constant 0 : i32
    %c0_i32_0 = arith.constant 0 : i32
    %c0_i32_1 = arith.constant 0 : i32
    return %c0_i32, %c0_i32_0 : i32, i32
  }
  func.func @transform_9(%arg0: i32) -> (i32, i32) {
    %c0_i32 = arith.constant 0 : i32
    %c0_i32_0 = arith.constant 0 : i32
    %c0_i32_1 = arith.constant 0 : i32
    return %c0_i32, %c0_i32_0 : i32, i32
  }
  func.func @transform_10(%arg0: i32) -> (i32, i32) {
    %c0_i32 = arith.constant 0 : i32
    %c0_i32_0 = arith.constant 0 : i32
    %c0_i32_1 = arith.constant 0 : i32
    return %c0_i32, %c0_i32_0 : i32, i32
  }
  func.func @transform_11(%arg0: i32) -> (i32, i32) {
    %c0_i32 = arith.constant 0 : i32
    %c0_i32_0 = arith.constant 0 : i32
    %c0_i32_1 = arith.constant 0 : i32
    return %c0_i32, %c0_i32_0 : i32, i32
  }
  func.func @transform_12(%arg0: i32) -> (i32, i32) {
    %c0_i32 = arith.constant 0 : i32
    %c0_i32_0 = arith.constant 0 : i32
    %c0_i32_1 = arith.constant 0 : i32
    return %c0_i32, %c0_i32_0 : i32, i32
  }
  func.func @transform_13(%arg0: i32) -> (i32, i32) {
    %c0_i32 = arith.constant 0 : i32
    %c0_i32_0 = arith.constant 0 : i32
    %c0_i32_1 = arith.constant 0 : i32
    return %c0_i32, %c0_i32_0 : i32, i32
  }
  func.func @transform_14(%arg0: i32) -> (i32, i32) {
    %c0_i32 = arith.constant 0 : i32
    %c0_i32_0 = arith.constant 0 : i32
    %c0_i32_1 = arith.constant 0 : i32
    return %c0_i32, %c0_i32_0 : i32, i32
  }
  func.func @transform_15(%arg0: i32) -> (i32, i32) {
    %c0_i32 = arith.constant 0 : i32
    %c0_i32_0 = arith.constant 0 : i32
    %c0_i32_1 = arith.constant 0 : i32
    return %c0_i32, %c0_i32_0 : i32, i32
  }
  func.func @transform_16(%arg0: i32) -> (i32, i32) {
    %c0_i32 = arith.constant 0 : i32
    %c0_i32_0 = arith.constant 0 : i32
    %c0_i32_1 = arith.constant 0 : i32
    return %c0_i32, %c0_i32_0 : i32, i32
  }
  func.func @transform_17(%arg0: i32) -> (i32, i32) {
    %c0_i32 = arith.constant 0 : i32
    %c0_i32_0 = arith.constant 0 : i32
    %c0_i32_1 = arith.constant 0 : i32
    return %c0_i32, %c0_i32_0 : i32, i32
  }
  func.func @transform_18(%arg0: i32) -> (i32, i32) {
    %c0_i32 = arith.constant 0 : i32
    %c0_i32_0 = arith.constant 0 : i32
    %c0_i32_1 = arith.constant 0 : i32
    return %c0_i32, %c0_i32_0 : i32, i32
  }
  func.func @transform_19(%arg0: i32) -> (i32, i32) {
    %c0_i32 = arith.constant 0 : i32
    %c0_i32_0 = arith.constant 0 : i32
    %c0_i32_1 = arith.constant 0 : i32
    return %c0_i32, %c0_i32_0 : i32, i32
  }
  func.func @transform_20(%arg0: i32) -> (i32, i32) {
    %c0_i32 = arith.constant 0 : i32
    %c0_i32_0 = arith.constant 0 : i32
    %c0_i32_1 = arith.constant 0 : i32
    return %c0_i32, %c0_i32_0 : i32, i32
  }
  func.func @transform_21(%arg0: i32) -> (i32, i32) {
    %c0_i32 = arith.constant 0 : i32
    %c0_i32_0 = arith.constant 0 : i32
    %c0_i32_1 = arith.constant 0 : i32
    return %c0_i32, %c0_i32_0 : i32, i32
  }
  func.func @transform_22(%arg0: i32) -> (i32, i32) {
    %c0_i32 = arith.constant 0 : i32
    %c0_i32_0 = arith.constant 0 : i32
    %c0_i32_1 = arith.constant 0 : i32
    return %c0_i32, %c0_i32_0 : i32, i32
  }
  func.func @transform_23(%arg0: i32) -> (i32, i32) {
    %c0_i32 = arith.constant 0 : i32
    %c0_i32_0 = arith.constant 0 : i32
    %c0_i32_1 = arith.constant 0 : i32
    return %c0_i32, %c0_i32_0 : i32, i32
  }
  func.func @transform_24(%arg0: i32) -> (i32, i32) {
    %c0_i32 = arith.constant 0 : i32
    %c0_i32_0 = arith.constant 0 : i32
    %c0_i32_1 = arith.constant 0 : i32
    return %c0_i32, %c0_i32_0 : i32, i32
  }
  func.func @transform_25(%arg0: i32) -> (i32, i32) {
    %c0_i32 = arith.constant 0 : i32
    %c0_i32_0 = arith.constant 0 : i32
    %c0_i32_1 = arith.constant 0 : i32
    return %c0_i32, %c0_i32_0 : i32, i32
  }
  func.func @transform_26(%arg0: i32) -> (i32, i32) {
    %c0_i32 = arith.constant 0 : i32
    %c0_i32_0 = arith.constant 0 : i32
    %c0_i32_1 = arith.constant 0 : i32
    return %c0_i32, %c0_i32_0 : i32, i32
  }
  func.func @transform_27(%arg0: i32) -> (i32, i32) {
    %c0_i32 = arith.constant 0 : i32
    %c0_i32_0 = arith.constant 0 : i32
    %c0_i32_1 = arith.constant 0 : i32
    return %c0_i32, %c0_i32_0 : i32, i32
  }
  func.func @transform_28(%arg0: i32) -> (i32, i32) {
    %c0_i32 = arith.constant 0 : i32
    %c0_i32_0 = arith.constant 0 : i32
    %c0_i32_1 = arith.constant 0 : i32
    return %c0_i32, %c0_i32_0 : i32, i32
  }
  func.func @transform_29(%arg0: i32) -> (i32, i32) {
    %c0_i32 = arith.constant 0 : i32
    %c0_i32_0 = arith.constant 0 : i32
    %c0_i32_1 = arith.constant 0 : i32
    return %c0_i32, %c0_i32_0 : i32, i32
  }
  func.func @transform_30(%arg0: i32) -> (i32, i32) {
    %c0_i32 = arith.constant 0 : i32
    %c0_i32_0 = arith.constant 0 : i32
    %c0_i32_1 = arith.constant 0 : i32
    return %c0_i32, %c0_i32_0 : i32, i32
  }
  func.func @transform_31(%arg0: i32) -> (i32, i32) {
    %c0_i32 = arith.constant 0 : i32
    %c0_i32_0 = arith.constant 0 : i32
    return %arg0, %c0_i32 : i32, i32
  }
}

</mosaic_0001>

<llo_original>
// kernel: tpu_custom_call.1
$region0: #{tpu_custom_call.1}
  #allocation0 [shape = 'u32[]', space=smem, size = 0x4, offset = 0x4, fixed_abs, tag = 'smem constant byte address 0x4 - core index']
  #allocation1 [shape = 'u32[144,128]{1,0:T(1,128)}', space=vmem, size = 0x12000, scoped, tag = 'internal scratch']
  #allocation2 [shape = 'f32[1,1]{1,0:T(1,128)S(1)}', space=vmem, size = 0x200, scoped, tag = 'scoped memory for tpu_custom_call.1']
  %s0 = inlined_call_operand.smem [shape: u32[32], index: -1, kind: input, shape index: {}]
  %s1 = sld [smem:[%s0]]
  %s2 = scalar_lea.smem %s0, 1
  %s3 = sld [smem:[%s2]]
  %s4 = scalar_lea.smem %s0, 2
  %s5 = sld [smem:[%s4]]
  %s6 = scalar_lea.smem %s0, 3
  %s7 = sld [smem:[%s6]]
  %s8 = scalar_lea.smem %s0, 4
  %s9 = sld [smem:[%s8]]
  %s10 = scalar_lea.smem %s0, 5
  %s11 = sld [smem:[%s10]]
  %s12 = scalar_lea.smem %s0, 6
  %s13 = sld [smem:[%s12]]
  %s14 = scalar_lea.smem %s0, 7
  %s15 = sld [smem:[%s14]]
  %s16 = scalar_lea.smem %s0, 8
  %s17 = sld [smem:[%s16]]
  %s18 = scalar_lea.smem %s0, 9
  %s19 = sld [smem:[%s18]]
  %s20 = scalar_lea.smem %s0, 10
  %s21 = sld [smem:[%s20]]
  %s22 = scalar_lea.smem %s0, 11
  %s23 = sld [smem:[%s22]]
  %s24 = scalar_lea.smem %s0, 12
  %s25 = sld [smem:[%s24]]
  %s26 = scalar_lea.smem %s0, 13
  %s27 = sld [smem:[%s26]]
  %s28 = scalar_lea.smem %s0, 14
  %s29 = sld [smem:[%s28]]
  %s30 = scalar_lea.smem %s0, 15
  %s31 = sld [smem:[%s30]]
  %s32 = scalar_lea.smem %s0, 16
  %s33 = sld [smem:[%s32]]
  %s34 = scalar_lea.smem %s0, 17
  %s35 = sld [smem:[%s34]]
  %s36 = scalar_lea.smem %s0, 18
  %s37 = sld [smem:[%s36]]
  %s38 = scalar_lea.smem %s0, 19
  %s39 = sld [smem:[%s38]]
  %s40 = scalar_lea.smem %s0, 20
  %s41 = sld [smem:[%s40]]
  %s42 = scalar_lea.smem %s0, 21
  %s43 = sld [smem:[%s42]]
  %s44 = scalar_lea.smem %s0, 22
  %s45 = sld [smem:[%s44]]
  %s46 = scalar_lea.smem %s0, 23
  %s47 = sld [smem:[%s46]]
  %s48 = scalar_lea.smem %s0, 24
  %s49 = sld [smem:[%s48]]
  %s50 = scalar_lea.smem %s0, 25
  %s51 = sld [smem:[%s50]]
  %s52 = scalar_lea.smem %s0, 26
  %s53 = sld [smem:[%s52]]
  %s54 = scalar_lea.smem %s0, 27
  %s55 = sld [smem:[%s54]]
  %s56 = scalar_lea.smem %s0, 28
  %s57 = sld [smem:[%s56]]
  %s58 = scalar_lea.smem %s0, 29
  %s59 = sld [smem:[%s58]]
  %s60 = scalar_lea.smem %s0, 30
  %s61 = sld [smem:[%s60]]
  %s62 = scalar_lea.smem %s0, 31
  %s63 = sld [smem:[%s62]]
  %s64 = sld [smem:[#allocation0]]
  $region134: #{tpu_custom_call.1} parent=0
    _
  %s66 = ssub.s32 1, %s64
  %s67 = scalar_select 0, %s66, %s64
  %v68 = vstv %s61
  %69 = vst [vmem:[#allocation2] sm:$0x1] %v68
  // Predicated region
  $region2: #{tpu_custom_call.1} parent=0 // pred_check
    _
  $region3: #{tpu_custom_call.1} parent=0 // pred_check_branch
    %71 = sbr.rel (0) target = $region5
  $region4: #{tpu_custom_call.1} parent=0 // pred_region
    _
  $region5: #{tpu_custom_call.1} parent=0 // pred_fallthru
    _
  // Predicated region
  $region6: #{tpu_custom_call.1} parent=0 // pred_check
    _
  $region7: #{tpu_custom_call.1} parent=0 // pred_check_branch
    %73 = sbr.rel (0) target = $region9
  $region8: #{tpu_custom_call.1} parent=0 // pred_region
    _
  $region9: #{tpu_custom_call.1} parent=0 // pred_fallthru
    _
  // Predicated region
  $region10: #{tpu_custom_call.1} parent=0 // pred_check
    _
  $region11: #{tpu_custom_call.1} parent=0 // pred_check_branch
    %75 = sbr.rel (0) target = $region13
  $region12: #{tpu_custom_call.1} parent=0 // pred_region
    _
  $region13: #{tpu_custom_call.1} parent=0 // pred_fallthru
    _
  // Predicated region
  $region14: #{tpu_custom_call.1} parent=0 // pred_check
    _
  $region15: #{tpu_custom_call.1} parent=0 // pred_check_branch
    %77 = sbr.rel (0) target = $region17
  $region16: #{tpu_custom_call.1} parent=0 // pred_region
    _
  $region17: #{tpu_custom_call.1} parent=0 // pred_fallthru
    _
  // Predicated region
  $region18: #{tpu_custom_call.1} parent=0 // pred_check
    _
  $region19: #{tpu_custom_call.1} parent=0 // pred_check_branch
    %79 = sbr.rel (0) target = $region21
  $region20: #{tpu_custom_call.1} parent=0 // pred_region
    _
  $region21: #{tpu_custom_call.1} parent=0 // pred_fallthru
    _
  // Predicated region
  $region22: #{tpu_custom_call.1} parent=0 // pred_check
    _
  $region23: #{tpu_custom_call.1} parent=0 // pred_check_branch
    %81 = sbr.rel (0) target = $region25
  $region24: #{tpu_custom_call.1} parent=0 // pred_region
    _
  $region25: #{tpu_custom_call.1} parent=0 // pred_fallthru
    _
  // Predicated region
  $region26: #{tpu_custom_call.1} parent=0 // pred_check
    _
  $region27: #{tpu_custom_call.1} parent=0 // pred_check_branch
    %83 = sbr.rel (0) target = $region29
  $region28: #{tpu_custom_call.1} parent=0 // pred_region
    _
  $region29: #{tpu_custom_call.1} parent=0 // pred_fallthru
    _
  // Predicated region
  $region30: #{tpu_custom_call.1} parent=0 // pred_check
    _
  $region31: #{tpu_custom_call.1} parent=0 // pred_check_branch
    %85 = sbr.rel (0) target = $region33
  $region32: #{tpu_custom_call.1} parent=0 // pred_region
    _
  $region33: #{tpu_custom_call.1} parent=0 // pred_fallthru
    _
  // Predicated region
  $region34: #{tpu_custom_call.1} parent=0 // pred_check
    _
  $region35: #{tpu_custom_call.1} parent=0 // pred_check_branch
    %87 = sbr.rel (0) target = $region37
  $region36: #{tpu_custom_call.1} parent=0 // pred_region
    _
  $region37: #{tpu_custom_call.1} parent=0 // pred_fallthru
    _
  // Predicated region
  $region38: #{tpu_custom_call.1} parent=0 // pred_check
    _
  $region39: #{tpu_custom_call.1} parent=0 // pred_check_branch
    %89 = sbr.rel (0) target = $region41
  $region40: #{tpu_custom_call.1} parent=0 // pred_region
    _
  $region41: #{tpu_custom_call.1} parent=0 // pred_fallthru
    _
  // Predicated region
  $region42: #{tpu_custom_call.1} parent=0 // pred_check
    _
  $region43: #{tpu_custom_call.1} parent=0 // pred_check_branch
    %91 = sbr.rel (0) target = $region45
  $region44: #{tpu_custom_call.1} parent=0 // pred_region
    _
  $region45: #{tpu_custom_call.1} parent=0 // pred_fallthru
    _
  // Predicated region
  $region46: #{tpu_custom_call.1} parent=0 // pred_check
    _
  $region47: #{tpu_custom_call.1} parent=0 // pred_check_branch
    %93 = sbr.rel (0) target = $region49
  $region48: #{tpu_custom_call.1} parent=0 // pred_region
    _
  $region49: #{tpu_custom_call.1} parent=0 // pred_fallthru
    _
  // Predicated region
  $region50: #{tpu_custom_call.1} parent=0 // pred_check
    _
  $region51: #{tpu_custom_call.1} parent=0 // pred_check_branch
    %95 = sbr.rel (0) target = $region53
  $region52: #{tpu_custom_call.1} parent=0 // pred_region
    _
  $region53: #{tpu_custom_call.1} parent=0 // pred_fallthru
    _
  // Predicated region
  $region54: #{tpu_custom_call.1} parent=0 // pred_check
    _
  $region55: #{tpu_custom_call.1} parent=0 // pred_check_branch
    %97 = sbr.rel (0) target = $region57
  $region56: #{tpu_custom_call.1} parent=0 // pred_region
    _
  $region57: #{tpu_custom_call.1} parent=0 // pred_fallthru
    _
  // Predicated region
  $region58: #{tpu_custom_call.1} parent=0 // pred_check
    _
  $region59: #{tpu_custom_call.1} parent=0 // pred_check_branch
    %99 = sbr.rel (0) target = $region61
  $region60: #{tpu_custom_call.1} parent=0 // pred_region
    _
  $region61: #{tpu_custom_call.1} parent=0 // pred_fallthru
    _
  // Predicated region
  $region62: #{tpu_custom_call.1} parent=0 // pred_check
    _
  $region63: #{tpu_custom_call.1} parent=0 // pred_check_branch
    %101 = sbr.rel (0) target = $region65
  $region64: #{tpu_custom_call.1} parent=0 // pred_region
    _
  $region65: #{tpu_custom_call.1} parent=0 // pred_fallthru
    _
  // Predicated region
  $region66: #{tpu_custom_call.1} parent=0 // pred_check
    _
  $region67: #{tpu_custom_call.1} parent=0 // pred_check_branch
    %103 = sbr.rel (0) target = $region69
  $region68: #{tpu_custom_call.1} parent=0 // pred_region
    _
  $region69: #{tpu_custom_call.1} parent=0 // pred_fallthru
    _
  // Predicated region
  $region70: #{tpu_custom_call.1} parent=0 // pred_check
    _
  $region71: #{tpu_custom_call.1} parent=0 // pred_check_branch
    %105 = sbr.rel (0) target = $region73
  $region72: #{tpu_custom_call.1} parent=0 // pred_region
    _
  $region73: #{tpu_custom_call.1} parent=0 // pred_fallthru
    _
  // Predicated region
  $region74: #{tpu_custom_call.1} parent=0 // pred_check
    _
  $region75: #{tpu_custom_call.1} parent=0 // pred_check_branch
    %107 = sbr.rel (0) target = $region77
  $region76: #{tpu_custom_call.1} parent=0 // pred_region
    _
  $region77: #{tpu_custom_call.1} parent=0 // pred_fallthru
    _
  // Predicated region
  $region78: #{tpu_custom_call.1} parent=0 // pred_check
    _
  $region79: #{tpu_custom_call.1} parent=0 // pred_check_branch
    %109 = sbr.rel (0) target = $region81
  $region80: #{tpu_custom_call.1} parent=0 // pred_region
    _
  $region81: #{tpu_custom_call.1} parent=0 // pred_fallthru
    _
  // Predicated region
  $region82: #{tpu_custom_call.1} parent=0 // pred_check
    _
  $region83: #{tpu_custom_call.1} parent=0 // pred_check_branch
    %111 = sbr.rel (0) target = $region85
  $region84: #{tpu_custom_call.1} parent=0 // pred_region
    _
  $region85: #{tpu_custom_call.1} parent=0 // pred_fallthru
    _
  // Predicated region
  $region86: #{tpu_custom_call.1} parent=0 // pred_check
    _
  $region87: #{tpu_custom_call.1} parent=0 // pred_check_branch
    %113 = sbr.rel (0) target = $region89
  $region88: #{tpu_custom_call.1} parent=0 // pred_region
    _
  $region89: #{tpu_custom_call.1} parent=0 // pred_fallthru
    _
  // Predicated region
  $region90: #{tpu_custom_call.1} parent=0 // pred_check
    _
  $region91: #{tpu_custom_call.1} parent=0 // pred_check_branch
    %115 = sbr.rel (0) target = $region93
  $region92: #{tpu_custom_call.1} parent=0 // pred_region
    _
  $region93: #{tpu_custom_call.1} parent=0 // pred_fallthru
    _
  // Predicated region
  $region94: #{tpu_custom_call.1} parent=0 // pred_check
    _
  $region95: #{tpu_custom_call.1} parent=0 // pred_check_branch
    %117 = sbr.rel (0) target = $region97
  $region96: #{tpu_custom_call.1} parent=0 // pred_region
    _
  $region97: #{tpu_custom_call.1} parent=0 // pred_fallthru
    _
  // Predicated region
  $region98: #{tpu_custom_call.1} parent=0 // pred_check
    _
  $region99: #{tpu_custom_call.1} parent=0 // pred_check_branch
    %119 = sbr.rel (0) target = $region101
  $region100: #{tpu_custom_call.1} parent=0 // pred_region
    _
  $region101: #{tpu_custom_call.1} parent=0 // pred_fallthru
    _
  // Predicated region
  $region102: #{tpu_custom_call.1} parent=0 // pred_check
    _
  $region103: #{tpu_custom_call.1} parent=0 // pred_check_branch
    %121 = sbr.rel (0) target = $region105
  $region104: #{tpu_custom_call.1} parent=0 // pred_region
    _
  $region105: #{tpu_custom_call.1} parent=0 // pred_fallthru
    _
  // Predicated region
  $region106: #{tpu_custom_call.1} parent=0 // pred_check
    _
  $region107: #{tpu_custom_call.1} parent=0 // pred_check_branch
    %123 = sbr.rel (0) target = $region109
  $region108: #{tpu_custom_call.1} parent=0 // pred_region
    _
  $region109: #{tpu_custom_call.1} parent=0 // pred_fallthru
    _
  // Predicated region
  $region110: #{tpu_custom_call.1} parent=0 // pred_check
    _
  $region111: #{tpu_custom_call.1} parent=0 // pred_check_branch
    %125 = sbr.rel (0) target = $region113
  $region112: #{tpu_custom_call.1} parent=0 // pred_region
    _
  $region113: #{tpu_custom_call.1} parent=0 // pred_fallthru
    _
  // Predicated region
  $region114: #{tpu_custom_call.1} parent=0 // pred_check
    _
  $region115: #{tpu_custom_call.1} parent=0 // pred_check_branch
    %127 = sbr.rel (0) target = $region117
  $region116: #{tpu_custom_call.1} parent=0 // pred_region
    _
  $region117: #{tpu_custom_call.1} parent=0 // pred_fallthru
    _
  // Predicated region
  $region118: #{tpu_custom_call.1} parent=0 // pred_check
    _
  $region119: #{tpu_custom_call.1} parent=0 // pred_check_branch
    %129 = sbr.rel (0) target = $region121
  $region120: #{tpu_custom_call.1} parent=0 // pred_region
    _
  $region121: #{tpu_custom_call.1} parent=0 // pred_fallthru
    _
  // Predicated region
  $region122: #{tpu_custom_call.1} parent=0 // pred_check
    _
  $region123: #{tpu_custom_call.1} parent=0 // pred_check_branch
    %131 = sbr.rel (0) target = $region125
  $region124: #{tpu_custom_call.1} parent=0 // pred_region
    _
  $region125: #{tpu_custom_call.1} parent=0 // pred_fallthru
    _
  %v132 = vld [vmem:[%s1] sm:$0xff]
  %v133 = vld [vmem:[%s3] sm:$0xff]
  %v134 = vld [vmem:[%s3 + $0x8] sm:$0xff]
  %v135 = vld [vmem:[%s3 + $0x10] sm:$0xff]
  %v136 = vld [vmem:[%s3 + $0x18] sm:$0xff]
  %v137 = vld [vmem:[%s5] sm:$0x1]
  %v139 = vlaneseq
  %v140 = vshrl.u32 %v139, 7
  %v141 = vsub.s32 0, %v140
  %v142 = vrot.slane %v137, %v141
  %vm144 = vcmask 261120
  %v146 = vsel %vm144, %v132, 0
  %148 = vmatprep.subr.mxu0 0.0
  %149 = vmatpush1.msra.mxu0 0.0
  %150 = vmatprep.subr.mxu0 0.0
  %151 = vmatpush1.msra.mxu0 0.0
  %152 = vmatprep.subr.mxu0 0.0
  %153 = vmatpush1.msra.mxu0 0.0
  %154 = vmatprep.subr.mxu0 0.0
  %155 = vmatpush1.msra.mxu0 0.0
  %156 = vmatprep.subr.mxu0 0.0
  %157 = vmatpush1.msra.mxu0 0.0
  %158 = vmatprep.subr.mxu0 0.0
  %159 = vmatpush1.msra.mxu0 0.0
  %160 = vmatprep.subr.mxu0 0.0
  %161 = vmatpush1.msra.mxu0 0.0
  %162 = vmatprep.subr.mxu0 0.0
  %163 = vmatpush1.msra.mxu0 0.0
  %164 = vmatprep.subr.mxu0 0.0
  %165 = vmatpush1.msra.mxu0 0.0
  %166 = vmatprep.subr.mxu0 0.0
  %167 = vmatpush1.msra.mxu0 0.0
  %168 = vmatprep.subr.mxu0 0.0
  %169 = vmatpush1.msra.mxu0 0.0
  %170 = vmatprep.subr.mxu0 0.0
  %171 = vmatpush1.msra.mxu0 0.0
  %172 = vmatprep.subr.mxu0 0.0
  %173 = vmatpush1.msra.mxu0 %v136
  %174 = vmatprep.subr.mxu0 0.0
  %175 = vmatpush1.msra.mxu0 %v135
  %176 = vmatprep.subr.mxu0 0.0
  %177 = vmatpush1.msra.mxu0 %v134
  %178 = vmatprep.subr.mxu0 0.0
  %179 = vmatpush1.msra.mxu0 %v133
  %180 = vmatprep.subr.mxu0 0.0
  %181 = vmatpush2.msra.mxu0 0.0
  %182 = vmatprep.subr.mxu0 0.0
  %183 = vmatpush2.msra.mxu0 0.0
  %184 = vmatprep.subr.mxu0 0.0
  %185 = vmatpush2.msra.mxu0 0.0
  %186 = vmatprep.subr.mxu0 0.0
  %187 = vmatpush2.msra.mxu0 0.0
  %188 = vmatprep.subr.mxu0 0.0
  %189 = vmatpush2.msra.mxu0 0.0
  %190 = vmatprep.subr.mxu0 0.0
  %191 = vmatpush2.msra.mxu0 0.0
  %192 = vmatprep.subr.mxu0 0.0
  %193 = vmatpush2.msra.mxu0 0.0
  %194 = vmatprep.subr.mxu0 0.0
  %195 = vmatpush2.msra.mxu0 0.0
  %196 = vmatprep.subr.mxu0 0.0
  %197 = vmatpush2.msra.mxu0 0.0
  %198 = vmatprep.subr.mxu0 0.0
  %199 = vmatpush2.msra.mxu0 0.0
  %200 = vmatprep.subr.mxu0 0.0
  %201 = vmatpush2.msra.mxu0 0.0
  %202 = vmatprep.subr.mxu0 0.0
  %203 = vmatpush2.msra.mxu0 0.0
  %204 = vmatprep.subr.mxu0 0.0
  %205 = vmatpush2.msra.mxu0 0.0
  %206 = vmatprep.subr.mxu0 0.0
  %207 = vmatpush2.msra.mxu0 0.0
  %208 = vmatprep.subr.mxu0 0.0
  %209 = vmatpush2.msra.mxu0 0.0
  %210 = vmatprep.subr.mxu0 0.0
  %211 = vmatpush2.msra.mxu0 0.0
  %212 = vmatprep.mubr.f32.mxu0 0.0
  %213 = vmatmul.mubr.f32.gmra.mxu0 %v146
  %v214 = vpop.f32.mrf.mxu0
  %v215 = vadd.f32 %v142, %v214
  %v216 = vpop.f32.mrf.mxu0
  %217 = vdwg.mxu0
  %v218 = vld [vmem:[%s7] sm:$0xff]
  %v219 = vld [vmem:[%s7 + $0x8] sm:$0xff]
  %v220 = vld [vmem:[%s7 + $0x10] sm:$0xff]
  %v221 = vld [vmem:[%s7 + $0x18] sm:$0xff]
  %v222 = vld [vmem:[%s7 + $0x20] sm:$0xff]
  %v223 = vld [vmem:[%s7 + $0x28] sm:$0xff]
  %v224 = vld [vmem:[%s7 + $0x30] sm:$0xff]
  %v225 = vld [vmem:[%s7 + $0x38] sm:$0xff]
  %v226 = vld [vmem:[%s9] sm:$0x1]
  %v228 = vlaneseq
  %v229 = vshrl.u32 %v228, 7
  %v230 = vsub.s32 0, %v229
  %v231 = vrot.slane %v226, %v230
  %vm233 = vcmask 523264
  %v235 = vsel %vm233, %v215, 0
  %237 = vmatprep.subr.mxu0 0.0
  %238 = vmatpush1.msra.mxu0 0.0
  %239 = vmatprep.subr.mxu0 0.0
  %240 = vmatpush1.msra.mxu0 0.0
  %241 = vmatprep.subr.mxu0 0.0
  %242 = vmatpush1.msra.mxu0 0.0
  %243 = vmatprep.subr.mxu0 0.0
  %244 = vmatpush1.msra.mxu0 0.0
  %245 = vmatprep.subr.mxu0 0.0
  %246 = vmatpush1.msra.mxu0 0.0
  %247 = vmatprep.subr.mxu0 0.0
  %248 = vmatpush1.msra.mxu0 0.0
  %249 = vmatprep.subr.mxu0 0.0
  %250 = vmatpush1.msra.mxu0 0.0
  %251 = vmatprep.subr.mxu0 0.0
  %252 = vmatpush1.msra.mxu0 0.0
  %253 = vmatprep.subr.mxu0 0.0
  %254 = vmatpush1.msra.mxu0 %v225
  %255 = vmatprep.subr.mxu0 0.0
  %256 = vmatpush1.msra.mxu0 %v224
  %257 = vmatprep.subr.mxu0 0.0
  %258 = vmatpush1.msra.mxu0 %v223
  %259 = vmatprep.subr.mxu0 0.0
  %260 = vmatpush1.msra.mxu0 %v222
  %261 = vmatprep.subr.mxu0 0.0
  %262 = vmatpush1.msra.mxu0 %v221
  %263 = vmatprep.subr.mxu0 0.0
  %264 = vmatpush1.msra.mxu0 %v220
  %265 = vmatprep.subr.mxu0 0.0
  %266 = vmatpush1.msra.mxu0 %v219
  %267 = vmatprep.subr.mxu0 0.0
  %268 = vmatpush1.msra.mxu0 %v218
  %269 = vmatprep.subr.mxu0 0.0
  %270 = vmatpush2.msra.mxu0 0.0
  %271 = vmatprep.subr.mxu0 0.0
  %272 = vmatpush2.msra.mxu0 0.0
  %273 = vmatprep.subr.mxu0 0.0
  %274 = vmatpush2.msra.mxu0 0.0
  %275 = vmatprep.subr.mxu0 0.0
  %276 = vmatpush2.msra.mxu0 0.0
  %277 = vmatprep.subr.mxu0 0.0
  %278 = vmatpush2.msra.mxu0 0.0
  %279 = vmatprep.subr.mxu0 0.0
  %280 = vmatpush2.msra.mxu0 0.0
  %281 = vmatprep.subr.mxu0 0.0
  %282 = vmatpush2.msra.mxu0 0.0
  %283 = vmatprep.subr.mxu0 0.0
  %284 = vmatpush2.msra.mxu0 0.0
  %285 = vmatprep.subr.mxu0 0.0
  %286 = vmatpush2.msra.mxu0 0.0
  %287 = vmatprep.subr.mxu0 0.0
  %288 = vmatpush2.msra.mxu0 0.0
  %289 = vmatprep.subr.mxu0 0.0
  %290 = vmatpush2.msra.mxu0 0.0
  %291 = vmatprep.subr.mxu0 0.0
  %292 = vmatpush2.msra.mxu0 0.0
  %293 = vmatprep.subr.mxu0 0.0
  %294 = vmatpush2.msra.mxu0 0.0
  %295 = vmatprep.subr.mxu0 0.0
  %296 = vmatpush2.msra.mxu0 0.0
  %297 = vmatprep.subr.mxu0 0.0
  %298 = vmatpush2.msra.mxu0 0.0
  %299 = vmatprep.subr.mxu0 0.0
  %300 = vmatpush2.msra.mxu0 0.0
  %301 = vmatprep.mubr.f32.mxu0 0.0
  %302 = vmatmul.mubr.f32.gmra.mxu0 %v235
  %v303 = vpop.f32.mrf.mxu0
  %v304 = vadd.f32 %v231, %v303
  %v305 = vpop.f32.mrf.mxu0
  %306 = vdwg.mxu0
  %v307 = vadd.f32 %v215, %v304
  %v308 = vld [vmem:[%s11] sm:$0x1]
  %v309 = vld [vmem:[%s13] sm:$0x1]
  %v310 = vsel %vm233, %v307, 0.0
  %311 = vadd.xlane.f32.xlu0 %v310
  %v312 = vpop.xlane.xlu0 %311
  %v313 = vrcp.pop 64.0
  %v314 = vmul.f32 %v312, %v313
  %v315 = vsub.f32 %v307, %v314
  %v316 = vmul.f32 %v315, %v315
  %v317 = vsel %vm233, %v316, 0.0
  %318 = vadd.xlane.f32.xlu0 %v317
  %v319 = vpop.xlane.xlu0 %318
  %v320 = vmul.f32 %v319, %v313
  %v321 = vadd.f32 %v320, 1e-05
  %v322 = vrsqrt.pop %v321
  %v323 = vmul.f32 %v315, %v322
  %v325 = vlaneseq
  %v326 = vshrl.u32 %v325, 7
  %v327 = vsub.s32 0, %v326
  %v328 = vrot.slane %v308, %v327
  %v330 = vmul.f32 %v323, %v328
  %v332 = vlaneseq
  %v333 = vshrl.u32 %v332, 7
  %v334 = vsub.s32 0, %v333
  %v335 = vrot.slane %v309, %v334
  %v337 = vadd.f32 %v330, %v335
  %v338 = vld [vmem:[%s15] sm:$0xff]
  %v339 = vld [vmem:[%s15 + $0x8] sm:$0xff]
  %v340 = vld [vmem:[%s15 + $0x10] sm:$0xff]
  %v341 = vld [vmem:[%s15 + $0x18] sm:$0xff]
  %v342 = vld [vmem:[%s15 + $0x20] sm:$0xff]
  %v343 = vld [vmem:[%s15 + $0x28] sm:$0xff]
  %v344 = vld [vmem:[%s15 + $0x30] sm:$0xff]
  %v345 = vld [vmem:[%s15 + $0x38] sm:$0xff]
  %v346 = vld [vmem:[%s15 + $0x40] sm:$0xff]
  %v347 = vld [vmem:[%s15 + $0x48] sm:$0xff]
  %v348 = vld [vmem:[%s15 + $0x50] sm:$0xff]
  %v349 = vld [vmem:[%s15 + $0x58] sm:$0xff]
  %v350 = vld [vmem:[%s15 + $0x60] sm:$0xff]
  %v351 = vld [vmem:[%s15 + $0x68] sm:$0xff]
  %v352 = vld [vmem:[%s15 + $0x70] sm:$0xff]
  %v353 = vld [vmem:[%s15 + $0x78] sm:$0xff]
  %v354 = vld [vmem:[%s15 + $0x80] sm:$0xff]
  %v355 = vld [vmem:[%s15 + $0x88] sm:$0xff]
  %v356 = vld [vmem:[%s15 + $0x90] sm:$0xff]
  %v357 = vld [vmem:[%s15 + $0x98] sm:$0xff]
  %v358 = vld [vmem:[%s15 + $0xa0] sm:$0xff]
  %v359 = vld [vmem:[%s15 + $0xa8] sm:$0xff]
  %v360 = vld [vmem:[%s15 + $0xb0] sm:$0xff]
  %v361 = vld [vmem:[%s15 + $0xb8] sm:$0xff]
  %v362 = vld [vmem:[%s15 + $0xc0] sm:$0xff]
  %v363 = vld [vmem:[%s15 + $0xc8] sm:$0xff]
  %v364 = vld [vmem:[%s15 + $0xd0] sm:$0xff]
  %v365 = vld [vmem:[%s15 + $0xd8] sm:$0xff]
  %v366 = vld [vmem:[%s15 + $0xe0] sm:$0xff]
  %v367 = vld [vmem:[%s15 + $0xe8] sm:$0xff]
  %v368 = vld [vmem:[%s15 + $0xf0] sm:$0xff]
  %v369 = vld [vmem:[%s15 + $0xf8] sm:$0xff]
  %v370 = vld [vmem:[%s15 + $0x100] sm:$0xff]
  %v371 = vld [vmem:[%s15 + $0x108] sm:$0xff]
  %v372 = vld [vmem:[%s15 + $0x110] sm:$0xff]
  %v373 = vld [vmem:[%s15 + $0x118] sm:$0xff]
  %v374 = vld [vmem:[%s15 + $0x120] sm:$0xff]
  %v375 = vld [vmem:[%s15 + $0x128] sm:$0xff]
  %v376 = vld [vmem:[%s15 + $0x130] sm:$0xff]
  %v377 = vld [vmem:[%s15 + $0x138] sm:$0xff]
  %v378 = vld [vmem:[%s15 + $0x140] sm:$0xff]
  %v379 = vld [vmem:[%s15 + $0x148] sm:$0xff]
  %v380 = vld [vmem:[%s15 + $0x150] sm:$0xff]
  %v381 = vld [vmem:[%s15 + $0x158] sm:$0xff]
  %v382 = vld [vmem:[%s15 + $0x160] sm:$0xff]
  %v383 = vld [vmem:[%s15 + $0x168] sm:$0xff]
  %v384 = vld [vmem:[%s15 + $0x170] sm:$0xff]
  %v385 = vld [vmem:[%s15 + $0x178] sm:$0xff]
  %v386 = vld [vmem:[%s15 + $0x180] sm:$0xff]
  %v387 = vld [vmem:[%s15 + $0x188] sm:$0xff]
  %v388 = vld [vmem:[%s15 + $0x190] sm:$0xff]
  %v389 = vld [vmem:[%s15 + $0x198] sm:$0xff]
  %v390 = vld [vmem:[%s15 + $0x1a0] sm:$0xff]
  %v391 = vld [vmem:[%s15 + $0x1a8] sm:$0xff]
  %v392 = vld [vmem:[%s15 + $0x1b0] sm:$0xff]
  %v393 = vld [vmem:[%s15 + $0x1b8] sm:$0xff]
  %v394 = vld [vmem:[%s15 + $0x1c0] sm:$0xff]
  %v395 = vld [vmem:[%s15 + $0x1c8] sm:$0xff]
  %v396 = vld [vmem:[%s15 + $0x1d0] sm:$0xff]
  %v397 = vld [vmem:[%s15 + $0x1d8] sm:$0xff]
  %v398 = vld [vmem:[%s15 + $0x1e0] sm:$0xff]
  %v399 = vld [vmem:[%s15 + $0x1e8] sm:$0xff]
  %v400 = vld [vmem:[%s15 + $0x1f0] sm:$0xff]
  %v401 = vld [vmem:[%s15 + $0x1f8] sm:$0xff]
  %v402 = vld [vmem:[%s15 + $0x200] sm:$0xff]
  %v403 = vld [vmem:[%s15 + $0x208] sm:$0xff]
  %v404 = vld [vmem:[%s15 + $0x210] sm:$0xff]
  %v405 = vld [vmem:[%s15 + $0x218] sm:$0xff]
  %v406 = vld [vmem:[%s15 + $0x220] sm:$0xff]
  %v407 = vld [vmem:[%s15 + $0x228] sm:$0xff]
  %v408 = vld [vmem:[%s15 + $0x230] sm:$0xff]
  %v409 = vld [vmem:[%s15 + $0x238] sm:$0xff]
  %v410 = vld [vmem:[%s15 + $0x240] sm:$0xff]
  %v411 = vld [vmem:[%s15 + $0x248] sm:$0xff]
  %v412 = vld [vmem:[%s15 + $0x250] sm:$0xff]
  %v413 = vld [vmem:[%s15 + $0x258] sm:$0xff]
  %v414 = vld [vmem:[%s15 + $0x260] sm:$0xff]
  %v415 = vld [vmem:[%s15 + $0x268] sm:$0xff]
  %v416 = vld [vmem:[%s15 + $0x270] sm:$0xff]
  %v417 = vld [vmem:[%s15 + $0x278] sm:$0xff]
  %v418 = vld [vmem:[%s15 + $0x280] sm:$0xff]
  %v419 = vld [vmem:[%s15 + $0x288] sm:$0xff]
  %v420 = vld [vmem:[%s15 + $0x290] sm:$0xff]
  %v421 = vld [vmem:[%s15 + $0x298] sm:$0xff]
  %v422 = vld [vmem:[%s15 + $0x2a0] sm:$0xff]
  %v423 = vld [vmem:[%s15 + $0x2a8] sm:$0xff]
  %v424 = vld [vmem:[%s15 + $0x2b0] sm:$0xff]
  %v425 = vld [vmem:[%s15 + $0x2b8] sm:$0xff]
  %v426 = vld [vmem:[%s15 + $0x2c0] sm:$0xff]
  %v427 = vld [vmem:[%s15 + $0x2c8] sm:$0xff]
  %v428 = vld [vmem:[%s15 + $0x2d0] sm:$0xff]
  %v429 = vld [vmem:[%s15 + $0x2d8] sm:$0xff]
  %v430 = vld [vmem:[%s15 + $0x2e0] sm:$0xff]
  %v431 = vld [vmem:[%s15 + $0x2e8] sm:$0xff]
  %v432 = vld [vmem:[%s15 + $0x2f0] sm:$0xff]
  %v433 = vld [vmem:[%s15 + $0x2f8] sm:$0xff]
  %v434 = vld [vmem:[%s15 + $0x300] sm:$0xff]
  %v435 = vld [vmem:[%s15 + $0x308] sm:$0xff]
  %v436 = vld [vmem:[%s15 + $0x310] sm:$0xff]
  %v437 = vld [vmem:[%s15 + $0x318] sm:$0xff]
  %v438 = vld [vmem:[%s15 + $0x320] sm:$0xff]
  %v439 = vld [vmem:[%s15 + $0x328] sm:$0xff]
  %v440 = vld [vmem:[%s15 + $0x330] sm:$0xff]
  %v441 = vld [vmem:[%s15 + $0x338] sm:$0xff]
  %v442 = vld [vmem:[%s15 + $0x340] sm:$0xff]
  %v443 = vld [vmem:[%s15 + $0x348] sm:$0xff]
  %v444 = vld [vmem:[%s15 + $0x350] sm:$0xff]
  %v445 = vld [vmem:[%s15 + $0x358] sm:$0xff]
  %v446 = vld [vmem:[%s15 + $0x360] sm:$0xff]
  %v447 = vld [vmem:[%s15 + $0x368] sm:$0xff]
  %v448 = vld [vmem:[%s15 + $0x370] sm:$0xff]
  %v449 = vld [vmem:[%s15 + $0x378] sm:$0xff]
  %v450 = vld [vmem:[%s15 + $0x380] sm:$0xff]
  %v451 = vld [vmem:[%s15 + $0x388] sm:$0xff]
  %v452 = vld [vmem:[%s15 + $0x390] sm:$0xff]
  %v453 = vld [vmem:[%s15 + $0x398] sm:$0xff]
  %v454 = vld [vmem:[%s15 + $0x3a0] sm:$0xff]
  %v455 = vld [vmem:[%s15 + $0x3a8] sm:$0xff]
  %v456 = vld [vmem:[%s15 + $0x3b0] sm:$0xff]
  %v457 = vld [vmem:[%s15 + $0x3b8] sm:$0xff]
  %v458 = vld [vmem:[%s15 + $0x3c0] sm:$0xff]
  %v459 = vld [vmem:[%s15 + $0x3c8] sm:$0xff]
  %v460 = vld [vmem:[%s15 + $0x3d0] sm:$0xff]
  %v461 = vld [vmem:[%s15 + $0x3d8] sm:$0xff]
  %v462 = vld [vmem:[%s15 + $0x3e0] sm:$0xff]
  %v463 = vld [vmem:[%s15 + $0x3e8] sm:$0xff]
  %v464 = vld [vmem:[%s15 + $0x3f0] sm:$0xff]
  %v465 = vld [vmem:[%s15 + $0x3f8] sm:$0xff]
  %v466 = vld [vmem:[%s17] sm:$0xff]
  %v467 = vld [vmem:[%s17 + $0x8] sm:$0xff]
  %v470 = vlaneseq
  %v471 = vshrl.u32 %v470, 7
  %v472 = vsub.s32 0, %v471
  %v473 = vrot.slane %v466, %v472
  %v474 = vlaneseq
  %v475 = vshrl.u32 %v474, 7
  %v476 = vsub.s32 1, %v475
  %v477 = vrot.slane %v466, %v476
  %v478 = vlaneseq
  %v479 = vshrl.u32 %v478, 7
  %v480 = vsub.s32 2, %v479
  %v481 = vrot.slane %v466, %v480
  %v482 = vlaneseq
  %v483 = vshrl.u32 %v482, 7
  %v484 = vsub.s32 3, %v483
  %v485 = vrot.slane %v466, %v484
  %v486 = vlaneseq
  %v487 = vshrl.u32 %v486, 7
  %v488 = vsub.s32 4, %v487
  %v489 = vrot.slane %v466, %v488
  %v490 = vlaneseq
  %v491 = vshrl.u32 %v490, 7
  %v492 = vsub.s32 5, %v491
  %v493 = vrot.slane %v466, %v492
  %v494 = vlaneseq
  %v495 = vshrl.u32 %v494, 7
  %v496 = vsub.s32 6, %v495
  %v497 = vrot.slane %v466, %v496
  %v498 = vlaneseq
  %v499 = vshrl.u32 %v498, 7
  %v500 = vsub.s32 7, %v499
  %v501 = vrot.slane %v466, %v500
  %v502 = vlaneseq
  %v503 = vshrl.u32 %v502, 7
  %v504 = vsub.s32 0, %v503
  %v505 = vrot.slane %v467, %v504
  %v506 = vlaneseq
  %v507 = vshrl.u32 %v506, 7
  %v508 = vsub.s32 1, %v507
  %v509 = vrot.slane %v467, %v508
  %v510 = vlaneseq
  %v511 = vshrl.u32 %v510, 7
  %v512 = vsub.s32 2, %v511
  %v513 = vrot.slane %v467, %v512
  %v514 = vlaneseq
  %v515 = vshrl.u32 %v514, 7
  %v516 = vsub.s32 3, %v515
  %v517 = vrot.slane %v467, %v516
  %v518 = vlaneseq
  %v519 = vshrl.u32 %v518, 7
  %v520 = vsub.s32 4, %v519
  %v521 = vrot.slane %v467, %v520
  %v522 = vlaneseq
  %v523 = vshrl.u32 %v522, 7
  %v524 = vsub.s32 5, %v523
  %v525 = vrot.slane %v467, %v524
  %v526 = vlaneseq
  %v527 = vshrl.u32 %v526, 7
  %v528 = vsub.s32 6, %v527
  %v529 = vrot.slane %v467, %v528
  %v530 = vlaneseq
  %v531 = vshrl.u32 %v530, 7
  %v532 = vsub.s32 7, %v531
  %v533 = vrot.slane %v467, %v532
  %v551 = vsel %vm233, %v337, 0
  %553 = vmatprep.subr.mxu0 0.0
  %554 = vmatpush1.msra.mxu0 0.0
  %555 = vmatprep.subr.mxu0 0.0
  %556 = vmatpush1.msra.mxu0 0.0
  %557 = vmatprep.subr.mxu0 0.0
  %558 = vmatpush1.msra.mxu0 0.0
  %559 = vmatprep.subr.mxu0 0.0
  %560 = vmatpush1.msra.mxu0 0.0
  %561 = vmatprep.subr.mxu0 0.0
  %562 = vmatpush1.msra.mxu0 0.0
  %563 = vmatprep.subr.mxu0 0.0
  %564 = vmatpush1.msra.mxu0 0.0
  %565 = vmatprep.subr.mxu0 0.0
  %566 = vmatpush1.msra.mxu0 0.0
  %567 = vmatprep.subr.mxu0 0.0
  %568 = vmatpush1.msra.mxu0 0.0
  %569 = vmatprep.subr.mxu0 %v451
  %570 = vmatpush1.msra.mxu0 %v450
  %571 = vmatprep.subr.mxu0 %v435
  %572 = vmatpush1.msra.mxu0 %v434
  %573 = vmatprep.subr.mxu0 %v419
  %574 = vmatpush1.msra.mxu0 %v418
  %575 = vmatprep.subr.mxu0 %v403
  %576 = vmatpush1.msra.mxu0 %v402
  %577 = vmatprep.subr.mxu0 %v387
  %578 = vmatpush1.msra.mxu0 %v386
  %579 = vmatprep.subr.mxu0 %v371
  %580 = vmatpush1.msra.mxu0 %v370
  %581 = vmatprep.subr.mxu0 %v355
  %582 = vmatpush1.msra.mxu0 %v354
  %583 = vmatprep.subr.mxu0 %v339
  %584 = vmatpush1.msra.mxu0 %v338
  %585 = vmatprep.subr.mxu0 0.0
  %586 = vmatpush2.msra.mxu0 0.0
  %587 = vmatprep.subr.mxu0 0.0
  %588 = vmatpush2.msra.mxu0 0.0
  %589 = vmatprep.subr.mxu0 0.0
  %590 = vmatpush2.msra.mxu0 0.0
  %591 = vmatprep.subr.mxu0 0.0
  %592 = vmatpush2.msra.mxu0 0.0
  %593 = vmatprep.subr.mxu0 0.0
  %594 = vmatpush2.msra.mxu0 0.0
  %595 = vmatprep.subr.mxu0 0.0
  %596 = vmatpush2.msra.mxu0 0.0
  %597 = vmatprep.subr.mxu0 0.0
  %598 = vmatpush2.msra.mxu0 0.0
  %599 = vmatprep.subr.mxu0 0.0
  %600 = vmatpush2.msra.mxu0 0.0
  %601 = vmatprep.subr.mxu0 0.0
  %602 = vmatpush2.msra.mxu0 0.0
  %603 = vmatprep.subr.mxu0 0.0
  %604 = vmatpush2.msra.mxu0 0.0
  %605 = vmatprep.subr.mxu0 0.0
  %606 = vmatpush2.msra.mxu0 0.0
  %607 = vmatprep.subr.mxu0 0.0
  %608 = vmatpush2.msra.mxu0 0.0
  %609 = vmatprep.subr.mxu0 0.0
  %610 = vmatpush2.msra.mxu0 0.0
  %611 = vmatprep.subr.mxu0 0.0
  %612 = vmatpush2.msra.mxu0 0.0
  %613 = vmatprep.subr.mxu0 0.0
  %614 = vmatpush2.msra.mxu0 0.0
  %615 = vmatprep.subr.mxu0 0.0
  %616 = vmatpush2.msra.mxu0 0.0
  %617 = vmatprep.mubr.f32.mxu0 0.0
  %618 = vmatmul.mubr.f32.gmra.mxu0 %v551
  %v619 = vpop.f32.mrf.mxu0
  %v620 = vadd.f32 %v473, %v619
  %v621 = vpop.f32.mrf.mxu0
  %v622 = vadd.f32 %v477, %v621
  %623 = vdwg.mxu0
  %624 = vmatprep.subr.mxu0 0.0
  %625 = vmatpush1.msra.mxu0 0.0
  %626 = vmatprep.subr.mxu0 0.0
  %627 = vmatpush1.msra.mxu0 0.0
  %628 = vmatprep.subr.mxu0 0.0
  %629 = vmatpush1.msra.mxu0 0.0
  %630 = vmatprep.subr.mxu0 0.0
  %631 = vmatpush1.msra.mxu0 0.0
  %632 = vmatprep.subr.mxu0 0.0
  %633 = vmatpush1.msra.mxu0 0.0
  %634 = vmatprep.subr.mxu0 0.0
  %635 = vmatpush1.msra.mxu0 0.0
  %636 = vmatprep.subr.mxu0 0.0
  %637 = vmatpush1.msra.mxu0 0.0
  %638 = vmatprep.subr.mxu0 0.0
  %639 = vmatpush1.msra.mxu0 0.0
  %640 = vmatprep.subr.mxu0 %v453
  %641 = vmatpush1.msra.mxu0 %v452
  %642 = vmatprep.subr.mxu0 %v437
  %643 = vmatpush1.msra.mxu0 %v436
  %644 = vmatprep.subr.mxu0 %v421
  %645 = vmatpush1.msra.mxu0 %v420
  %646 = vmatprep.subr.mxu0 %v405
  %647 = vmatpush1.msra.mxu0 %v404
  %648 = vmatprep.subr.mxu0 %v389
  %649 = vmatpush1.msra.mxu0 %v388
  %650 = vmatprep.subr.mxu0 %v373
  %651 = vmatpush1.msra.mxu0 %v372
  %652 = vmatprep.subr.mxu0 %v357
  %653 = vmatpush1.msra.mxu0 %v356
  %654 = vmatprep.subr.mxu0 %v341
  %655 = vmatpush1.msra.mxu0 %v340
  %656 = vmatprep.subr.mxu0 0.0
  %657 = vmatpush2.msra.mxu0 0.0
  %658 = vmatprep.subr.mxu0 0.0
  %659 = vmatpush2.msra.mxu0 0.0
  %660 = vmatprep.subr.mxu0 0.0
  %661 = vmatpush2.msra.mxu0 0.0
  %662 = vmatprep.subr.mxu0 0.0
  %663 = vmatpush2.msra.mxu0 0.0
  %664 = vmatprep.subr.mxu0 0.0
  %665 = vmatpush2.msra.mxu0 0.0
  %666 = vmatprep.subr.mxu0 0.0
  %667 = vmatpush2.msra.mxu0 0.0
  %668 = vmatprep.subr.mxu0 0.0
  %669 = vmatpush2.msra.mxu0 0.0
  %670 = vmatprep.subr.mxu0 0.0
  %671 = vmatpush2.msra.mxu0 0.0
  %672 = vmatprep.subr.mxu0 0.0
  %673 = vmatpush2.msra.mxu0 0.0
  %674 = vmatprep.subr.mxu0 0.0
  %675 = vmatpush2.msra.mxu0 0.0
  %676 = vmatprep.subr.mxu0 0.0
  %677 = vmatpush2.msra.mxu0 0.0
  %678 = vmatprep.subr.mxu0 0.0
  %679 = vmatpush2.msra.mxu0 0.0
  %680 = vmatprep.subr.mxu0 0.0
  %681 = vmatpush2.msra.mxu0 0.0
  %682 = vmatprep.subr.mxu0 0.0
  %683 = vmatpush2.msra.mxu0 0.0
  %684 = vmatprep.subr.mxu0 0.0
  %685 = vmatpush2.msra.mxu0 0.0
  %686 = vmatprep.subr.mxu0 0.0
  %687 = vmatpush2.msra.mxu0 0.0
  %688 = vmatprep.mubr.f32.mxu0 0.0
  %689 = vmatmul.mubr.f32.gmra.mxu0 %v551
  %v690 = vpop.f32.mrf.mxu0
  %v691 = vadd.f32 %v481, %v690
  %v692 = vpop.f32.mrf.mxu0
  %v693 = vadd.f32 %v485, %v692
  %694 = vdwg.mxu0
  %695 = vmatprep.subr.mxu0 0.0
  %696 = vmatpush1.msra.mxu0 0.0
  %697 = vmatprep.subr.mxu0 0.0
  %698 = vmatpush1.msra.mxu0 0.0
  %699 = vmatprep.subr.mxu0 0.0
  %700 = vmatpush1.msra.mxu0 0.0
  %701 = vmatprep.subr.mxu0 0.0
  %702 = vmatpush1.msra.mxu0 0.0
  %703 = vmatprep.subr.mxu0 0.0
  %704 = vmatpush1.msra.mxu0 0.0
  %705 = vmatprep.subr.mxu0 0.0
  %706 = vmatpush1.msra.mxu0 0.0
  %707 = vmatprep.subr.mxu0 0.0
  %708 = vmatpush1.msra.mxu0 0.0
  %709 = vmatprep.subr.mxu0 0.0
  %710 = vmatpush1.msra.mxu0 0.0
  %711 = vmatprep.subr.mxu0 %v455
  %712 = vmatpush1.msra.mxu0 %v454
  %713 = vmatprep.subr.mxu0 %v439
  %714 = vmatpush1.msra.mxu0 %v438
  %715 = vmatprep.subr.mxu0 %v423
  %716 = vmatpush1.msra.mxu0 %v422
  %717 = vmatprep.subr.mxu0 %v407
  %718 = vmatpush1.msra.mxu0 %v406
  %719 = vmatprep.subr.mxu0 %v391
  %720 = vmatpush1.msra.mxu0 %v390
  %721 = vmatprep.subr.mxu0 %v375
  %722 = vmatpush1.msra.mxu0 %v374
  %723 = vmatprep.subr.mxu0 %v359
  %724 = vmatpush1.msra.mxu0 %v358
  %725 = vmatprep.subr.mxu0 %v343
  %726 = vmatpush1.msra.mxu0 %v342
  %727 = vmatprep.subr.mxu0 0.0
  %728 = vmatpush2.msra.mxu0 0.0
  %729 = vmatprep.subr.mxu0 0.0
  %730 = vmatpush2.msra.mxu0 0.0
  %731 = vmatprep.subr.mxu0 0.0
  %732 = vmatpush2.msra.mxu0 0.0
  %733 = vmatprep.subr.mxu0 0.0
  %734 = vmatpush2.msra.mxu0 0.0
  %735 = vmatprep.subr.mxu0 0.0
  %736 = vmatpush2.msra.mxu0 0.0
  %737 = vmatprep.subr.mxu0 0.0
  %738 = vmatpush2.msra.mxu0 0.0
  %739 = vmatprep.subr.mxu0 0.0
  %740 = vmatpush2.msra.mxu0 0.0
  %741 = vmatprep.subr.mxu0 0.0
  %742 = vmatpush2.msra.mxu0 0.0
  %743 = vmatprep.subr.mxu0 0.0
  %744 = vmatpush2.msra.mxu0 0.0
  %745 = vmatprep.subr.mxu0 0.0
  %746 = vmatpush2.msra.mxu0 0.0
  %747 = vmatprep.subr.mxu0 0.0
  %748 = vmatpush2.msra.mxu0 0.0
  %749 = vmatprep.subr.mxu0 0.0
  %750 = vmatpush2.msra.mxu0 0.0
  %751 = vmatprep.subr.mxu0 0.0
  %752 = vmatpush2.msra.mxu0 0.0
  %753 = vmatprep.subr.mxu0 0.0
  %754 = vmatpush2.msra.mxu0 0.0
  %755 = vmatprep.subr.mxu0 0.0
  %756 = vmatpush2.msra.mxu0 0.0
  %757 = vmatprep.subr.mxu0 0.0
  %758 = vmatpush2.msra.mxu0 0.0
  %759 = vmatprep.mubr.f32.mxu0 0.0
  %760 = vmatmul.mubr.f32.gmra.mxu0 %v551
  %v761 = vpop.f32.mrf.mxu0
  %v762 = vadd.f32 %v489, %v761
  %v763 = vpop.f32.mrf.mxu0
  %v764 = vadd.f32 %v493, %v763
  %765 = vdwg.mxu0
  %766 = vmatprep.subr.mxu0 0.0
  %767 = vmatpush1.msra.mxu0 0.0
  %768 = vmatprep.subr.mxu0 0.0
  %769 = vmatpush1.msra.mxu0 0.0
  %770 = vmatprep.subr.mxu0 0.0
  %771 = vmatpush1.msra.mxu0 0.0
  %772 = vmatprep.subr.mxu0 0.0
  %773 = vmatpush1.msra.mxu0 0.0
  %774 = vmatprep.subr.mxu0 0.0
  %775 = vmatpush1.msra.mxu0 0.0
  %776 = vmatprep.subr.mxu0 0.0
  %777 = vmatpush1.msra.mxu0 0.0
  %778 = vmatprep.subr.mxu0 0.0
  %779 = vmatpush1.msra.mxu0 0.0
  %780 = vmatprep.subr.mxu0 0.0
  %781 = vmatpush1.msra.mxu0 0.0
  %782 = vmatprep.subr.mxu0 %v457
  %783 = vmatpush1.msra.mxu0 %v456
  %784 = vmatprep.subr.mxu0 %v441
  %785 = vmatpush1.msra.mxu0 %v440
  %786 = vmatprep.subr.mxu0 %v425
  %787 = vmatpush1.msra.mxu0 %v424
  %788 = vmatprep.subr.mxu0 %v409
  %789 = vmatpush1.msra.mxu0 %v408
  %790 = vmatprep.subr.mxu0 %v393
  %791 = vmatpush1.msra.mxu0 %v392
  %792 = vmatprep.subr.mxu0 %v377
  %793 = vmatpush1.msra.mxu0 %v376
  %794 = vmatprep.subr.mxu0 %v361
  %795 = vmatpush1.msra.mxu0 %v360
  %796 = vmatprep.subr.mxu0 %v345
  %797 = vmatpush1.msra.mxu0 %v344
  %798 = vmatprep.subr.mxu0 0.0
  %799 = vmatpush2.msra.mxu0 0.0
  %800 = vmatprep.subr.mxu0 0.0
  %801 = vmatpush2.msra.mxu0 0.0
  %802 = vmatprep.subr.mxu0 0.0
  %803 = vmatpush2.msra.mxu0 0.0
  %804 = vmatprep.subr.mxu0 0.0
  %805 = vmatpush2.msra.mxu0 0.0
  %806 = vmatprep.subr.mxu0 0.0
  %807 = vmatpush2.msra.mxu0 0.0
  %808 = vmatprep.subr.mxu0 0.0
  %809 = vmatpush2.msra.mxu0 0.0
  %810 = vmatprep.subr.mxu0 0.0
  %811 = vmatpush2.msra.mxu0 0.0
  %812 = vmatprep.subr.mxu0 0.0
  %813 = vmatpush2.msra.mxu0 0.0
  %814 = vmatprep.subr.mxu0 0.0
  %815 = vmatpush2.msra.mxu0 0.0
  %816 = vmatprep.subr.mxu0 0.0
  %817 = vmatpush2.msra.mxu0 0.0
  %818 = vmatprep.subr.mxu0 0.0
  %819 = vmatpush2.msra.mxu0 0.0
  %820 = vmatprep.subr.mxu0 0.0
  %821 = vmatpush2.msra.mxu0 0.0
  %822 = vmatprep.subr.mxu0 0.0
  %823 = vmatpush2.msra.mxu0 0.0
  %824 = vmatprep.subr.mxu0 0.0
  %825 = vmatpush2.msra.mxu0 0.0
  %826 = vmatprep.subr.mxu0 0.0
  %827 = vmatpush2.msra.mxu0 0.0
  %828 = vmatprep.subr.mxu0 0.0
  %829 = vmatpush2.msra.mxu0 0.0
  %830 = vmatprep.mubr.f32.mxu0 0.0
  %831 = vmatmul.mubr.f32.gmra.mxu0 %v551
  %v832 = vpop.f32.mrf.mxu0
  %v833 = vadd.f32 %v497, %v832
  %v834 = vpop.f32.mrf.mxu0
  %v835 = vadd.f32 %v501, %v834
  %836 = vdwg.mxu0
  %837 = vmatprep.subr.mxu0 0.0
  %838 = vmatpush1.msra.mxu0 0.0
  %839 = vmatprep.subr.mxu0 0.0
  %840 = vmatpush1.msra.mxu0 0.0
  %841 = vmatprep.subr.mxu0 0.0
  %842 = vmatpush1.msra.mxu0 0.0
  %843 = vmatprep.subr.mxu0 0.0
  %844 = vmatpush1.msra.mxu0 0.0
  %845 = vmatprep.subr.mxu0 0.0
  %846 = vmatpush1.msra.mxu0 0.0
  %847 = vmatprep.subr.mxu0 0.0
  %848 = vmatpush1.msra.mxu0 0.0
  %849 = vmatprep.subr.mxu0 0.0
  %850 = vmatpush1.msra.mxu0 0.0
  %851 = vmatprep.subr.mxu0 0.0
  %852 = vmatpush1.msra.mxu0 0.0
  %853 = vmatprep.subr.mxu0 %v459
  %854 = vmatpush1.msra.mxu0 %v458
  %855 = vmatprep.subr.mxu0 %v443
  %856 = vmatpush1.msra.mxu0 %v442
  %857 = vmatprep.subr.mxu0 %v427
  %858 = vmatpush1.msra.mxu0 %v426
  %859 = vmatprep.subr.mxu0 %v411
  %860 = vmatpush1.msra.mxu0 %v410
  %861 = vmatprep.subr.mxu0 %v395
  %862 = vmatpush1.msra.mxu0 %v394
  %863 = vmatprep.subr.mxu0 %v379
  %864 = vmatpush1.msra.mxu0 %v378
  %865 = vmatprep.subr.mxu0 %v363
  %866 = vmatpush1.msra.mxu0 %v362
  %867 = vmatprep.subr.mxu0 %v347
  %868 = vmatpush1.msra.mxu0 %v346
  %869 = vmatprep.subr.mxu0 0.0
  %870 = vmatpush2.msra.mxu0 0.0
  %871 = vmatprep.subr.mxu0 0.0
  %872 = vmatpush2.msra.mxu0 0.0
  %873 = vmatprep.subr.mxu0 0.0
  %874 = vmatpush2.msra.mxu0 0.0
  %875 = vmatprep.subr.mxu0 0.0
  %876 = vmatpush2.msra.mxu0 0.0
  %877 = vmatprep.subr.mxu0 0.0
  %878 = vmatpush2.msra.mxu0 0.0
  %879 = vmatprep.subr.mxu0 0.0
  %880 = vmatpush2.msra.mxu0 0.0
  %881 = vmatprep.subr.mxu0 0.0
  %882 = vmatpush2.msra.mxu0 0.0
  %883 = vmatprep.subr.mxu0 0.0
  %884 = vmatpush2.msra.mxu0 0.0
  %885 = vmatprep.subr.mxu0 0.0
  %886 = vmatpush2.msra.mxu0 0.0
  %887 = vmatprep.subr.mxu0 0.0
  %888 = vmatpush2.msra.mxu0 0.0
  %889 = vmatprep.subr.mxu0 0.0
  %890 = vmatpush2.msra.mxu0 0.0
  %891 = vmatprep.subr.mxu0 0.0
  %892 = vmatpush2.msra.mxu0 0.0
  %893 = vmatprep.subr.mxu0 0.0
  %894 = vmatpush2.msra.mxu0 0.0
  %895 = vmatprep.subr.mxu0 0.0
  %896 = vmatpush2.msra.mxu0 0.0
  %897 = vmatprep.subr.mxu0 0.0
  %898 = vmatpush2.msra.mxu0 0.0
  %899 = vmatprep.subr.mxu0 0.0
  %900 = vmatpush2.msra.mxu0 0.0
  %901 = vmatprep.mubr.f32.mxu0 0.0
  %902 = vmatmul.mubr.f32.gmra.mxu0 %v551
  %v903 = vpop.f32.mrf.mxu0
  %v904 = vadd.f32 %v505, %v903
  %v905 = vpop.f32.mrf.mxu0
  %v906 = vadd.f32 %v509, %v905
  %907 = vdwg.mxu0
  %908 = vmatprep.subr.mxu0 0.0
  %909 = vmatpush1.msra.mxu0 0.0
  %910 = vmatprep.subr.mxu0 0.0
  %911 = vmatpush1.msra.mxu0 0.0
  %912 = vmatprep.subr.mxu0 0.0
  %913 = vmatpush1.msra.mxu0 0.0
  %914 = vmatprep.subr.mxu0 0.0
  %915 = vmatpush1.msra.mxu0 0.0
  %916 = vmatprep.subr.mxu0 0.0
  %917 = vmatpush1.msra.mxu0 0.0
  %918 = vmatprep.subr.mxu0 0.0
  %919 = vmatpush1.msra.mxu0 0.0
  %920 = vmatprep.subr.mxu0 0.0
  %921 = vmatpush1.msra.mxu0 0.0
  %922 = vmatprep.subr.mxu0 0.0
  %923 = vmatpush1.msra.mxu0 0.0
  %924 = vmatprep.subr.mxu0 %v461
  %925 = vmatpush1.msra.mxu0 %v460
  %926 = vmatprep.subr.mxu0 %v445
  %927 = vmatpush1.msra.mxu0 %v444
  %928 = vmatprep.subr.mxu0 %v429
  %929 = vmatpush1.msra.mxu0 %v428
  %930 = vmatprep.subr.mxu0 %v413
  %931 = vmatpush1.msra.mxu0 %v412
  %932 = vmatprep.subr.mxu0 %v397
  %933 = vmatpush1.msra.mxu0 %v396
  %934 = vmatprep.subr.mxu0 %v381
  %935 = vmatpush1.msra.mxu0 %v380
  %936 = vmatprep.subr.mxu0 %v365
  %937 = vmatpush1.msra.mxu0 %v364
  %938 = vmatprep.subr.mxu0 %v349
  %939 = vmatpush1.msra.mxu0 %v348
  %940 = vmatprep.subr.mxu0 0.0
  %941 = vmatpush2.msra.mxu0 0.0
  %942 = vmatprep.subr.mxu0 0.0
  %943 = vmatpush2.msra.mxu0 0.0
  %944 = vmatprep.subr.mxu0 0.0
  %945 = vmatpush2.msra.mxu0 0.0
  %946 = vmatprep.subr.mxu0 0.0
  %947 = vmatpush2.msra.mxu0 0.0
  %948 = vmatprep.subr.mxu0 0.0
  %949 = vmatpush2.msra.mxu0 0.0
  %950 = vmatprep.subr.mxu0 0.0
  %951 = vmatpush2.msra.mxu0 0.0
  %952 = vmatprep.subr.mxu0 0.0
  %953 = vmatpush2.msra.mxu0 0.0
  %954 = vmatprep.subr.mxu0 0.0
  %955 = vmatpush2.msra.mxu0 0.0
  %956 = vmatprep.subr.mxu0 0.0
  %957 = vmatpush2.msra.mxu0 0.0
  %958 = vmatprep.subr.mxu0 0.0
  %959 = vmatpush2.msra.mxu0 0.0
  %960 = vmatprep.subr.mxu0 0.0
  %961 = vmatpush2.msra.mxu0 0.0
  %962 = vmatprep.subr.mxu0 0.0
  %963 = vmatpush2.msra.mxu0 0.0
  %964 = vmatprep.subr.mxu0 0.0
  %965 = vmatpush2.msra.mxu0 0.0
  %966 = vmatprep.subr.mxu0 0.0
  %967 = vmatpush2.msra.mxu0 0.0
  %968 = vmatprep.subr.mxu0 0.0
  %969 = vmatpush2.msra.mxu0 0.0
  %970 = vmatprep.subr.mxu0 0.0
  %971 = vmatpush2.msra.mxu0 0.0
  %972 = vmatprep.mubr.f32.mxu0 0.0
  %973 = vmatmul.mubr.f32.gmra.mxu0 %v551
  %v974 = vpop.f32.mrf.mxu0
  %v975 = vadd.f32 %v513, %v974
  %v976 = vpop.f32.mrf.mxu0
  %v977 = vadd.f32 %v517, %v976
  %978 = vdwg.mxu0
  %979 = vmatprep.subr.mxu0 0.0
  %980 = vmatpush1.msra.mxu0 0.0
  %981 = vmatprep.subr.mxu0 0.0
  %982 = vmatpush1.msra.mxu0 0.0
  %983 = vmatprep.subr.mxu0 0.0
  %984 = vmatpush1.msra.mxu0 0.0
  %985 = vmatprep.subr.mxu0 0.0
  %986 = vmatpush1.msra.mxu0 0.0
  %987 = vmatprep.subr.mxu0 0.0
  %988 = vmatpush1.msra.mxu0 0.0
  %989 = vmatprep.subr.mxu0 0.0
  %990 = vmatpush1.msra.mxu0 0.0
  %991 = vmatprep.subr.mxu0 0.0
  %992 = vmatpush1.msra.mxu0 0.0
  %993 = vmatprep.subr.mxu0 0.0
  %994 = vmatpush1.msra.mxu0 0.0
  %995 = vmatprep.subr.mxu0 %v463
  %996 = vmatpush1.msra.mxu0 %v462
  %997 = vmatprep.subr.mxu0 %v447
  %998 = vmatpush1.msra.mxu0 %v446
  %999 = vmatprep.subr.mxu0 %v431
  %1000 = vmatpush1.msra.mxu0 %v430
  %1001 = vmatprep.subr.mxu0 %v415
  %1002 = vmatpush1.msra.mxu0 %v414
  %1003 = vmatprep.subr.mxu0 %v399
  %1004 = vmatpush1.msra.mxu0 %v398
  %1005 = vmatprep.subr.mxu0 %v383
  %1006 = vmatpush1.msra.mxu0 %v382
  %1007 = vmatprep.subr.mxu0 %v367
  %1008 = vmatpush1.msra.mxu0 %v366
  %1009 = vmatprep.subr.mxu0 %v351
  %1010 = vmatpush1.msra.mxu0 %v350
  %1011 = vmatprep.subr.mxu0 0.0
  %1012 = vmatpush2.msra.mxu0 0.0
  %1013 = vmatprep.subr.mxu0 0.0
  %1014 = vmatpush2.msra.mxu0 0.0
  %1015 = vmatprep.subr.mxu0 0.0
  %1016 = vmatpush2.msra.mxu0 0.0
  %1017 = vmatprep.subr.mxu0 0.0
  %1018 = vmatpush2.msra.mxu0 0.0
  %1019 = vmatprep.subr.mxu0 0.0
  %1020 = vmatpush2.msra.mxu0 0.0
  %1021 = vmatprep.subr.mxu0 0.0
  %1022 = vmatpush2.msra.mxu0 0.0
  %1023 = vmatprep.subr.mxu0 0.0
  %1024 = vmatpush2.msra.mxu0 0.0
  %1025 = vmatprep.subr.mxu0 0.0
  %1026 = vmatpush2.msra.mxu0 0.0
  %1027 = vmatprep.subr.mxu0 0.0
  %1028 = vmatpush2.msra.mxu0 0.0
  %1029 = vmatprep.subr.mxu0 0.0
  %1030 = vmatpush2.msra.mxu0 0.0
  %1031 = vmatprep.subr.mxu0 0.0
  %1032 = vmatpush2.msra.mxu0 0.0
  %1033 = vmatprep.subr.mxu0 0.0
  %1034 = vmatpush2.msra.mxu0 0.0
  %1035 = vmatprep.subr.mxu0 0.0
  %1036 = vmatpush2.msra.mxu0 0.0
  %1037 = vmatprep.subr.mxu0 0.0
  %1038 = vmatpush2.msra.mxu0 0.0
  %1039 = vmatprep.subr.mxu0 0.0
  %1040 = vmatpush2.msra.mxu0 0.0
  %1041 = vmatprep.subr.mxu0 0.0
  %1042 = vmatpush2.msra.mxu0 0.0
  %1043 = vmatprep.mubr.f32.mxu0 0.0
  %1044 = vmatmul.mubr.f32.gmra.mxu0 %v551
  %v1045 = vpop.f32.mrf.mxu0
  %v1046 = vadd.f32 %v521, %v1045
  %v1047 = vpop.f32.mrf.mxu0
  %v1048 = vadd.f32 %v525, %v1047
  %1049 = vdwg.mxu0
  %1050 = vmatprep.subr.mxu0 0.0
  %1051 = vmatpush1.msra.mxu0 0.0
  %1052 = vmatprep.subr.mxu0 0.0
  %1053 = vmatpush1.msra.mxu0 0.0
  %1054 = vmatprep.subr.mxu0 0.0
  %1055 = vmatpush1.msra.mxu0 0.0
  %1056 = vmatprep.subr.mxu0 0.0
  %1057 = vmatpush1.msra.mxu0 0.0
  %1058 = vmatprep.subr.mxu0 0.0
  %1059 = vmatpush1.msra.mxu0 0.0
  %1060 = vmatprep.subr.mxu0 0.0
  %1061 = vmatpush1.msra.mxu0 0.0
  %1062 = vmatprep.subr.mxu0 0.0
  %1063 = vmatpush1.msra.mxu0 0.0
  %1064 = vmatprep.subr.mxu0 0.0
  %1065 = vmatpush1.msra.mxu0 0.0
  %1066 = vmatprep.subr.mxu0 %v465
  %1067 = vmatpush1.msra.mxu0 %v464
  %1068 = vmatprep.subr.mxu0 %v449
  %1069 = vmatpush1.msra.mxu0 %v448
  %1070 = vmatprep.subr.mxu0 %v433
  %1071 = vmatpush1.msra.mxu0 %v432
  %1072 = vmatprep.subr.mxu0 %v417
  %1073 = vmatpush1.msra.mxu0 %v416
  %1074 = vmatprep.subr.mxu0 %v401
  %1075 = vmatpush1.msra.mxu0 %v400
  %1076 = vmatprep.subr.mxu0 %v385
  %1077 = vmatpush1.msra.mxu0 %v384
  %1078 = vmatprep.subr.mxu0 %v369
  %1079 = vmatpush1.msra.mxu0 %v368
  %1080 = vmatprep.subr.mxu0 %v353
  %1081 = vmatpush1.msra.mxu0 %v352
  %1082 = vmatprep.subr.mxu0 0.0
  %1083 = vmatpush2.msra.mxu0 0.0
  %1084 = vmatprep.subr.mxu0 0.0
  %1085 = vmatpush2.msra.mxu0 0.0
  %1086 = vmatprep.subr.mxu0 0.0
  %1087 = vmatpush2.msra.mxu0 0.0
  %1088 = vmatprep.subr.mxu0 0.0
  %1089 = vmatpush2.msra.mxu0 0.0
  %1090 = vmatprep.subr.mxu0 0.0
  %1091 = vmatpush2.msra.mxu0 0.0
  %1092 = vmatprep.subr.mxu0 0.0
  %1093 = vmatpush2.msra.mxu0 0.0
  %1094 = vmatprep.subr.mxu0 0.0
  %1095 = vmatpush2.msra.mxu0 0.0
  %1096 = vmatprep.subr.mxu0 0.0
  %1097 = vmatpush2.msra.mxu0 0.0
  %1098 = vmatprep.subr.mxu0 0.0
  %1099 = vmatpush2.msra.mxu0 0.0
  %1100 = vmatprep.subr.mxu0 0.0
  %1101 = vmatpush2.msra.mxu0 0.0
  %1102 = vmatprep.subr.mxu0 0.0
  %1103 = vmatpush2.msra.mxu0 0.0
  %1104 = vmatprep.subr.mxu0 0.0
  %1105 = vmatpush2.msra.mxu0 0.0
  %1106 = vmatprep.subr.mxu0 0.0
  %1107 = vmatpush2.msra.mxu0 0.0
  %1108 = vmatprep.subr.mxu0 0.0
  %1109 = vmatpush2.msra.mxu0 0.0
  %1110 = vmatprep.subr.mxu0 0.0
  %1111 = vmatpush2.msra.mxu0 0.0
  %1112 = vmatprep.subr.mxu0 0.0
  %1113 = vmatpush2.msra.mxu0 0.0
  %1114 = vmatprep.mubr.f32.mxu0 0.0
  %1115 = vmatmul.mubr.f32.gmra.mxu0 %v551
  %v1116 = vpop.f32.mrf.mxu0
  %v1117 = vadd.f32 %v529, %v1116
  %v1118 = vpop.f32.mrf.mxu0
  %v1119 = vadd.f32 %v533, %v1118
  %1120 = vdwg.mxu0
  %v1121 = vmax.f32 %v620, 0.0
  %v1122 = vmax.f32 %v622, 0.0
  %v1123 = vmax.f32 %v691, 0.0
  %v1124 = vmax.f32 %v693, 0.0
  %v1125 = vmax.f32 %v762, 0.0
  %v1126 = vmax.f32 %v764, 0.0
  %v1127 = vmax.f32 %v833, 0.0
  %v1128 = vmax.f32 %v835, 0.0
  %v1129 = vmax.f32 %v904, 0.0
  %v1130 = vmax.f32 %v906, 0.0
  %v1131 = vmax.f32 %v975, 0.0
  %v1132 = vmax.f32 %v977, 0.0
  %v1133 = vmax.f32 %v1046, 0.0
  %v1134 = vmax.f32 %v1048, 0.0
  %v1135 = vmax.f32 %v1117, 0.0
  %v1136 = vmax.f32 %v1119, 0.0
  %v1137 = vld [vmem:[%s19] sm:$0xff]
  %v1138 = vld [vmem:[%s19 + $0x8] sm:$0xff]
  %v1139 = vld [vmem:[%s19 + $0x10] sm:$0xff]
  %v1140 = vld [vmem:[%s19 + $0x18] sm:$0xff]
  %v1141 = vld [vmem:[%s19 + $0x20] sm:$0xff]
  %v1142 = vld [vmem:[%s19 + $0x28] sm:$0xff]
  %v1143 = vld [vmem:[%s19 + $0x30] sm:$0xff]
  %v1144 = vld [vmem:[%s19 + $0x38] sm:$0xff]
  %v1145 = vld [vmem:[%s19 + $0x40] sm:$0xff]
  %v1146 = vld [vmem:[%s19 + $0x48] sm:$0xff]
  %v1147 = vld [vmem:[%s19 + $0x50] sm:$0xff]
  %v1148 = vld [vmem:[%s19 + $0x58] sm:$0xff]
  %v1149 = vld [vmem:[%s19 + $0x60] sm:$0xff]
  %v1150 = vld [vmem:[%s19 + $0x68] sm:$0xff]
  %v1151 = vld [vmem:[%s19 + $0x70] sm:$0xff]
  %v1152 = vld [vmem:[%s19 + $0x78] sm:$0xff]
  %v1153 = vld [vmem:[%s19 + $0x80] sm:$0xff]
  %v1154 = vld [vmem:[%s19 + $0x88] sm:$0xff]
  %v1155 = vld [vmem:[%s19 + $0x90] sm:$0xff]
  %v1156 = vld [vmem:[%s19 + $0x98] sm:$0xff]
  %v1157 = vld [vmem:[%s19 + $0xa0] sm:$0xff]
  %v1158 = vld [vmem:[%s19 + $0xa8] sm:$0xff]
  %v1159 = vld [vmem:[%s19 + $0xb0] sm:$0xff]
  %v1160 = vld [vmem:[%s19 + $0xb8] sm:$0xff]
  %v1161 = vld [vmem:[%s19 + $0xc0] sm:$0xff]
  %v1162 = vld [vmem:[%s19 + $0xc8] sm:$0xff]
  %v1163 = vld [vmem:[%s19 + $0xd0] sm:$0xff]
  %v1164 = vld [vmem:[%s19 + $0xd8] sm:$0xff]
  %v1165 = vld [vmem:[%s19 + $0xe0] sm:$0xff]
  %v1166 = vld [vmem:[%s19 + $0xe8] sm:$0xff]
  %v1167 = vld [vmem:[%s19 + $0xf0] sm:$0xff]
  %v1168 = vld [vmem:[%s19 + $0xf8] sm:$0xff]
  %v1169 = vld [vmem:[%s19 + $0x100] sm:$0xff]
  %v1170 = vld [vmem:[%s19 + $0x108] sm:$0xff]
  %v1171 = vld [vmem:[%s19 + $0x110] sm:$0xff]
  %v1172 = vld [vmem:[%s19 + $0x118] sm:$0xff]
  %v1173 = vld [vmem:[%s19 + $0x120] sm:$0xff]
  %v1174 = vld [vmem:[%s19 + $0x128] sm:$0xff]
  %v1175 = vld [vmem:[%s19 + $0x130] sm:$0xff]
  %v1176 = vld [vmem:[%s19 + $0x138] sm:$0xff]
  %v1177 = vld [vmem:[%s19 + $0x140] sm:$0xff]
  %v1178 = vld [vmem:[%s19 + $0x148] sm:$0xff]
  %v1179 = vld [vmem:[%s19 + $0x150] sm:$0xff]
  %v1180 = vld [vmem:[%s19 + $0x158] sm:$0xff]
  %v1181 = vld [vmem:[%s19 + $0x160] sm:$0xff]
  %v1182 = vld [vmem:[%s19 + $0x168] sm:$0xff]
  %v1183 = vld [vmem:[%s19 + $0x170] sm:$0xff]
  %v1184 = vld [vmem:[%s19 + $0x178] sm:$0xff]
  %v1185 = vld [vmem:[%s19 + $0x180] sm:$0xff]
  %v1186 = vld [vmem:[%s19 + $0x188] sm:$0xff]
  %v1187 = vld [vmem:[%s19 + $0x190] sm:$0xff]
  %v1188 = vld [vmem:[%s19 + $0x198] sm:$0xff]
  %v1189 = vld [vmem:[%s19 + $0x1a0] sm:$0xff]
  %v1190 = vld [vmem:[%s19 + $0x1a8] sm:$0xff]
  %v1191 = vld [vmem:[%s19 + $0x1b0] sm:$0xff]
  %v1192 = vld [vmem:[%s19 + $0x1b8] sm:$0xff]
  %v1193 = vld [vmem:[%s19 + $0x1c0] sm:$0xff]
  %v1194 = vld [vmem:[%s19 + $0x1c8] sm:$0xff]
  %v1195 = vld [vmem:[%s19 + $0x1d0] sm:$0xff]
  %v1196 = vld [vmem:[%s19 + $0x1d8] sm:$0xff]
  %v1197 = vld [vmem:[%s19 + $0x1e0] sm:$0xff]
  %v1198 = vld [vmem:[%s19 + $0x1e8] sm:$0xff]
  %v1199 = vld [vmem:[%s19 + $0x1f0] sm:$0xff]
  %v1200 = vld [vmem:[%s19 + $0x1f8] sm:$0xff]
  %v1201 = vld [vmem:[%s19 + $0x200] sm:$0xff]
  %v1202 = vld [vmem:[%s19 + $0x208] sm:$0xff]
  %v1203 = vld [vmem:[%s19 + $0x210] sm:$0xff]
  %v1204 = vld [vmem:[%s19 + $0x218] sm:$0xff]
  %v1205 = vld [vmem:[%s19 + $0x220] sm:$0xff]
  %v1206 = vld [vmem:[%s19 + $0x228] sm:$0xff]
  %v1207 = vld [vmem:[%s19 + $0x230] sm:$0xff]
  %v1208 = vld [vmem:[%s19 + $0x238] sm:$0xff]
  %v1209 = vld [vmem:[%s19 + $0x240] sm:$0xff]
  %v1210 = vld [vmem:[%s19 + $0x248] sm:$0xff]
  %v1211 = vld [vmem:[%s19 + $0x250] sm:$0xff]
  %v1212 = vld [vmem:[%s19 + $0x258] sm:$0xff]
  %v1213 = vld [vmem:[%s19 + $0x260] sm:$0xff]
  %v1214 = vld [vmem:[%s19 + $0x268] sm:$0xff]
  %v1215 = vld [vmem:[%s19 + $0x270] sm:$0xff]
  %v1216 = vld [vmem:[%s19 + $0x278] sm:$0xff]
  %v1217 = vld [vmem:[%s19 + $0x280] sm:$0xff]
  %v1218 = vld [vmem:[%s19 + $0x288] sm:$0xff]
  %v1219 = vld [vmem:[%s19 + $0x290] sm:$0xff]
  %v1220 = vld [vmem:[%s19 + $0x298] sm:$0xff]
  %v1221 = vld [vmem:[%s19 + $0x2a0] sm:$0xff]
  %v1222 = vld [vmem:[%s19 + $0x2a8] sm:$0xff]
  %v1223 = vld [vmem:[%s19 + $0x2b0] sm:$0xff]
  %v1224 = vld [vmem:[%s19 + $0x2b8] sm:$0xff]
  %v1225 = vld [vmem:[%s19 + $0x2c0] sm:$0xff]
  %v1226 = vld [vmem:[%s19 + $0x2c8] sm:$0xff]
  %v1227 = vld [vmem:[%s19 + $0x2d0] sm:$0xff]
  %v1228 = vld [vmem:[%s19 + $0x2d8] sm:$0xff]
  %v1229 = vld [vmem:[%s19 + $0x2e0] sm:$0xff]
  %v1230 = vld [vmem:[%s19 + $0x2e8] sm:$0xff]
  %v1231 = vld [vmem:[%s19 + $0x2f0] sm:$0xff]
  %v1232 = vld [vmem:[%s19 + $0x2f8] sm:$0xff]
  %v1233 = vld [vmem:[%s19 + $0x300] sm:$0xff]
  %v1234 = vld [vmem:[%s19 + $0x308] sm:$0xff]
  %v1235 = vld [vmem:[%s19 + $0x310] sm:$0xff]
  %v1236 = vld [vmem:[%s19 + $0x318] sm:$0xff]
  %v1237 = vld [vmem:[%s19 + $0x320] sm:$0xff]
  %v1238 = vld [vmem:[%s19 + $0x328] sm:$0xff]
  %v1239 = vld [vmem:[%s19 + $0x330] sm:$0xff]
  %v1240 = vld [vmem:[%s19 + $0x338] sm:$0xff]
  %v1241 = vld [vmem:[%s19 + $0x340] sm:$0xff]
  %v1242 = vld [vmem:[%s19 + $0x348] sm:$0xff]
  %v1243 = vld [vmem:[%s19 + $0x350] sm:$0xff]
  %v1244 = vld [vmem:[%s19 + $0x358] sm:$0xff]
  %v1245 = vld [vmem:[%s19 + $0x360] sm:$0xff]
  %v1246 = vld [vmem:[%s19 + $0x368] sm:$0xff]
  %v1247 = vld [vmem:[%s19 + $0x370] sm:$0xff]
  %v1248 = vld [vmem:[%s19 + $0x378] sm:$0xff]
  %v1249 = vld [vmem:[%s19 + $0x380] sm:$0xff]
  %v1250 = vld [vmem:[%s19 + $0x388] sm:$0xff]
  %v1251 = vld [vmem:[%s19 + $0x390] sm:$0xff]
  %v1252 = vld [vmem:[%s19 + $0x398] sm:$0xff]
  %v1253 = vld [vmem:[%s19 + $0x3a0] sm:$0xff]
  %v1254 = vld [vmem:[%s19 + $0x3a8] sm:$0xff]
  %v1255 = vld [vmem:[%s19 + $0x3b0] sm:$0xff]
  %v1256 = vld [vmem:[%s19 + $0x3b8] sm:$0xff]
  %v1257 = vld [vmem:[%s19 + $0x3c0] sm:$0xff]
  %v1258 = vld [vmem:[%s19 + $0x3c8] sm:$0xff]
  %v1259 = vld [vmem:[%s19 + $0x3d0] sm:$0xff]
  %v1260 = vld [vmem:[%s19 + $0x3d8] sm:$0xff]
  %v1261 = vld [vmem:[%s19 + $0x3e0] sm:$0xff]
  %v1262 = vld [vmem:[%s19 + $0x3e8] sm:$0xff]
  %v1263 = vld [vmem:[%s19 + $0x3f0] sm:$0xff]
  %v1264 = vld [vmem:[%s19 + $0x3f8] sm:$0xff]
  %v1265 = vld [vmem:[%s19 + $0x400] sm:$0xff]
  %v1266 = vld [vmem:[%s19 + $0x408] sm:$0xff]
  %v1267 = vld [vmem:[%s19 + $0x410] sm:$0xff]
  %v1268 = vld [vmem:[%s19 + $0x418] sm:$0xff]
  %v1269 = vld [vmem:[%s19 + $0x420] sm:$0xff]
  %v1270 = vld [vmem:[%s19 + $0x428] sm:$0xff]
  %v1271 = vld [vmem:[%s19 + $0x430] sm:$0xff]
  %v1272 = vld [vmem:[%s19 + $0x438] sm:$0xff]
  %v1273 = vld [vmem:[%s19 + $0x440] sm:$0xff]
  %v1274 = vld [vmem:[%s19 + $0x448] sm:$0xff]
  %v1275 = vld [vmem:[%s19 + $0x450] sm:$0xff]
  %v1276 = vld [vmem:[%s19 + $0x458] sm:$0xff]
  %v1277 = vld [vmem:[%s19 + $0x460] sm:$0xff]
  %v1278 = vld [vmem:[%s19 + $0x468] sm:$0xff]
  %v1279 = vld [vmem:[%s19 + $0x470] sm:$0xff]
  %v1280 = vld [vmem:[%s19 + $0x478] sm:$0xff]
  %v1281 = vld [vmem:[%s19 + $0x480] sm:$0xff]
  %v1282 = vld [vmem:[%s19 + $0x488] sm:$0xff]
  %v1283 = vld [vmem:[%s19 + $0x490] sm:$0xff]
  %v1284 = vld [vmem:[%s19 + $0x498] sm:$0xff]
  %v1285 = vld [vmem:[%s19 + $0x4a0] sm:$0xff]
  %v1286 = vld [vmem:[%s19 + $0x4a8] sm:$0xff]
  %v1287 = vld [vmem:[%s19 + $0x4b0] sm:$0xff]
  %v1288 = vld [vmem:[%s19 + $0x4b8] sm:$0xff]
  %v1289 = vld [vmem:[%s19 + $0x4c0] sm:$0xff]
  %v1290 = vld [vmem:[%s19 + $0x4c8] sm:$0xff]
  %v1291 = vld [vmem:[%s19 + $0x4d0] sm:$0xff]
  %v1292 = vld [vmem:[%s19 + $0x4d8] sm:$0xff]
  %v1293 = vld [vmem:[%s19 + $0x4e0] sm:$0xff]
  %v1294 = vld [vmem:[%s19 + $0x4e8] sm:$0xff]
  %v1295 = vld [vmem:[%s19 + $0x4f0] sm:$0xff]
  %v1296 = vld [vmem:[%s19 + $0x4f8] sm:$0xff]
  %v1297 = vld [vmem:[%s19 + $0x500] sm:$0xff]
  %v1298 = vld [vmem:[%s19 + $0x508] sm:$0xff]
  %v1299 = vld [vmem:[%s19 + $0x510] sm:$0xff]
  %v1300 = vld [vmem:[%s19 + $0x518] sm:$0xff]
  %v1301 = vld [vmem:[%s19 + $0x520] sm:$0xff]
  %v1302 = vld [vmem:[%s19 + $0x528] sm:$0xff]
  %v1303 = vld [vmem:[%s19 + $0x530] sm:$0xff]
  %v1304 = vld [vmem:[%s19 + $0x538] sm:$0xff]
  %v1305 = vld [vmem:[%s19 + $0x540] sm:$0xff]
  %v1306 = vld [vmem:[%s19 + $0x548] sm:$0xff]
  %v1307 = vld [vmem:[%s19 + $0x550] sm:$0xff]
  %v1308 = vld [vmem:[%s19 + $0x558] sm:$0xff]
  %v1309 = vld [vmem:[%s19 + $0x560] sm:$0xff]
  %v1310 = vld [vmem:[%s19 + $0x568] sm:$0xff]
  %v1311 = vld [vmem:[%s19 + $0x570] sm:$0xff]
  %v1312 = vld [vmem:[%s19 + $0x578] sm:$0xff]
  %v1313 = vld [vmem:[%s19 + $0x580] sm:$0xff]
  %v1314 = vld [vmem:[%s19 + $0x588] sm:$0xff]
  %v1315 = vld [vmem:[%s19 + $0x590] sm:$0xff]
  %v1316 = vld [vmem:[%s19 + $0x598] sm:$0xff]
  %v1317 = vld [vmem:[%s19 + $0x5a0] sm:$0xff]
  %v1318 = vld [vmem:[%s19 + $0x5a8] sm:$0xff]
  %v1319 = vld [vmem:[%s19 + $0x5b0] sm:$0xff]
  %v1320 = vld [vmem:[%s19 + $0x5b8] sm:$0xff]
  %v1321 = vld [vmem:[%s19 + $0x5c0] sm:$0xff]
  %v1322 = vld [vmem:[%s19 + $0x5c8] sm:$0xff]
  %v1323 = vld [vmem:[%s19 + $0x5d0] sm:$0xff]
  %v1324 = vld [vmem:[%s19 + $0x5d8] sm:$0xff]
  %v1325 = vld [vmem:[%s19 + $0x5e0] sm:$0xff]
  %v1326 = vld [vmem:[%s19 + $0x5e8] sm:$0xff]
  %v1327 = vld [vmem:[%s19 + $0x5f0] sm:$0xff]
  %v1328 = vld [vmem:[%s19 + $0x5f8] sm:$0xff]
  %v1329 = vld [vmem:[%s19 + $0x600] sm:$0xff]
  %v1330 = vld [vmem:[%s19 + $0x608] sm:$0xff]
  %v1331 = vld [vmem:[%s19 + $0x610] sm:$0xff]
  %v1332 = vld [vmem:[%s19 + $0x618] sm:$0xff]
  %v1333 = vld [vmem:[%s19 + $0x620] sm:$0xff]
  %v1334 = vld [vmem:[%s19 + $0x628] sm:$0xff]
  %v1335 = vld [vmem:[%s19 + $0x630] sm:$0xff]
  %v1336 = vld [vmem:[%s19 + $0x638] sm:$0xff]
  %v1337 = vld [vmem:[%s19 + $0x640] sm:$0xff]
  %v1338 = vld [vmem:[%s19 + $0x648] sm:$0xff]
  %v1339 = vld [vmem:[%s19 + $0x650] sm:$0xff]
  %v1340 = vld [vmem:[%s19 + $0x658] sm:$0xff]
  %v1341 = vld [vmem:[%s19 + $0x660] sm:$0xff]
  %v1342 = vld [vmem:[%s19 + $0x668] sm:$0xff]
  %v1343 = vld [vmem:[%s19 + $0x670] sm:$0xff]
  %v1344 = vld [vmem:[%s19 + $0x678] sm:$0xff]
  %v1345 = vld [vmem:[%s19 + $0x680] sm:$0xff]
  %v1346 = vld [vmem:[%s19 + $0x688] sm:$0xff]
  %v1347 = vld [vmem:[%s19 + $0x690] sm:$0xff]
  %v1348 = vld [vmem:[%s19 + $0x698] sm:$0xff]
  %v1349 = vld [vmem:[%s19 + $0x6a0] sm:$0xff]
  %v1350 = vld [vmem:[%s19 + $0x6a8] sm:$0xff]
  %v1351 = vld [vmem:[%s19 + $0x6b0] sm:$0xff]
  %v1352 = vld [vmem:[%s19 + $0x6b8] sm:$0xff]
  %v1353 = vld [vmem:[%s19 + $0x6c0] sm:$0xff]
  %v1354 = vld [vmem:[%s19 + $0x6c8] sm:$0xff]
  %v1355 = vld [vmem:[%s19 + $0x6d0] sm:$0xff]
  %v1356 = vld [vmem:[%s19 + $0x6d8] sm:$0xff]
  %v1357 = vld [vmem:[%s19 + $0x6e0] sm:$0xff]
  %v1358 = vld [vmem:[%s19 + $0x6e8] sm:$0xff]
  %v1359 = vld [vmem:[%s19 + $0x6f0] sm:$0xff]
  %v1360 = vld [vmem:[%s19 + $0x6f8] sm:$0xff]
  %v1361 = vld [vmem:[%s19 + $0x700] sm:$0xff]
  %v1362 = vld [vmem:[%s19 + $0x708] sm:$0xff]
  %v1363 = vld [vmem:[%s19 + $0x710] sm:$0xff]
  %v1364 = vld [vmem:[%s19 + $0x718] sm:$0xff]
  %v1365 = vld [vmem:[%s19 + $0x720] sm:$0xff]
  %v1366 = vld [vmem:[%s19 + $0x728] sm:$0xff]
  %v1367 = vld [vmem:[%s19 + $0x730] sm:$0xff]
  %v1368 = vld [vmem:[%s19 + $0x738] sm:$0xff]
  %v1369 = vld [vmem:[%s19 + $0x740] sm:$0xff]
  %v1370 = vld [vmem:[%s19 + $0x748] sm:$0xff]
  %v1371 = vld [vmem:[%s19 + $0x750] sm:$0xff]
  %v1372 = vld [vmem:[%s19 + $0x758] sm:$0xff]
  %v1373 = vld [vmem:[%s19 + $0x760] sm:$0xff]
  %v1374 = vld [vmem:[%s19 + $0x768] sm:$0xff]
  %v1375 = vld [vmem:[%s19 + $0x770] sm:$0xff]
  %v1376 = vld [vmem:[%s19 + $0x778] sm:$0xff]
  %v1377 = vld [vmem:[%s19 + $0x780] sm:$0xff]
  %v1378 = vld [vmem:[%s19 + $0x788] sm:$0xff]
  %v1379 = vld [vmem:[%s19 + $0x790] sm:$0xff]
  %v1380 = vld [vmem:[%s19 + $0x798] sm:$0xff]
  %v1381 = vld [vmem:[%s19 + $0x7a0] sm:$0xff]
  %v1382 = vld [vmem:[%s19 + $0x7a8] sm:$0xff]
  %v1383 = vld [vmem:[%s19 + $0x7b0] sm:$0xff]
  %v1384 = vld [vmem:[%s19 + $0x7b8] sm:$0xff]
  %v1385 = vld [vmem:[%s19 + $0x7c0] sm:$0xff]
  %v1386 = vld [vmem:[%s19 + $0x7c8] sm:$0xff]
  %v1387 = vld [vmem:[%s19 + $0x7d0] sm:$0xff]
  %v1388 = vld [vmem:[%s19 + $0x7d8] sm:$0xff]
  %v1389 = vld [vmem:[%s19 + $0x7e0] sm:$0xff]
  %v1390 = vld [vmem:[%s19 + $0x7e8] sm:$0xff]
  %v1391 = vld [vmem:[%s19 + $0x7f0] sm:$0xff]
  %v1392 = vld [vmem:[%s19 + $0x7f8] sm:$0xff]
  %v1393 = vld [vmem:[%s21] sm:$0x1]
  %v1395 = vlaneseq
  %v1396 = vshrl.u32 %v1395, 7
  %v1397 = vsub.s32 0, %v1396
  %v1398 = vrot.slane %v1393, %v1397
  %1400 = vmatprep.subr.mxu0 0.0
  %1401 = vmatpush1.msra.mxu0 %v1152
  %1402 = vmatprep.subr.mxu0 0.0
  %1403 = vmatpush1.msra.mxu0 %v1151
  %1404 = vmatprep.subr.mxu0 0.0
  %1405 = vmatpush1.msra.mxu0 %v1150
  %1406 = vmatprep.subr.mxu0 0.0
  %1407 = vmatpush1.msra.mxu0 %v1149
  %1408 = vmatprep.subr.mxu0 0.0
  %1409 = vmatpush1.msra.mxu0 %v1148
  %1410 = vmatprep.subr.mxu0 0.0
  %1411 = vmatpush1.msra.mxu0 %v1147
  %1412 = vmatprep.subr.mxu0 0.0
  %1413 = vmatpush1.msra.mxu0 %v1146
  %1414 = vmatprep.subr.mxu0 0.0
  %1415 = vmatpush1.msra.mxu0 %v1145
  %1416 = vmatprep.subr.mxu0 0.0
  %1417 = vmatpush1.msra.mxu0 %v1144
  %1418 = vmatprep.subr.mxu0 0.0
  %1419 = vmatpush1.msra.mxu0 %v1143
  %1420 = vmatprep.subr.mxu0 0.0
  %1421 = vmatpush1.msra.mxu0 %v1142
  %1422 = vmatprep.subr.mxu0 0.0
  %1423 = vmatpush1.msra.mxu0 %v1141
  %1424 = vmatprep.subr.mxu0 0.0
  %1425 = vmatpush1.msra.mxu0 %v1140
  %1426 = vmatprep.subr.mxu0 0.0
  %1427 = vmatpush1.msra.mxu0 %v1139
  %1428 = vmatprep.subr.mxu0 0.0
  %1429 = vmatpush1.msra.mxu0 %v1138
  %1430 = vmatprep.subr.mxu0 0.0
  %1431 = vmatpush1.msra.mxu0 %v1137
  %1432 = vmatprep.subr.mxu0 0.0
  %1433 = vmatpush2.msra.mxu0 %v1168
  %1434 = vmatprep.subr.mxu0 0.0
  %1435 = vmatpush2.msra.mxu0 %v1167
  %1436 = vmatprep.subr.mxu0 0.0
  %1437 = vmatpush2.msra.mxu0 %v1166
  %1438 = vmatprep.subr.mxu0 0.0
  %1439 = vmatpush2.msra.mxu0 %v1165
  %1440 = vmatprep.subr.mxu0 0.0
  %1441 = vmatpush2.msra.mxu0 %v1164
  %1442 = vmatprep.subr.mxu0 0.0
  %1443 = vmatpush2.msra.mxu0 %v1163
  %1444 = vmatprep.subr.mxu0 0.0
  %1445 = vmatpush2.msra.mxu0 %v1162
  %1446 = vmatprep.subr.mxu0 0.0
  %1447 = vmatpush2.msra.mxu0 %v1161
  %1448 = vmatprep.subr.mxu0 0.0
  %1449 = vmatpush2.msra.mxu0 %v1160
  %1450 = vmatprep.subr.mxu0 0.0
  %1451 = vmatpush2.msra.mxu0 %v1159
  %1452 = vmatprep.subr.mxu0 0.0
  %1453 = vmatpush2.msra.mxu0 %v1158
  %1454 = vmatprep.subr.mxu0 0.0
  %1455 = vmatpush2.msra.mxu0 %v1157
  %1456 = vmatprep.subr.mxu0 0.0
  %1457 = vmatpush2.msra.mxu0 %v1156
  %1458 = vmatprep.subr.mxu0 0.0
  %1459 = vmatpush2.msra.mxu0 %v1155
  %1460 = vmatprep.subr.mxu0 0.0
  %1461 = vmatpush2.msra.mxu0 %v1154
  %1462 = vmatprep.subr.mxu0 0.0
  %1463 = vmatpush2.msra.mxu0 %v1153
  %1464 = vmatprep.mubr.f32.mxu0 %v1122
  %1465 = vmatmul.mubr.f32.gmra.mxu0 %v1121
  %v1466 = vpop.f32.mrf.mxu0
  %v1467 = vadd.f32 %v1398, %v1466
  %v1468 = vpop.f32.mrf.mxu0
  %1469 = vdwg.mxu0
  %1470 = vmatprep.subr.mxu0 0.0
  %1471 = vmatpush1.msra.mxu0 %v1184
  %1472 = vmatprep.subr.mxu0 0.0
  %1473 = vmatpush1.msra.mxu0 %v1183
  %1474 = vmatprep.subr.mxu0 0.0
  %1475 = vmatpush1.msra.mxu0 %v1182
  %1476 = vmatprep.subr.mxu0 0.0
  %1477 = vmatpush1.msra.mxu0 %v1181
  %1478 = vmatprep.subr.mxu0 0.0
  %1479 = vmatpush1.msra.mxu0 %v1180
  %1480 = vmatprep.subr.mxu0 0.0
  %1481 = vmatpush1.msra.mxu0 %v1179
  %1482 = vmatprep.subr.mxu0 0.0
  %1483 = vmatpush1.msra.mxu0 %v1178
  %1484 = vmatprep.subr.mxu0 0.0
  %1485 = vmatpush1.msra.mxu0 %v1177
  %1486 = vmatprep.subr.mxu0 0.0
  %1487 = vmatpush1.msra.mxu0 %v1176
  %1488 = vmatprep.subr.mxu0 0.0
  %1489 = vmatpush1.msra.mxu0 %v1175
  %1490 = vmatprep.subr.mxu0 0.0
  %1491 = vmatpush1.msra.mxu0 %v1174
  %1492 = vmatprep.subr.mxu0 0.0
  %1493 = vmatpush1.msra.mxu0 %v1173
  %1494 = vmatprep.subr.mxu0 0.0
  %1495 = vmatpush1.msra.mxu0 %v1172
  %1496 = vmatprep.subr.mxu0 0.0
  %1497 = vmatpush1.msra.mxu0 %v1171
  %1498 = vmatprep.subr.mxu0 0.0
  %1499 = vmatpush1.msra.mxu0 %v1170
  %1500 = vmatprep.subr.mxu0 0.0
  %1501 = vmatpush1.msra.mxu0 %v1169
  %1502 = vmatprep.subr.mxu0 0.0
  %1503 = vmatpush2.msra.mxu0 %v1200
  %1504 = vmatprep.subr.mxu0 0.0
  %1505 = vmatpush2.msra.mxu0 %v1199
  %1506 = vmatprep.subr.mxu0 0.0
  %1507 = vmatpush2.msra.mxu0 %v1198
  %1508 = vmatprep.subr.mxu0 0.0
  %1509 = vmatpush2.msra.mxu0 %v1197
  %1510 = vmatprep.subr.mxu0 0.0
  %1511 = vmatpush2.msra.mxu0 %v1196
  %1512 = vmatprep.subr.mxu0 0.0
  %1513 = vmatpush2.msra.mxu0 %v1195
  %1514 = vmatprep.subr.mxu0 0.0
  %1515 = vmatpush2.msra.mxu0 %v1194
  %1516 = vmatprep.subr.mxu0 0.0
  %1517 = vmatpush2.msra.mxu0 %v1193
  %1518 = vmatprep.subr.mxu0 0.0
  %1519 = vmatpush2.msra.mxu0 %v1192
  %1520 = vmatprep.subr.mxu0 0.0
  %1521 = vmatpush2.msra.mxu0 %v1191
  %1522 = vmatprep.subr.mxu0 0.0
  %1523 = vmatpush2.msra.mxu0 %v1190
  %1524 = vmatprep.subr.mxu0 0.0
  %1525 = vmatpush2.msra.mxu0 %v1189
  %1526 = vmatprep.subr.mxu0 0.0
  %1527 = vmatpush2.msra.mxu0 %v1188
  %1528 = vmatprep.subr.mxu0 0.0
  %1529 = vmatpush2.msra.mxu0 %v1187
  %1530 = vmatprep.subr.mxu0 0.0
  %1531 = vmatpush2.msra.mxu0 %v1186
  %1532 = vmatprep.subr.mxu0 0.0
  %1533 = vmatpush2.msra.mxu0 %v1185
  %1534 = vmatprep.mubr.f32.mxu0 %v1124
  %1535 = vmatmul.mubr.f32.gmra.mxu0 %v1123
  %v1536 = vpop.f32.mrf.mxu0
  %v1537 = vadd.f32 %v1467, %v1536
  %v1538 = vpop.f32.mrf.mxu0
  %1539 = vdwg.mxu0
  %1540 = vmatprep.subr.mxu0 0.0
  %1541 = vmatpush1.msra.mxu0 %v1216
  %1542 = vmatprep.subr.mxu0 0.0
  %1543 = vmatpush1.msra.mxu0 %v1215
  %1544 = vmatprep.subr.mxu0 0.0
  %1545 = vmatpush1.msra.mxu0 %v1214
  %1546 = vmatprep.subr.mxu0 0.0
  %1547 = vmatpush1.msra.mxu0 %v1213
  %1548 = vmatprep.subr.mxu0 0.0
  %1549 = vmatpush1.msra.mxu0 %v1212
  %1550 = vmatprep.subr.mxu0 0.0
  %1551 = vmatpush1.msra.mxu0 %v1211
  %1552 = vmatprep.subr.mxu0 0.0
  %1553 = vmatpush1.msra.mxu0 %v1210
  %1554 = vmatprep.subr.mxu0 0.0
  %1555 = vmatpush1.msra.mxu0 %v1209
  %1556 = vmatprep.subr.mxu0 0.0
  %1557 = vmatpush1.msra.mxu0 %v1208
  %1558 = vmatprep.subr.mxu0 0.0
  %1559 = vmatpush1.msra.mxu0 %v1207
  %1560 = vmatprep.subr.mxu0 0.0
  %1561 = vmatpush1.msra.mxu0 %v1206
  %1562 = vmatprep.subr.mxu0 0.0
  %1563 = vmatpush1.msra.mxu0 %v1205
  %1564 = vmatprep.subr.mxu0 0.0
  %1565 = vmatpush1.msra.mxu0 %v1204
  %1566 = vmatprep.subr.mxu0 0.0
  %1567 = vmatpush1.msra.mxu0 %v1203
  %1568 = vmatprep.subr.mxu0 0.0
  %1569 = vmatpush1.msra.mxu0 %v1202
  %1570 = vmatprep.subr.mxu0 0.0
  %1571 = vmatpush1.msra.mxu0 %v1201
  %1572 = vmatprep.subr.mxu0 0.0
  %1573 = vmatpush2.msra.mxu0 %v1232
  %1574 = vmatprep.subr.mxu0 0.0
  %1575 = vmatpush2.msra.mxu0 %v1231
  %1576 = vmatprep.subr.mxu0 0.0
  %1577 = vmatpush2.msra.mxu0 %v1230
  %1578 = vmatprep.subr.mxu0 0.0
  %1579 = vmatpush2.msra.mxu0 %v1229
  %1580 = vmatprep.subr.mxu0 0.0
  %1581 = vmatpush2.msra.mxu0 %v1228
  %1582 = vmatprep.subr.mxu0 0.0
  %1583 = vmatpush2.msra.mxu0 %v1227
  %1584 = vmatprep.subr.mxu0 0.0
  %1585 = vmatpush2.msra.mxu0 %v1226
  %1586 = vmatprep.subr.mxu0 0.0
  %1587 = vmatpush2.msra.mxu0 %v1225
  %1588 = vmatprep.subr.mxu0 0.0
  %1589 = vmatpush2.msra.mxu0 %v1224
  %1590 = vmatprep.subr.mxu0 0.0
  %1591 = vmatpush2.msra.mxu0 %v1223
  %1592 = vmatprep.subr.mxu0 0.0
  %1593 = vmatpush2.msra.mxu0 %v1222
  %1594 = vmatprep.subr.mxu0 0.0
  %1595 = vmatpush2.msra.mxu0 %v1221
  %1596 = vmatprep.subr.mxu0 0.0
  %1597 = vmatpush2.msra.mxu0 %v1220
  %1598 = vmatprep.subr.mxu0 0.0
  %1599 = vmatpush2.msra.mxu0 %v1219
  %1600 = vmatprep.subr.mxu0 0.0
  %1601 = vmatpush2.msra.mxu0 %v1218
  %1602 = vmatprep.subr.mxu0 0.0
  %1603 = vmatpush2.msra.mxu0 %v1217
  %1604 = vmatprep.mubr.f32.mxu0 %v1126
  %1605 = vmatmul.mubr.f32.gmra.mxu0 %v1125
  %v1606 = vpop.f32.mrf.mxu0
  %v1607 = vadd.f32 %v1537, %v1606
  %v1608 = vpop.f32.mrf.mxu0
  %1609 = vdwg.mxu0
  %1610 = vmatprep.subr.mxu0 0.0
  %1611 = vmatpush1.msra.mxu0 %v1248
  %1612 = vmatprep.subr.mxu0 0.0
  %1613 = vmatpush1.msra.mxu0 %v1247
  %1614 = vmatprep.subr.mxu0 0.0
  %1615 = vmatpush1.msra.mxu0 %v1246
  %1616 = vmatprep.subr.mxu0 0.0
  %1617 = vmatpush1.msra.mxu0 %v1245
  %1618 = vmatprep.subr.mxu0 0.0
  %1619 = vmatpush1.msra.mxu0 %v1244
  %1620 = vmatprep.subr.mxu0 0.0
  %1621 = vmatpush1.msra.mxu0 %v1243
  %1622 = vmatprep.subr.mxu0 0.0
  %1623 = vmatpush1.msra.mxu0 %v1242
  %1624 = vmatprep.subr.mxu0 0.0
  %1625 = vmatpush1.msra.mxu0 %v1241
  %1626 = vmatprep.subr.mxu0 0.0
  %1627 = vmatpush1.msra.mxu0 %v1240
  %1628 = vmatprep.subr.mxu0 0.0
  %1629 = vmatpush1.msra.mxu0 %v1239
  %1630 = vmatprep.subr.mxu0 0.0
  %1631 = vmatpush1.msra.mxu0 %v1238
  %1632 = vmatprep.subr.mxu0 0.0
  %1633 = vmatpush1.msra.mxu0 %v1237
  %1634 = vmatprep.subr.mxu0 0.0
  %1635 = vmatpush1.msra.mxu0 %v1236
  %1636 = vmatprep.subr.mxu0 0.0
  %1637 = vmatpush1.msra.mxu0 %v1235
  %1638 = vmatprep.subr.mxu0 0.0
  %1639 = vmatpush1.msra.mxu0 %v1234
  %1640 = vmatprep.subr.mxu0 0.0
  %1641 = vmatpush1.msra.mxu0 %v1233
  %1642 = vmatprep.subr.mxu0 0.0
  %1643 = vmatpush2.msra.mxu0 %v1264
  %1644 = vmatprep.subr.mxu0 0.0
  %1645 = vmatpush2.msra.mxu0 %v1263
  %1646 = vmatprep.subr.mxu0 0.0
  %1647 = vmatpush2.msra.mxu0 %v1262
  %1648 = vmatprep.subr.mxu0 0.0
  %1649 = vmatpush2.msra.mxu0 %v1261
  %1650 = vmatprep.subr.mxu0 0.0
  %1651 = vmatpush2.msra.mxu0 %v1260
  %1652 = vmatprep.subr.mxu0 0.0
  %1653 = vmatpush2.msra.mxu0 %v1259
  %1654 = vmatprep.subr.mxu0 0.0
  %1655 = vmatpush2.msra.mxu0 %v1258
  %1656 = vmatprep.subr.mxu0 0.0
  %1657 = vmatpush2.msra.mxu0 %v1257
  %1658 = vmatprep.subr.mxu0 0.0
  %1659 = vmatpush2.msra.mxu0 %v1256
  %1660 = vmatprep.subr.mxu0 0.0
  %1661 = vmatpush2.msra.mxu0 %v1255
  %1662 = vmatprep.subr.mxu0 0.0
  %1663 = vmatpush2.msra.mxu0 %v1254
  %1664 = vmatprep.subr.mxu0 0.0
  %1665 = vmatpush2.msra.mxu0 %v1253
  %1666 = vmatprep.subr.mxu0 0.0
  %1667 = vmatpush2.msra.mxu0 %v1252
  %1668 = vmatprep.subr.mxu0 0.0
  %1669 = vmatpush2.msra.mxu0 %v1251
  %1670 = vmatprep.subr.mxu0 0.0
  %1671 = vmatpush2.msra.mxu0 %v1250
  %1672 = vmatprep.subr.mxu0 0.0
  %1673 = vmatpush2.msra.mxu0 %v1249
  %1674 = vmatprep.mubr.f32.mxu0 %v1128
  %1675 = vmatmul.mubr.f32.gmra.mxu0 %v1127
  %v1676 = vpop.f32.mrf.mxu0
  %v1677 = vadd.f32 %v1607, %v1676
  %v1678 = vpop.f32.mrf.mxu0
  %1679 = vdwg.mxu0
  %1680 = vmatprep.subr.mxu0 0.0
  %1681 = vmatpush1.msra.mxu0 %v1280
  %1682 = vmatprep.subr.mxu0 0.0
  %1683 = vmatpush1.msra.mxu0 %v1279
  %1684 = vmatprep.subr.mxu0 0.0
  %1685 = vmatpush1.msra.mxu0 %v1278
  %1686 = vmatprep.subr.mxu0 0.0
  %1687 = vmatpush1.msra.mxu0 %v1277
  %1688 = vmatprep.subr.mxu0 0.0
  %1689 = vmatpush1.msra.mxu0 %v1276
  %1690 = vmatprep.subr.mxu0 0.0
  %1691 = vmatpush1.msra.mxu0 %v1275
  %1692 = vmatprep.subr.mxu0 0.0
  %1693 = vmatpush1.msra.mxu0 %v1274
  %1694 = vmatprep.subr.mxu0 0.0
  %1695 = vmatpush1.msra.mxu0 %v1273
  %1696 = vmatprep.subr.mxu0 0.0
  %1697 = vmatpush1.msra.mxu0 %v1272
  %1698 = vmatprep.subr.mxu0 0.0
  %1699 = vmatpush1.msra.mxu0 %v1271
  %1700 = vmatprep.subr.mxu0 0.0
  %1701 = vmatpush1.msra.mxu0 %v1270
  %1702 = vmatprep.subr.mxu0 0.0
  %1703 = vmatpush1.msra.mxu0 %v1269
  %1704 = vmatprep.subr.mxu0 0.0
  %1705 = vmatpush1.msra.mxu0 %v1268
  %1706 = vmatprep.subr.mxu0 0.0
  %1707 = vmatpush1.msra.mxu0 %v1267
  %1708 = vmatprep.subr.mxu0 0.0
  %1709 = vmatpush1.msra.mxu0 %v1266
  %1710 = vmatprep.subr.mxu0 0.0
  %1711 = vmatpush1.msra.mxu0 %v1265
  %1712 = vmatprep.subr.mxu0 0.0
  %1713 = vmatpush2.msra.mxu0 %v1296
  %1714 = vmatprep.subr.mxu0 0.0
  %1715 = vmatpush2.msra.mxu0 %v1295
  %1716 = vmatprep.subr.mxu0 0.0
  %1717 = vmatpush2.msra.mxu0 %v1294
  %1718 = vmatprep.subr.mxu0 0.0
  %1719 = vmatpush2.msra.mxu0 %v1293
  %1720 = vmatprep.subr.mxu0 0.0
  %1721 = vmatpush2.msra.mxu0 %v1292
  %1722 = vmatprep.subr.mxu0 0.0
  %1723 = vmatpush2.msra.mxu0 %v1291
  %1724 = vmatprep.subr.mxu0 0.0
  %1725 = vmatpush2.msra.mxu0 %v1290
  %1726 = vmatprep.subr.mxu0 0.0
  %1727 = vmatpush2.msra.mxu0 %v1289
  %1728 = vmatprep.subr.mxu0 0.0
  %1729 = vmatpush2.msra.mxu0 %v1288
  %1730 = vmatprep.subr.mxu0 0.0
  %1731 = vmatpush2.msra.mxu0 %v1287
  %1732 = vmatprep.subr.mxu0 0.0
  %1733 = vmatpush2.msra.mxu0 %v1286
  %1734 = vmatprep.subr.mxu0 0.0
  %1735 = vmatpush2.msra.mxu0 %v1285
  %1736 = vmatprep.subr.mxu0 0.0
  %1737 = vmatpush2.msra.mxu0 %v1284
  %1738 = vmatprep.subr.mxu0 0.0
  %1739 = vmatpush2.msra.mxu0 %v1283
  %1740 = vmatprep.subr.mxu0 0.0
  %1741 = vmatpush2.msra.mxu0 %v1282
  %1742 = vmatprep.subr.mxu0 0.0
  %1743 = vmatpush2.msra.mxu0 %v1281
  %1744 = vmatprep.mubr.f32.mxu0 %v1130
  %1745 = vmatmul.mubr.f32.gmra.mxu0 %v1129
  %v1746 = vpop.f32.mrf.mxu0
  %v1747 = vadd.f32 %v1677, %v1746
  %v1748 = vpop.f32.mrf.mxu0
  %1749 = vdwg.mxu0
  %1750 = vmatprep.subr.mxu0 0.0
  %1751 = vmatpush1.msra.mxu0 %v1312
  %1752 = vmatprep.subr.mxu0 0.0
  %1753 = vmatpush1.msra.mxu0 %v1311
  %1754 = vmatprep.subr.mxu0 0.0
  %1755 = vmatpush1.msra.mxu0 %v1310
  %1756 = vmatprep.subr.mxu0 0.0
  %1757 = vmatpush1.msra.mxu0 %v1309
  %1758 = vmatprep.subr.mxu0 0.0
  %1759 = vmatpush1.msra.mxu0 %v1308
  %1760 = vmatprep.subr.mxu0 0.0
  %1761 = vmatpush1.msra.mxu0 %v1307
  %1762 = vmatprep.subr.mxu0 0.0
  %1763 = vmatpush1.msra.mxu0 %v1306
  %1764 = vmatprep.subr.mxu0 0.0
  %1765 = vmatpush1.msra.mxu0 %v1305
  %1766 = vmatprep.subr.mxu0 0.0
  %1767 = vmatpush1.msra.mxu0 %v1304
  %1768 = vmatprep.subr.mxu0 0.0
  %1769 = vmatpush1.msra.mxu0 %v1303
  %1770 = vmatprep.subr.mxu0 0.0
  %1771 = vmatpush1.msra.mxu0 %v1302
  %1772 = vmatprep.subr.mxu0 0.0
  %1773 = vmatpush1.msra.mxu0 %v1301
  %1774 = vmatprep.subr.mxu0 0.0
  %1775 = vmatpush1.msra.mxu0 %v1300
  %1776 = vmatprep.subr.mxu0 0.0
  %1777 = vmatpush1.msra.mxu0 %v1299
  %1778 = vmatprep.subr.mxu0 0.0
  %1779 = vmatpush1.msra.mxu0 %v1298
  %1780 = vmatprep.subr.mxu0 0.0
  %1781 = vmatpush1.msra.mxu0 %v1297
  %1782 = vmatprep.subr.mxu0 0.0
  %1783 = vmatpush2.msra.mxu0 %v1328
  %1784 = vmatprep.subr.mxu0 0.0
  %1785 = vmatpush2.msra.mxu0 %v1327
  %1786 = vmatprep.subr.mxu0 0.0
  %1787 = vmatpush2.msra.mxu0 %v1326
  %1788 = vmatprep.subr.mxu0 0.0
  %1789 = vmatpush2.msra.mxu0 %v1325
  %1790 = vmatprep.subr.mxu0 0.0
  %1791 = vmatpush2.msra.mxu0 %v1324
  %1792 = vmatprep.subr.mxu0 0.0
  %1793 = vmatpush2.msra.mxu0 %v1323
  %1794 = vmatprep.subr.mxu0 0.0
  %1795 = vmatpush2.msra.mxu0 %v1322
  %1796 = vmatprep.subr.mxu0 0.0
  %1797 = vmatpush2.msra.mxu0 %v1321
  %1798 = vmatprep.subr.mxu0 0.0
  %1799 = vmatpush2.msra.mxu0 %v1320
  %1800 = vmatprep.subr.mxu0 0.0
  %1801 = vmatpush2.msra.mxu0 %v1319
  %1802 = vmatprep.subr.mxu0 0.0
  %1803 = vmatpush2.msra.mxu0 %v1318
  %1804 = vmatprep.subr.mxu0 0.0
  %1805 = vmatpush2.msra.mxu0 %v1317
  %1806 = vmatprep.subr.mxu0 0.0
  %1807 = vmatpush2.msra.mxu0 %v1316
  %1808 = vmatprep.subr.mxu0 0.0
  %1809 = vmatpush2.msra.mxu0 %v1315
  %1810 = vmatprep.subr.mxu0 0.0
  %1811 = vmatpush2.msra.mxu0 %v1314
  %1812 = vmatprep.subr.mxu0 0.0
  %1813 = vmatpush2.msra.mxu0 %v1313
  %1814 = vmatprep.mubr.f32.mxu0 %v1132
  %1815 = vmatmul.mubr.f32.gmra.mxu0 %v1131
  %v1816 = vpop.f32.mrf.mxu0
  %v1817 = vadd.f32 %v1747, %v1816
  %v1818 = vpop.f32.mrf.mxu0
  %1819 = vdwg.mxu0
  %1820 = vmatprep.subr.mxu0 0.0
  %1821 = vmatpush1.msra.mxu0 %v1344
  %1822 = vmatprep.subr.mxu0 0.0
  %1823 = vmatpush1.msra.mxu0 %v1343
  %1824 = vmatprep.subr.mxu0 0.0
  %1825 = vmatpush1.msra.mxu0 %v1342
  %1826 = vmatprep.subr.mxu0 0.0
  %1827 = vmatpush1.msra.mxu0 %v1341
  %1828 = vmatprep.subr.mxu0 0.0
  %1829 = vmatpush1.msra.mxu0 %v1340
  %1830 = vmatprep.subr.mxu0 0.0
  %1831 = vmatpush1.msra.mxu0 %v1339
  %1832 = vmatprep.subr.mxu0 0.0
  %1833 = vmatpush1.msra.mxu0 %v1338
  %1834 = vmatprep.subr.mxu0 0.0
  %1835 = vmatpush1.msra.mxu0 %v1337
  %1836 = vmatprep.subr.mxu0 0.0
  %1837 = vmatpush1.msra.mxu0 %v1336
  %1838 = vmatprep.subr.mxu0 0.0
  %1839 = vmatpush1.msra.mxu0 %v1335
  %1840 = vmatprep.subr.mxu0 0.0
  %1841 = vmatpush1.msra.mxu0 %v1334
  %1842 = vmatprep.subr.mxu0 0.0
  %1843 = vmatpush1.msra.mxu0 %v1333
  %1844 = vmatprep.subr.mxu0 0.0
  %1845 = vmatpush1.msra.mxu0 %v1332
  %1846 = vmatprep.subr.mxu0 0.0
  %1847 = vmatpush1.msra.mxu0 %v1331
  %1848 = vmatprep.subr.mxu0 0.0
  %1849 = vmatpush1.msra.mxu0 %v1330
  %1850 = vmatprep.subr.mxu0 0.0
  %1851 = vmatpush1.msra.mxu0 %v1329
  %1852 = vmatprep.subr.mxu0 0.0
  %1853 = vmatpush2.msra.mxu0 %v1360
  %1854 = vmatprep.subr.mxu0 0.0
  %1855 = vmatpush2.msra.mxu0 %v1359
  %1856 = vmatprep.subr.mxu0 0.0
  %1857 = vmatpush2.msra.mxu0 %v1358
  %1858 = vmatprep.subr.mxu0 0.0
  %1859 = vmatpush2.msra.mxu0 %v1357
  %1860 = vmatprep.subr.mxu0 0.0
  %1861 = vmatpush2.msra.mxu0 %v1356
  %1862 = vmatprep.subr.mxu0 0.0
  %1863 = vmatpush2.msra.mxu0 %v1355
  %1864 = vmatprep.subr.mxu0 0.0
  %1865 = vmatpush2.msra.mxu0 %v1354
  %1866 = vmatprep.subr.mxu0 0.0
  %1867 = vmatpush2.msra.mxu0 %v1353
  %1868 = vmatprep.subr.mxu0 0.0
  %1869 = vmatpush2.msra.mxu0 %v1352
  %1870 = vmatprep.subr.mxu0 0.0
  %1871 = vmatpush2.msra.mxu0 %v1351
  %1872 = vmatprep.subr.mxu0 0.0
  %1873 = vmatpush2.msra.mxu0 %v1350
  %1874 = vmatprep.subr.mxu0 0.0
  %1875 = vmatpush2.msra.mxu0 %v1349
  %1876 = vmatprep.subr.mxu0 0.0
  %1877 = vmatpush2.msra.mxu0 %v1348
  %1878 = vmatprep.subr.mxu0 0.0
  %1879 = vmatpush2.msra.mxu0 %v1347
  %1880 = vmatprep.subr.mxu0 0.0
  %1881 = vmatpush2.msra.mxu0 %v1346
  %1882 = vmatprep.subr.mxu0 0.0
  %1883 = vmatpush2.msra.mxu0 %v1345
  %1884 = vmatprep.mubr.f32.mxu0 %v1134
  %1885 = vmatmul.mubr.f32.gmra.mxu0 %v1133
  %v1886 = vpop.f32.mrf.mxu0
  %v1887 = vadd.f32 %v1817, %v1886
  %v1888 = vpop.f32.mrf.mxu0
  %1889 = vdwg.mxu0
  %1890 = vmatprep.subr.mxu0 0.0
  %1891 = vmatpush1.msra.mxu0 %v1376
  %1892 = vmatprep.subr.mxu0 0.0
  %1893 = vmatpush1.msra.mxu0 %v1375
  %1894 = vmatprep.subr.mxu0 0.0
  %1895 = vmatpush1.msra.mxu0 %v1374
  %1896 = vmatprep.subr.mxu0 0.0
  %1897 = vmatpush1.msra.mxu0 %v1373
  %1898 = vmatprep.subr.mxu0 0.0
  %1899 = vmatpush1.msra.mxu0 %v1372
  %1900 = vmatprep.subr.mxu0 0.0
  %1901 = vmatpush1.msra.mxu0 %v1371
  %1902 = vmatprep.subr.mxu0 0.0
  %1903 = vmatpush1.msra.mxu0 %v1370
  %1904 = vmatprep.subr.mxu0 0.0
  %1905 = vmatpush1.msra.mxu0 %v1369
  %1906 = vmatprep.subr.mxu0 0.0
  %1907 = vmatpush1.msra.mxu0 %v1368
  %1908 = vmatprep.subr.mxu0 0.0
  %1909 = vmatpush1.msra.mxu0 %v1367
  %1910 = vmatprep.subr.mxu0 0.0
  %1911 = vmatpush1.msra.mxu0 %v1366
  %1912 = vmatprep.subr.mxu0 0.0
  %1913 = vmatpush1.msra.mxu0 %v1365
  %1914 = vmatprep.subr.mxu0 0.0
  %1915 = vmatpush1.msra.mxu0 %v1364
  %1916 = vmatprep.subr.mxu0 0.0
  %1917 = vmatpush1.msra.mxu0 %v1363
  %1918 = vmatprep.subr.mxu0 0.0
  %1919 = vmatpush1.msra.mxu0 %v1362
  %1920 = vmatprep.subr.mxu0 0.0
  %1921 = vmatpush1.msra.mxu0 %v1361
  %1922 = vmatprep.subr.mxu0 0.0
  %1923 = vmatpush2.msra.mxu0 %v1392
  %1924 = vmatprep.subr.mxu0 0.0
  %1925 = vmatpush2.msra.mxu0 %v1391
  %1926 = vmatprep.subr.mxu0 0.0
  %1927 = vmatpush2.msra.mxu0 %v1390
  %1928 = vmatprep.subr.mxu0 0.0
  %1929 = vmatpush2.msra.mxu0 %v1389
  %1930 = vmatprep.subr.mxu0 0.0
  %1931 = vmatpush2.msra.mxu0 %v1388
  %1932 = vmatprep.subr.mxu0 0.0
  %1933 = vmatpush2.msra.mxu0 %v1387
  %1934 = vmatprep.subr.mxu0 0.0
  %1935 = vmatpush2.msra.mxu0 %v1386
  %1936 = vmatprep.subr.mxu0 0.0
  %1937 = vmatpush2.msra.mxu0 %v1385
  %1938 = vmatprep.subr.mxu0 0.0
  %1939 = vmatpush2.msra.mxu0 %v1384
  %1940 = vmatprep.subr.mxu0 0.0
  %1941 = vmatpush2.msra.mxu0 %v1383
  %1942 = vmatprep.subr.mxu0 0.0
  %1943 = vmatpush2.msra.mxu0 %v1382
  %1944 = vmatprep.subr.mxu0 0.0
  %1945 = vmatpush2.msra.mxu0 %v1381
  %1946 = vmatprep.subr.mxu0 0.0
  %1947 = vmatpush2.msra.mxu0 %v1380
  %1948 = vmatprep.subr.mxu0 0.0
  %1949 = vmatpush2.msra.mxu0 %v1379
  %1950 = vmatprep.subr.mxu0 0.0
  %1951 = vmatpush2.msra.mxu0 %v1378
  %1952 = vmatprep.subr.mxu0 0.0
  %1953 = vmatpush2.msra.mxu0 %v1377
  %1954 = vmatprep.mubr.f32.mxu0 %v1136
  %1955 = vmatmul.mubr.f32.gmra.mxu0 %v1135
  %v1956 = vpop.f32.mrf.mxu0
  %v1957 = vadd.f32 %v1887, %v1956
  %v1958 = vpop.f32.mrf.mxu0
  %1959 = vdwg.mxu0
  %v1960 = vadd.f32 %v337, %v1957
  %v1961 = vld [vmem:[%s23] sm:$0x1]
  %v1962 = vld [vmem:[%s25] sm:$0x1]
  %v1963 = vsel %vm233, %v1960, 0.0
  %1964 = vadd.xlane.f32.xlu0 %v1963
  %v1965 = vpop.xlane.xlu0 %1964
  %v1966 = vmul.f32 %v1965, %v313
  %v1967 = vsub.f32 %v1960, %v1966
  %v1968 = vmul.f32 %v1967, %v1967
  %v1969 = vsel %vm233, %v1968, 0.0
  %1970 = vadd.xlane.f32.xlu0 %v1969
  %v1971 = vpop.xlane.xlu0 %1970
  %v1972 = vmul.f32 %v1971, %v313
  %v1973 = vadd.f32 %v1972, 1e-05
  %v1974 = vrsqrt.pop %v1973
  %v1975 = vmul.f32 %v1967, %v1974
  %v1977 = vlaneseq
  %v1978 = vshrl.u32 %v1977, 7
  %v1979 = vsub.s32 0, %v1978
  %v1980 = vrot.slane %v1961, %v1979
  %v1982 = vmul.f32 %v1975, %v1980
  %v1984 = vlaneseq
  %v1985 = vshrl.u32 %v1984, 7
  %v1986 = vsub.s32 0, %v1985
  %v1987 = vrot.slane %v1962, %v1986
  %v1989 = vadd.f32 %v1982, %v1987
  %v1990 = vld [vmem:[%s27] sm:$0xff]
  %v1991 = vld [vmem:[%s27 + $0x8] sm:$0xff]
  %v1992 = vld [vmem:[%s27 + $0x10] sm:$0xff]
  %v1993 = vld [vmem:[%s27 + $0x18] sm:$0xff]
  %v1994 = vld [vmem:[%s27 + $0x20] sm:$0xff]
  %v1995 = vld [vmem:[%s27 + $0x28] sm:$0xff]
  %v1996 = vld [vmem:[%s27 + $0x30] sm:$0xff]
  %v1997 = vld [vmem:[%s27 + $0x38] sm:$0xff]
  %v1998 = vld [vmem:[%s29] sm:$0x1]
  %v2000 = vlaneseq
  %v2001 = vshrl.u32 %v2000, 7
  %v2002 = vsub.s32 0, %v2001
  %v2003 = vrot.slane %v1998, %v2002
  %v2006 = vsel %vm233, %v1989, 0
  %2008 = vmatprep.subr.mxu0 0.0
  %2009 = vmatpush1.msra.mxu0 0.0
  %2010 = vmatprep.subr.mxu0 0.0
  %2011 = vmatpush1.msra.mxu0 0.0
  %2012 = vmatprep.subr.mxu0 0.0
  %2013 = vmatpush1.msra.mxu0 0.0
  %2014 = vmatprep.subr.mxu0 0.0
  %2015 = vmatpush1.msra.mxu0 0.0
  %2016 = vmatprep.subr.mxu0 0.0
  %2017 = vmatpush1.msra.mxu0 0.0
  %2018 = vmatprep.subr.mxu0 0.0
  %2019 = vmatpush1.msra.mxu0 0.0
  %2020 = vmatprep.subr.mxu0 0.0
  %2021 = vmatpush1.msra.mxu0 0.0
  %2022 = vmatprep.subr.mxu0 0.0
  %2023 = vmatpush1.msra.mxu0 0.0
  %2024 = vmatprep.subr.mxu0 0.0
  %2025 = vmatpush1.msra.mxu0 %v1997
  %2026 = vmatprep.subr.mxu0 0.0
  %2027 = vmatpush1.msra.mxu0 %v1996
  %2028 = vmatprep.subr.mxu0 0.0
  %2029 = vmatpush1.msra.mxu0 %v1995
  %2030 = vmatprep.subr.mxu0 0.0
  %2031 = vmatpush1.msra.mxu0 %v1994
  %2032 = vmatprep.subr.mxu0 0.0
  %2033 = vmatpush1.msra.mxu0 %v1993
  %2034 = vmatprep.subr.mxu0 0.0
  %2035 = vmatpush1.msra.mxu0 %v1992
  %2036 = vmatprep.subr.mxu0 0.0
  %2037 = vmatpush1.msra.mxu0 %v1991
  %2038 = vmatprep.subr.mxu0 0.0
  %2039 = vmatpush1.msra.mxu0 %v1990
  %2040 = vmatprep.subr.mxu0 0.0
  %2041 = vmatpush2.msra.mxu0 0.0
  %2042 = vmatprep.subr.mxu0 0.0
  %2043 = vmatpush2.msra.mxu0 0.0
  %2044 = vmatprep.subr.mxu0 0.0
  %2045 = vmatpush2.msra.mxu0 0.0
  %2046 = vmatprep.subr.mxu0 0.0
  %2047 = vmatpush2.msra.mxu0 0.0
  %2048 = vmatprep.subr.mxu0 0.0
  %2049 = vmatpush2.msra.mxu0 0.0
  %2050 = vmatprep.subr.mxu0 0.0
  %2051 = vmatpush2.msra.mxu0 0.0
  %2052 = vmatprep.subr.mxu0 0.0
  %2053 = vmatpush2.msra.mxu0 0.0
  %2054 = vmatprep.subr.mxu0 0.0
  %2055 = vmatpush2.msra.mxu0 0.0
  %2056 = vmatprep.subr.mxu0 0.0
  %2057 = vmatpush2.msra.mxu0 0.0
  %2058 = vmatprep.subr.mxu0 0.0
  %2059 = vmatpush2.msra.mxu0 0.0
  %2060 = vmatprep.subr.mxu0 0.0
  %2061 = vmatpush2.msra.mxu0 0.0
  %2062 = vmatprep.subr.mxu0 0.0
  %2063 = vmatpush2.msra.mxu0 0.0
  %2064 = vmatprep.subr.mxu0 0.0
  %2065 = vmatpush2.msra.mxu0 0.0
  %2066 = vmatprep.subr.mxu0 0.0
  %2067 = vmatpush2.msra.mxu0 0.0
  %2068 = vmatprep.subr.mxu0 0.0
  %2069 = vmatpush2.msra.mxu0 0.0
  %2070 = vmatprep.subr.mxu0 0.0
  %2071 = vmatpush2.msra.mxu0 0.0
  %2072 = vmatprep.mubr.f32.mxu0 0.0
  %2073 = vmatmul.mubr.f32.gmra.mxu0 %v2006
  %v2074 = vpop.f32.mrf.mxu0
  %v2075 = vadd.f32 %v2003, %v2074
  %v2076 = vpop.f32.mrf.mxu0
  %2077 = vdwg.mxu0
  %v2078 = vadd.f32 %v1989, %v2075
  %v2079 = vld [vmem:[%s31] sm:$0x1]
  %v2080 = vld [vmem:[%s33] sm:$0x1]
  %v2081 = vsel %vm233, %v2078, 0.0
  %2082 = vadd.xlane.f32.xlu0 %v2081
  %v2083 = vpop.xlane.xlu0 %2082
  %v2084 = vmul.f32 %v2083, %v313
  %v2085 = vsub.f32 %v2078, %v2084
  %v2086 = vmul.f32 %v2085, %v2085
  %v2087 = vsel %vm233, %v2086, 0.0
  %2088 = vadd.xlane.f32.xlu0 %v2087
  %v2089 = vpop.xlane.xlu0 %2088
  %v2090 = vmul.f32 %v2089, %v313
  %v2091 = vadd.f32 %v2090, 1e-05
  %v2092 = vrsqrt.pop %v2091
  %v2093 = vmul.f32 %v2085, %v2092
  %v2095 = vlaneseq
  %v2096 = vshrl.u32 %v2095, 7
  %v2097 = vsub.s32 0, %v2096
  %v2098 = vrot.slane %v2079, %v2097
  %v2100 = vmul.f32 %v2093, %v2098
  %v2102 = vlaneseq
  %v2103 = vshrl.u32 %v2102, 7
  %v2104 = vsub.s32 0, %v2103
  %v2105 = vrot.slane %v2080, %v2104
  %v2107 = vadd.f32 %v2100, %v2105
  %v2108 = vld [vmem:[%s35] sm:$0xff]
  %v2109 = vld [vmem:[%s35 + $0x8] sm:$0xff]
  %v2110 = vld [vmem:[%s35 + $0x10] sm:$0xff]
  %v2111 = vld [vmem:[%s35 + $0x18] sm:$0xff]
  %v2112 = vld [vmem:[%s35 + $0x20] sm:$0xff]
  %v2113 = vld [vmem:[%s35 + $0x28] sm:$0xff]
  %v2114 = vld [vmem:[%s35 + $0x30] sm:$0xff]
  %v2115 = vld [vmem:[%s35 + $0x38] sm:$0xff]
  %v2116 = vld [vmem:[%s35 + $0x40] sm:$0xff]
  %v2117 = vld [vmem:[%s35 + $0x48] sm:$0xff]
  %v2118 = vld [vmem:[%s35 + $0x50] sm:$0xff]
  %v2119 = vld [vmem:[%s35 + $0x58] sm:$0xff]
  %v2120 = vld [vmem:[%s35 + $0x60] sm:$0xff]
  %v2121 = vld [vmem:[%s35 + $0x68] sm:$0xff]
  %v2122 = vld [vmem:[%s35 + $0x70] sm:$0xff]
  %v2123 = vld [vmem:[%s35 + $0x78] sm:$0xff]
  %v2124 = vld [vmem:[%s35 + $0x80] sm:$0xff]
  %v2125 = vld [vmem:[%s35 + $0x88] sm:$0xff]
  %v2126 = vld [vmem:[%s35 + $0x90] sm:$0xff]
  %v2127 = vld [vmem:[%s35 + $0x98] sm:$0xff]
  %v2128 = vld [vmem:[%s35 + $0xa0] sm:$0xff]
  %v2129 = vld [vmem:[%s35 + $0xa8] sm:$0xff]
  %v2130 = vld [vmem:[%s35 + $0xb0] sm:$0xff]
  %v2131 = vld [vmem:[%s35 + $0xb8] sm:$0xff]
  %v2132 = vld [vmem:[%s35 + $0xc0] sm:$0xff]
  %v2133 = vld [vmem:[%s35 + $0xc8] sm:$0xff]
  %v2134 = vld [vmem:[%s35 + $0xd0] sm:$0xff]
  %v2135 = vld [vmem:[%s35 + $0xd8] sm:$0xff]
  %v2136 = vld [vmem:[%s35 + $0xe0] sm:$0xff]
  %v2137 = vld [vmem:[%s35 + $0xe8] sm:$0xff]
  %v2138 = vld [vmem:[%s35 + $0xf0] sm:$0xff]
  %v2139 = vld [vmem:[%s35 + $0xf8] sm:$0xff]
  %v2140 = vld [vmem:[%s35 + $0x100] sm:$0xff]
  %v2141 = vld [vmem:[%s35 + $0x108] sm:$0xff]
  %v2142 = vld [vmem:[%s35 + $0x110] sm:$0xff]
  %v2143 = vld [vmem:[%s35 + $0x118] sm:$0xff]
  %v2144 = vld [vmem:[%s35 + $0x120] sm:$0xff]
  %v2145 = vld [vmem:[%s35 + $0x128] sm:$0xff]
  %v2146 = vld [vmem:[%s35 + $0x130] sm:$0xff]
  %v2147 = vld [vmem:[%s35 + $0x138] sm:$0xff]
  %v2148 = vld [vmem:[%s35 + $0x140] sm:$0xff]
  %v2149 = vld [vmem:[%s35 + $0x148] sm:$0xff]
  %v2150 = vld [vmem:[%s35 + $0x150] sm:$0xff]
  %v2151 = vld [vmem:[%s35 + $0x158] sm:$0xff]
  %v2152 = vld [vmem:[%s35 + $0x160] sm:$0xff]
  %v2153 = vld [vmem:[%s35 + $0x168] sm:$0xff]
  %v2154 = vld [vmem:[%s35 + $0x170] sm:$0xff]
  %v2155 = vld [vmem:[%s35 + $0x178] sm:$0xff]
  %v2156 = vld [vmem:[%s35 + $0x180] sm:$0xff]
  %v2157 = vld [vmem:[%s35 + $0x188] sm:$0xff]
  %v2158 = vld [vmem:[%s35 + $0x190] sm:$0xff]
  %v2159 = vld [vmem:[%s35 + $0x198] sm:$0xff]
  %v2160 = vld [vmem:[%s35 + $0x1a0] sm:$0xff]
  %v2161 = vld [vmem:[%s35 + $0x1a8] sm:$0xff]
  %v2162 = vld [vmem:[%s35 + $0x1b0] sm:$0xff]
  %v2163 = vld [vmem:[%s35 + $0x1b8] sm:$0xff]
  %v2164 = vld [vmem:[%s35 + $0x1c0] sm:$0xff]
  %v2165 = vld [vmem:[%s35 + $0x1c8] sm:$0xff]
  %v2166 = vld [vmem:[%s35 + $0x1d0] sm:$0xff]
  %v2167 = vld [vmem:[%s35 + $0x1d8] sm:$0xff]
  %v2168 = vld [vmem:[%s35 + $0x1e0] sm:$0xff]
  %v2169 = vld [vmem:[%s35 + $0x1e8] sm:$0xff]
  %v2170 = vld [vmem:[%s35 + $0x1f0] sm:$0xff]
  %v2171 = vld [vmem:[%s35 + $0x1f8] sm:$0xff]
  %v2172 = vld [vmem:[%s35 + $0x200] sm:$0xff]
  %v2173 = vld [vmem:[%s35 + $0x208] sm:$0xff]
  %v2174 = vld [vmem:[%s35 + $0x210] sm:$0xff]
  %v2175 = vld [vmem:[%s35 + $0x218] sm:$0xff]
  %v2176 = vld [vmem:[%s35 + $0x220] sm:$0xff]
  %v2177 = vld [vmem:[%s35 + $0x228] sm:$0xff]
  %v2178 = vld [vmem:[%s35 + $0x230] sm:$0xff]
  %v2179 = vld [vmem:[%s35 + $0x238] sm:$0xff]
  %v2180 = vld [vmem:[%s35 + $0x240] sm:$0xff]
  %v2181 = vld [vmem:[%s35 + $0x248] sm:$0xff]
  %v2182 = vld [vmem:[%s35 + $0x250] sm:$0xff]
  %v2183 = vld [vmem:[%s35 + $0x258] sm:$0xff]
  %v2184 = vld [vmem:[%s35 + $0x260] sm:$0xff]
  %v2185 = vld [vmem:[%s35 + $0x268] sm:$0xff]
  %v2186 = vld [vmem:[%s35 + $0x270] sm:$0xff]
  %v2187 = vld [vmem:[%s35 + $0x278] sm:$0xff]
  %v2188 = vld [vmem:[%s35 + $0x280] sm:$0xff]
  %v2189 = vld [vmem:[%s35 + $0x288] sm:$0xff]
  %v2190 = vld [vmem:[%s35 + $0x290] sm:$0xff]
  %v2191 = vld [vmem:[%s35 + $0x298] sm:$0xff]
  %v2192 = vld [vmem:[%s35 + $0x2a0] sm:$0xff]
  %v2193 = vld [vmem:[%s35 + $0x2a8] sm:$0xff]
  %v2194 = vld [vmem:[%s35 + $0x2b0] sm:$0xff]
  %v2195 = vld [vmem:[%s35 + $0x2b8] sm:$0xff]
  %v2196 = vld [vmem:[%s35 + $0x2c0] sm:$0xff]
  %v2197 = vld [vmem:[%s35 + $0x2c8] sm:$0xff]
  %v2198 = vld [vmem:[%s35 + $0x2d0] sm:$0xff]
  %v2199 = vld [vmem:[%s35 + $0x2d8] sm:$0xff]
  %v2200 = vld [vmem:[%s35 + $0x2e0] sm:$0xff]
  %v2201 = vld [vmem:[%s35 + $0x2e8] sm:$0xff]
  %v2202 = vld [vmem:[%s35 + $0x2f0] sm:$0xff]
  %v2203 = vld [vmem:[%s35 + $0x2f8] sm:$0xff]
  %v2204 = vld [vmem:[%s35 + $0x300] sm:$0xff]
  %v2205 = vld [vmem:[%s35 + $0x308] sm:$0xff]
  %v2206 = vld [vmem:[%s35 + $0x310] sm:$0xff]
  %v2207 = vld [vmem:[%s35 + $0x318] sm:$0xff]
  %v2208 = vld [vmem:[%s35 + $0x320] sm:$0xff]
  %v2209 = vld [vmem:[%s35 + $0x328] sm:$0xff]
  %v2210 = vld [vmem:[%s35 + $0x330] sm:$0xff]
  %v2211 = vld [vmem:[%s35 + $0x338] sm:$0xff]
  %v2212 = vld [vmem:[%s35 + $0x340] sm:$0xff]
  %v2213 = vld [vmem:[%s35 + $0x348] sm:$0xff]
  %v2214 = vld [vmem:[%s35 + $0x350] sm:$0xff]
  %v2215 = vld [vmem:[%s35 + $0x358] sm:$0xff]
  %v2216 = vld [vmem:[%s35 + $0x360] sm:$0xff]
  %v2217 = vld [vmem:[%s35 + $0x368] sm:$0xff]
  %v2218 = vld [vmem:[%s35 + $0x370] sm:$0xff]
  %v2219 = vld [vmem:[%s35 + $0x378] sm:$0xff]
  %v2220 = vld [vmem:[%s35 + $0x380] sm:$0xff]
  %v2221 = vld [vmem:[%s35 + $0x388] sm:$0xff]
  %v2222 = vld [vmem:[%s35 + $0x390] sm:$0xff]
  %v2223 = vld [vmem:[%s35 + $0x398] sm:$0xff]
  %v2224 = vld [vmem:[%s35 + $0x3a0] sm:$0xff]
  %v2225 = vld [vmem:[%s35 + $0x3a8] sm:$0xff]
  %v2226 = vld [vmem:[%s35 + $0x3b0] sm:$0xff]
  %v2227 = vld [vmem:[%s35 + $0x3b8] sm:$0xff]
  %v2228 = vld [vmem:[%s35 + $0x3c0] sm:$0xff]
  %v2229 = vld [vmem:[%s35 + $0x3c8] sm:$0xff]
  %v2230 = vld [vmem:[%s35 + $0x3d0] sm:$0xff]
  %v2231 = vld [vmem:[%s35 + $0x3d8] sm:$0xff]
  %v2232 = vld [vmem:[%s35 + $0x3e0] sm:$0xff]
  %v2233 = vld [vmem:[%s35 + $0x3e8] sm:$0xff]
  %v2234 = vld [vmem:[%s35 + $0x3f0] sm:$0xff]
  %v2235 = vld [vmem:[%s35 + $0x3f8] sm:$0xff]
  %v2236 = vld [vmem:[%s37] sm:$0xff]
  %v2237 = vld [vmem:[%s37 + $0x8] sm:$0xff]
  %v2240 = vlaneseq
  %v2241 = vshrl.u32 %v2240, 7
  %v2242 = vsub.s32 0, %v2241
  %v2243 = vrot.slane %v2236, %v2242
  %v2244 = vlaneseq
  %v2245 = vshrl.u32 %v2244, 7
  %v2246 = vsub.s32 1, %v2245
  %v2247 = vrot.slane %v2236, %v2246
  %v2248 = vlaneseq
  %v2249 = vshrl.u32 %v2248, 7
  %v2250 = vsub.s32 2, %v2249
  %v2251 = vrot.slane %v2236, %v2250
  %v2252 = vlaneseq
  %v2253 = vshrl.u32 %v2252, 7
  %v2254 = vsub.s32 3, %v2253
  %v2255 = vrot.slane %v2236, %v2254
  %v2256 = vlaneseq
  %v2257 = vshrl.u32 %v2256, 7
  %v2258 = vsub.s32 4, %v2257
  %v2259 = vrot.slane %v2236, %v2258
  %v2260 = vlaneseq
  %v2261 = vshrl.u32 %v2260, 7
  %v2262 = vsub.s32 5, %v2261
  %v2263 = vrot.slane %v2236, %v2262
  %v2264 = vlaneseq
  %v2265 = vshrl.u32 %v2264, 7
  %v2266 = vsub.s32 6, %v2265
  %v2267 = vrot.slane %v2236, %v2266
  %v2268 = vlaneseq
  %v2269 = vshrl.u32 %v2268, 7
  %v2270 = vsub.s32 7, %v2269
  %v2271 = vrot.slane %v2236, %v2270
  %v2272 = vlaneseq
  %v2273 = vshrl.u32 %v2272, 7
  %v2274 = vsub.s32 0, %v2273
  %v2275 = vrot.slane %v2237, %v2274
  %v2276 = vlaneseq
  %v2277 = vshrl.u32 %v2276, 7
  %v2278 = vsub.s32 1, %v2277
  %v2279 = vrot.slane %v2237, %v2278
  %v2280 = vlaneseq
  %v2281 = vshrl.u32 %v2280, 7
  %v2282 = vsub.s32 2, %v2281
  %v2283 = vrot.slane %v2237, %v2282
  %v2284 = vlaneseq
  %v2285 = vshrl.u32 %v2284, 7
  %v2286 = vsub.s32 3, %v2285
  %v2287 = vrot.slane %v2237, %v2286
  %v2288 = vlaneseq
  %v2289 = vshrl.u32 %v2288, 7
  %v2290 = vsub.s32 4, %v2289
  %v2291 = vrot.slane %v2237, %v2290
  %v2292 = vlaneseq
  %v2293 = vshrl.u32 %v2292, 7
  %v2294 = vsub.s32 5, %v2293
  %v2295 = vrot.slane %v2237, %v2294
  %v2296 = vlaneseq
  %v2297 = vshrl.u32 %v2296, 7
  %v2298 = vsub.s32 6, %v2297
  %v2299 = vrot.slane %v2237, %v2298
  %v2300 = vlaneseq
  %v2301 = vshrl.u32 %v2300, 7
  %v2302 = vsub.s32 7, %v2301
  %v2303 = vrot.slane %v2237, %v2302
  %v2321 = vsel %vm233, %v2107, 0
  %2323 = vmatprep.subr.mxu0 0.0
  %2324 = vmatpush1.msra.mxu0 0.0
  %2325 = vmatprep.subr.mxu0 0.0
  %2326 = vmatpush1.msra.mxu0 0.0
  %2327 = vmatprep.subr.mxu0 0.0
  %2328 = vmatpush1.msra.mxu0 0.0
  %2329 = vmatprep.subr.mxu0 0.0
  %2330 = vmatpush1.msra.mxu0 0.0
  %2331 = vmatprep.subr.mxu0 0.0
  %2332 = vmatpush1.msra.mxu0 0.0
  %2333 = vmatprep.subr.mxu0 0.0
  %2334 = vmatpush1.msra.mxu0 0.0
  %2335 = vmatprep.subr.mxu0 0.0
  %2336 = vmatpush1.msra.mxu0 0.0
  %2337 = vmatprep.subr.mxu0 0.0
  %2338 = vmatpush1.msra.mxu0 0.0
  %2339 = vmatprep.subr.mxu0 %v2221
  %2340 = vmatpush1.msra.mxu0 %v2220
  %2341 = vmatprep.subr.mxu0 %v2205
  %2342 = vmatpush1.msra.mxu0 %v2204
  %2343 = vmatprep.subr.mxu0 %v2189
  %2344 = vmatpush1.msra.mxu0 %v2188
  %2345 = vmatprep.subr.mxu0 %v2173
  %2346 = vmatpush1.msra.mxu0 %v2172
  %2347 = vmatprep.subr.mxu0 %v2157
  %2348 = vmatpush1.msra.mxu0 %v2156
  %2349 = vmatprep.subr.mxu0 %v2141
  %2350 = vmatpush1.msra.mxu0 %v2140
  %2351 = vmatprep.subr.mxu0 %v2125
  %2352 = vmatpush1.msra.mxu0 %v2124
  %2353 = vmatprep.subr.mxu0 %v2109
  %2354 = vmatpush1.msra.mxu0 %v2108
  %2355 = vmatprep.subr.mxu0 0.0
  %2356 = vmatpush2.msra.mxu0 0.0
  %2357 = vmatprep.subr.mxu0 0.0
  %2358 = vmatpush2.msra.mxu0 0.0
  %2359 = vmatprep.subr.mxu0 0.0
  %2360 = vmatpush2.msra.mxu0 0.0
  %2361 = vmatprep.subr.mxu0 0.0
  %2362 = vmatpush2.msra.mxu0 0.0
  %2363 = vmatprep.subr.mxu0 0.0
  %2364 = vmatpush2.msra.mxu0 0.0
  %2365 = vmatprep.subr.mxu0 0.0
  %2366 = vmatpush2.msra.mxu0 0.0
  %2367 = vmatprep.subr.mxu0 0.0
  %2368 = vmatpush2.msra.mxu0 0.0
  %2369 = vmatprep.subr.mxu0 0.0
  %2370 = vmatpush2.msra.mxu0 0.0
  %2371 = vmatprep.subr.mxu0 0.0
  %2372 = vmatpush2.msra.mxu0 0.0
  %2373 = vmatprep.subr.mxu0 0.0
  %2374 = vmatpush2.msra.mxu0 0.0
  %2375 = vmatprep.subr.mxu0 0.0
  %2376 = vmatpush2.msra.mxu0 0.0
  %2377 = vmatprep.subr.mxu0 0.0
  %2378 = vmatpush2.msra.mxu0 0.0
  %2379 = vmatprep.subr.mxu0 0.0
  %2380 = vmatpush2.msra.mxu0 0.0
  %2381 = vmatprep.subr.mxu0 0.0
  %2382 = vmatpush2.msra.mxu0 0.0
  %2383 = vmatprep.subr.mxu0 0.0
  %2384 = vmatpush2.msra.mxu0 0.0
  %2385 = vmatprep.subr.mxu0 0.0
  %2386 = vmatpush2.msra.mxu0 0.0
  %2387 = vmatprep.mubr.f32.mxu0 0.0
  %2388 = vmatmul.mubr.f32.gmra.mxu0 %v2321
  %v2389 = vpop.f32.mrf.mxu0
  %v2390 = vadd.f32 %v2243, %v2389
  %v2391 = vpop.f32.mrf.mxu0
  %v2392 = vadd.f32 %v2247, %v2391
  %2393 = vdwg.mxu0
  %2394 = vmatprep.subr.mxu0 0.0
  %2395 = vmatpush1.msra.mxu0 0.0
  %2396 = vmatprep.subr.mxu0 0.0
  %2397 = vmatpush1.msra.mxu0 0.0
  %2398 = vmatprep.subr.mxu0 0.0
  %2399 = vmatpush1.msra.mxu0 0.0
  %2400 = vmatprep.subr.mxu0 0.0
  %2401 = vmatpush1.msra.mxu0 0.0
  %2402 = vmatprep.subr.mxu0 0.0
  %2403 = vmatpush1.msra.mxu0 0.0
  %2404 = vmatprep.subr.mxu0 0.0
  %2405 = vmatpush1.msra.mxu0 0.0
  %2406 = vmatprep.subr.mxu0 0.0
  %2407 = vmatpush1.msra.mxu0 0.0
  %2408 = vmatprep.subr.mxu0 0.0
  %2409 = vmatpush1.msra.mxu0 0.0
  %2410 = vmatprep.subr.mxu0 %v2223
  %2411 = vmatpush1.msra.mxu0 %v2222
  %2412 = vmatprep.subr.mxu0 %v2207
  %2413 = vmatpush1.msra.mxu0 %v2206
  %2414 = vmatprep.subr.mxu0 %v2191
  %2415 = vmatpush1.msra.mxu0 %v2190
  %2416 = vmatprep.subr.mxu0 %v2175
  %2417 = vmatpush1.msra.mxu0 %v2174
  %2418 = vmatprep.subr.mxu0 %v2159
  %2419 = vmatpush1.msra.mxu0 %v2158
  %2420 = vmatprep.subr.mxu0 %v2143
  %2421 = vmatpush1.msra.mxu0 %v2142
  %2422 = vmatprep.subr.mxu0 %v2127
  %2423 = vmatpush1.msra.mxu0 %v2126
  %2424 = vmatprep.subr.mxu0 %v2111
  %2425 = vmatpush1.msra.mxu0 %v2110
  %2426 = vmatprep.subr.mxu0 0.0
  %2427 = vmatpush2.msra.mxu0 0.0
  %2428 = vmatprep.subr.mxu0 0.0
  %2429 = vmatpush2.msra.mxu0 0.0
  %2430 = vmatprep.subr.mxu0 0.0
  %2431 = vmatpush2.msra.mxu0 0.0
  %2432 = vmatprep.subr.mxu0 0.0
  %2433 = vmatpush2.msra.mxu0 0.0
  %2434 = vmatprep.subr.mxu0 0.0
  %2435 = vmatpush2.msra.mxu0 0.0
  %2436 = vmatprep.subr.mxu0 0.0
  %2437 = vmatpush2.msra.mxu0 0.0
  %2438 = vmatprep.subr.mxu0 0.0
  %2439 = vmatpush2.msra.mxu0 0.0
  %2440 = vmatprep.subr.mxu0 0.0
  %2441 = vmatpush2.msra.mxu0 0.0
  %2442 = vmatprep.subr.mxu0 0.0
  %2443 = vmatpush2.msra.mxu0 0.0
  %2444 = vmatprep.subr.mxu0 0.0
  %2445 = vmatpush2.msra.mxu0 0.0
  %2446 = vmatprep.subr.mxu0 0.0
  %2447 = vmatpush2.msra.mxu0 0.0
  %2448 = vmatprep.subr.mxu0 0.0
  %2449 = vmatpush2.msra.mxu0 0.0
  %2450 = vmatprep.subr.mxu0 0.0
  %2451 = vmatpush2.msra.mxu0 0.0
  %2452 = vmatprep.subr.mxu0 0.0
  %2453 = vmatpush2.msra.mxu0 0.0
  %2454 = vmatprep.subr.mxu0 0.0
  %2455 = vmatpush2.msra.mxu0 0.0
  %2456 = vmatprep.subr.mxu0 0.0
  %2457 = vmatpush2.msra.mxu0 0.0
  %2458 = vmatprep.mubr.f32.mxu0 0.0
  %2459 = vmatmul.mubr.f32.gmra.mxu0 %v2321
  %v2460 = vpop.f32.mrf.mxu0
  %v2461 = vadd.f32 %v2251, %v2460
  %v2462 = vpop.f32.mrf.mxu0
  %v2463 = vadd.f32 %v2255, %v2462
  %2464 = vdwg.mxu0
  %2465 = vmatprep.subr.mxu0 0.0
  %2466 = vmatpush1.msra.mxu0 0.0
  %2467 = vmatprep.subr.mxu0 0.0
  %2468 = vmatpush1.msra.mxu0 0.0
  %2469 = vmatprep.subr.mxu0 0.0
  %2470 = vmatpush1.msra.mxu0 0.0
  %2471 = vmatprep.subr.mxu0 0.0
  %2472 = vmatpush1.msra.mxu0 0.0
  %2473 = vmatprep.subr.mxu0 0.0
  %2474 = vmatpush1.msra.mxu0 0.0
  %2475 = vmatprep.subr.mxu0 0.0
  %2476 = vmatpush1.msra.mxu0 0.0
  %2477 = vmatprep.subr.mxu0 0.0
  %2478 = vmatpush1.msra.mxu0 0.0
  %2479 = vmatprep.subr.mxu0 0.0
  %2480 = vmatpush1.msra.mxu0 0.0
  %2481 = vmatprep.subr.mxu0 %v2225
  %2482 = vmatpush1.msra.mxu0 %v2224
  %2483 = vmatprep.subr.mxu0 %v2209
  %2484 = vmatpush1.msra.mxu0 %v2208
  %2485 = vmatprep.subr.mxu0 %v2193
  %2486 = vmatpush1.msra.mxu0 %v2192
  %2487 = vmatprep.subr.mxu0 %v2177
  %2488 = vmatpush1.msra.mxu0 %v2176
  %2489 = vmatprep.subr.mxu0 %v2161
  %2490 = vmatpush1.msra.mxu0 %v2160
  %2491 = vmatprep.subr.mxu0 %v2145
  %2492 = vmatpush1.msra.mxu0 %v2144
  %2493 = vmatprep.subr.mxu0 %v2129
  %2494 = vmatpush1.msra.mxu0 %v2128
  %2495 = vmatprep.subr.mxu0 %v2113
  %2496 = vmatpush1.msra.mxu0 %v2112
  %2497 = vmatprep.subr.mxu0 0.0
  %2498 = vmatpush2.msra.mxu0 0.0
  %2499 = vmatprep.subr.mxu0 0.0
  %2500 = vmatpush2.msra.mxu0 0.0
  %2501 = vmatprep.subr.mxu0 0.0
  %2502 = vmatpush2.msra.mxu0 0.0
  %2503 = vmatprep.subr.mxu0 0.0
  %2504 = vmatpush2.msra.mxu0 0.0
  %2505 = vmatprep.subr.mxu0 0.0
  %2506 = vmatpush2.msra.mxu0 0.0
  %2507 = vmatprep.subr.mxu0 0.0
  %2508 = vmatpush2.msra.mxu0 0.0
  %2509 = vmatprep.subr.mxu0 0.0
  %2510 = vmatpush2.msra.mxu0 0.0
  %2511 = vmatprep.subr.mxu0 0.0
  %2512 = vmatpush2.msra.mxu0 0.0
  %2513 = vmatprep.subr.mxu0 0.0
  %2514 = vmatpush2.msra.mxu0 0.0
  %2515 = vmatprep.subr.mxu0 0.0
  %2516 = vmatpush2.msra.mxu0 0.0
  %2517 = vmatprep.subr.mxu0 0.0
  %2518 = vmatpush2.msra.mxu0 0.0
  %2519 = vmatprep.subr.mxu0 0.0
  %2520 = vmatpush2.msra.mxu0 0.0
  %2521 = vmatprep.subr.mxu0 0.0
  %2522 = vmatpush2.msra.mxu0 0.0
  %2523 = vmatprep.subr.mxu0 0.0
  %2524 = vmatpush2.msra.mxu0 0.0
  %2525 = vmatprep.subr.mxu0 0.0
  %2526 = vmatpush2.msra.mxu0 0.0
  %2527 = vmatprep.subr.mxu0 0.0
  %2528 = vmatpush2.msra.mxu0 0.0
  %2529 = vmatprep.mubr.f32.mxu0 0.0
  %2530 = vmatmul.mubr.f32.gmra.mxu0 %v2321
  %v2531 = vpop.f32.mrf.mxu0
  %v2532 = vadd.f32 %v2259, %v2531
  %v2533 = vpop.f32.mrf.mxu0
  %v2534 = vadd.f32 %v2263, %v2533
  %2535 = vdwg.mxu0
  %2536 = vmatprep.subr.mxu0 0.0
  %2537 = vmatpush1.msra.mxu0 0.0
  %2538 = vmatprep.subr.mxu0 0.0
  %2539 = vmatpush1.msra.mxu0 0.0
  %2540 = vmatprep.subr.mxu0 0.0
  %2541 = vmatpush1.msra.mxu0 0.0
  %2542 = vmatprep.subr.mxu0 0.0
  %2543 = vmatpush1.msra.mxu0 0.0
  %2544 = vmatprep.subr.mxu0 0.0
  %2545 = vmatpush1.msra.mxu0 0.0
  %2546 = vmatprep.subr.mxu0 0.0
  %2547 = vmatpush1.msra.mxu0 0.0
  %2548 = vmatprep.subr.mxu0 0.0
  %2549 = vmatpush1.msra.mxu0 0.0
  %2550 = vmatprep.subr.mxu0 0.0
  %2551 = vmatpush1.msra.mxu0 0.0
  %2552 = vmatprep.subr.mxu0 %v2227
  %2553 = vmatpush1.msra.mxu0 %v2226
  %2554 = vmatprep.subr.mxu0 %v2211
  %2555 = vmatpush1.msra.mxu0 %v2210
  %2556 = vmatprep.subr.mxu0 %v2195
  %2557 = vmatpush1.msra.mxu0 %v2194
  %2558 = vmatprep.subr.mxu0 %v2179
  %2559 = vmatpush1.msra.mxu0 %v2178
  %2560 = vmatprep.subr.mxu0 %v2163
  %2561 = vmatpush1.msra.mxu0 %v2162
  %2562 = vmatprep.subr.mxu0 %v2147
  %2563 = vmatpush1.msra.mxu0 %v2146
  %2564 = vmatprep.subr.mxu0 %v2131
  %2565 = vmatpush1.msra.mxu0 %v2130
  %2566 = vmatprep.subr.mxu0 %v2115
  %2567 = vmatpush1.msra.mxu0 %v2114
  %2568 = vmatprep.subr.mxu0 0.0
  %2569 = vmatpush2.msra.mxu0 0.0
  %2570 = vmatprep.subr.mxu0 0.0
  %2571 = vmatpush2.msra.mxu0 0.0
  %2572 = vmatprep.subr.mxu0 0.0
  %2573 = vmatpush2.msra.mxu0 0.0
  %2574 = vmatprep.subr.mxu0 0.0
  %2575 = vmatpush2.msra.mxu0 0.0
  %2576 = vmatprep.subr.mxu0 0.0
  %2577 = vmatpush2.msra.mxu0 0.0
  %2578 = vmatprep.subr.mxu0 0.0
  %2579 = vmatpush2.msra.mxu0 0.0
  %2580 = vmatprep.subr.mxu0 0.0
  %2581 = vmatpush2.msra.mxu0 0.0
  %2582 = vmatprep.subr.mxu0 0.0
  %2583 = vmatpush2.msra.mxu0 0.0
  %2584 = vmatprep.subr.mxu0 0.0
  %2585 = vmatpush2.msra.mxu0 0.0
  %2586 = vmatprep.subr.mxu0 0.0
  %2587 = vmatpush2.msra.mxu0 0.0
  %2588 = vmatprep.subr.mxu0 0.0
  %2589 = vmatpush2.msra.mxu0 0.0
  %2590 = vmatprep.subr.mxu0 0.0
  %2591 = vmatpush2.msra.mxu0 0.0
  %2592 = vmatprep.subr.mxu0 0.0
  %2593 = vmatpush2.msra.mxu0 0.0
  %2594 = vmatprep.subr.mxu0 0.0
  %2595 = vmatpush2.msra.mxu0 0.0
  %2596 = vmatprep.subr.mxu0 0.0
  %2597 = vmatpush2.msra.mxu0 0.0
  %2598 = vmatprep.subr.mxu0 0.0
  %2599 = vmatpush2.msra.mxu0 0.0
  %2600 = vmatprep.mubr.f32.mxu0 0.0
  %2601 = vmatmul.mubr.f32.gmra.mxu0 %v2321
  %v2602 = vpop.f32.mrf.mxu0
  %v2603 = vadd.f32 %v2267, %v2602
  %v2604 = vpop.f32.mrf.mxu0
  %v2605 = vadd.f32 %v2271, %v2604
  %2606 = vdwg.mxu0
  %2607 = vmatprep.subr.mxu0 0.0
  %2608 = vmatpush1.msra.mxu0 0.0
  %2609 = vmatprep.subr.mxu0 0.0
  %2610 = vmatpush1.msra.mxu0 0.0
  %2611 = vmatprep.subr.mxu0 0.0
  %2612 = vmatpush1.msra.mxu0 0.0
  %2613 = vmatprep.subr.mxu0 0.0
  %2614 = vmatpush1.msra.mxu0 0.0
  %2615 = vmatprep.subr.mxu0 0.0
  %2616 = vmatpush1.msra.mxu0 0.0
  %2617 = vmatprep.subr.mxu0 0.0
  %2618 = vmatpush1.msra.mxu0 0.0
  %2619 = vmatprep.subr.mxu0 0.0
  %2620 = vmatpush1.msra.mxu0 0.0
  %2621 = vmatprep.subr.mxu0 0.0
  %2622 = vmatpush1.msra.mxu0 0.0
  %2623 = vmatprep.subr.mxu0 %v2229
  %2624 = vmatpush1.msra.mxu0 %v2228
  %2625 = vmatprep.subr.mxu0 %v2213
  %2626 = vmatpush1.msra.mxu0 %v2212
  %2627 = vmatprep.subr.mxu0 %v2197
  %2628 = vmatpush1.msra.mxu0 %v2196
  %2629 = vmatprep.subr.mxu0 %v2181
  %2630 = vmatpush1.msra.mxu0 %v2180
  %2631 = vmatprep.subr.mxu0 %v2165
  %2632 = vmatpush1.msra.mxu0 %v2164
  %2633 = vmatprep.subr.mxu0 %v2149
  %2634 = vmatpush1.msra.mxu0 %v2148
  %2635 = vmatprep.subr.mxu0 %v2133
  %2636 = vmatpush1.msra.mxu0 %v2132
  %2637 = vmatprep.subr.mxu0 %v2117
  %2638 = vmatpush1.msra.mxu0 %v2116
  %2639 = vmatprep.subr.mxu0 0.0
  %2640 = vmatpush2.msra.mxu0 0.0
  %2641 = vmatprep.subr.mxu0 0.0
  %2642 = vmatpush2.msra.mxu0 0.0
  %2643 = vmatprep.subr.mxu0 0.0
  %2644 = vmatpush2.msra.mxu0 0.0
  %2645 = vmatprep.subr.mxu0 0.0
  %2646 = vmatpush2.msra.mxu0 0.0
  %2647 = vmatprep.subr.mxu0 0.0
  %2648 = vmatpush2.msra.mxu0 0.0
  %2649 = vmatprep.subr.mxu0 0.0
  %2650 = vmatpush2.msra.mxu0 0.0
  %2651 = vmatprep.subr.mxu0 0.0
  %2652 = vmatpush2.msra.mxu0 0.0
  %2653 = vmatprep.subr.mxu0 0.0
  %2654 = vmatpush2.msra.mxu0 0.0
  %2655 = vmatprep.subr.mxu0 0.0
  %2656 = vmatpush2.msra.mxu0 0.0
  %2657 = vmatprep.subr.mxu0 0.0
  %2658 = vmatpush2.msra.mxu0 0.0
  %2659 = vmatprep.subr.mxu0 0.0
  %2660 = vmatpush2.msra.mxu0 0.0
  %2661 = vmatprep.subr.mxu0 0.0
  %2662 = vmatpush2.msra.mxu0 0.0
  %2663 = vmatprep.subr.mxu0 0.0
  %2664 = vmatpush2.msra.mxu0 0.0
  %2665 = vmatprep.subr.mxu0 0.0
  %2666 = vmatpush2.msra.mxu0 0.0
  %2667 = vmatprep.subr.mxu0 0.0
  %2668 = vmatpush2.msra.mxu0 0.0
  %2669 = vmatprep.subr.mxu0 0.0
  %2670 = vmatpush2.msra.mxu0 0.0
  %2671 = vmatprep.mubr.f32.mxu0 0.0
  %2672 = vmatmul.mubr.f32.gmra.mxu0 %v2321
  %v2673 = vpop.f32.mrf.mxu0
  %v2674 = vadd.f32 %v2275, %v2673
  %v2675 = vpop.f32.mrf.mxu0
  %v2676 = vadd.f32 %v2279, %v2675
  %2677 = vdwg.mxu0
  %2678 = vmatprep.subr.mxu0 0.0
  %2679 = vmatpush1.msra.mxu0 0.0
  %2680 = vmatprep.subr.mxu0 0.0
  %2681 = vmatpush1.msra.mxu0 0.0
  %2682 = vmatprep.subr.mxu0 0.0
  %2683 = vmatpush1.msra.mxu0 0.0
  %2684 = vmatprep.subr.mxu0 0.0
  %2685 = vmatpush1.msra.mxu0 0.0
  %2686 = vmatprep.subr.mxu0 0.0
  %2687 = vmatpush1.msra.mxu0 0.0
  %2688 = vmatprep.subr.mxu0 0.0
  %2689 = vmatpush1.msra.mxu0 0.0
  %2690 = vmatprep.subr.mxu0 0.0
  %2691 = vmatpush1.msra.mxu0 0.0
  %2692 = vmatprep.subr.mxu0 0.0
  %2693 = vmatpush1.msra.mxu0 0.0
  %2694 = vmatprep.subr.mxu0 %v2231
  %2695 = vmatpush1.msra.mxu0 %v2230
  %2696 = vmatprep.subr.mxu0 %v2215
  %2697 = vmatpush1.msra.mxu0 %v2214
  %2698 = vmatprep.subr.mxu0 %v2199
  %2699 = vmatpush1.msra.mxu0 %v2198
  %2700 = vmatprep.subr.mxu0 %v2183
  %2701 = vmatpush1.msra.mxu0 %v2182
  %2702 = vmatprep.subr.mxu0 %v2167
  %2703 = vmatpush1.msra.mxu0 %v2166
  %2704 = vmatprep.subr.mxu0 %v2151
  %2705 = vmatpush1.msra.mxu0 %v2150
  %2706 = vmatprep.subr.mxu0 %v2135
  %2707 = vmatpush1.msra.mxu0 %v2134
  %2708 = vmatprep.subr.mxu0 %v2119
  %2709 = vmatpush1.msra.mxu0 %v2118
  %2710 = vmatprep.subr.mxu0 0.0
  %2711 = vmatpush2.msra.mxu0 0.0
  %2712 = vmatprep.subr.mxu0 0.0
  %2713 = vmatpush2.msra.mxu0 0.0
  %2714 = vmatprep.subr.mxu0 0.0
  %2715 = vmatpush2.msra.mxu0 0.0
  %2716 = vmatprep.subr.mxu0 0.0
  %2717 = vmatpush2.msra.mxu0 0.0
  %2718 = vmatprep.subr.mxu0 0.0
  %2719 = vmatpush2.msra.mxu0 0.0
  %2720 = vmatprep.subr.mxu0 0.0
  %2721 = vmatpush2.msra.mxu0 0.0
  %2722 = vmatprep.subr.mxu0 0.0
  %2723 = vmatpush2.msra.mxu0 0.0
  %2724 = vmatprep.subr.mxu0 0.0
  %2725 = vmatpush2.msra.mxu0 0.0
  %2726 = vmatprep.subr.mxu0 0.0
  %2727 = vmatpush2.msra.mxu0 0.0
  %2728 = vmatprep.subr.mxu0 0.0
  %2729 = vmatpush2.msra.mxu0 0.0
  %2730 = vmatprep.subr.mxu0 0.0
  %2731 = vmatpush2.msra.mxu0 0.0
  %2732 = vmatprep.subr.mxu0 0.0
  %2733 = vmatpush2.msra.mxu0 0.0
  %2734 = vmatprep.subr.mxu0 0.0
  %2735 = vmatpush2.msra.mxu0 0.0
  %2736 = vmatprep.subr.mxu0 0.0
  %2737 = vmatpush2.msra.mxu0 0.0
  %2738 = vmatprep.subr.mxu0 0.0
  %2739 = vmatpush2.msra.mxu0 0.0
  %2740 = vmatprep.subr.mxu0 0.0
  %2741 = vmatpush2.msra.mxu0 0.0
  %2742 = vmatprep.mubr.f32.mxu0 0.0
  %2743 = vmatmul.mubr.f32.gmra.mxu0 %v2321
  %v2744 = vpop.f32.mrf.mxu0
  %v2745 = vadd.f32 %v2283, %v2744
  %v2746 = vpop.f32.mrf.mxu0
  %v2747 = vadd.f32 %v2287, %v2746
  %2748 = vdwg.mxu0
  %2749 = vmatprep.subr.mxu0 0.0
  %2750 = vmatpush1.msra.mxu0 0.0
  %2751 = vmatprep.subr.mxu0 0.0
  %2752 = vmatpush1.msra.mxu0 0.0
  %2753 = vmatprep.subr.mxu0 0.0
  %2754 = vmatpush1.msra.mxu0 0.0
  %2755 = vmatprep.subr.mxu0 0.0
  %2756 = vmatpush1.msra.mxu0 0.0
  %2757 = vmatprep.subr.mxu0 0.0
  %2758 = vmatpush1.msra.mxu0 0.0
  %2759 = vmatprep.subr.mxu0 0.0
  %2760 = vmatpush1.msra.mxu0 0.0
  %2761 = vmatprep.subr.mxu0 0.0
  %2762 = vmatpush1.msra.mxu0 0.0
  %2763 = vmatprep.subr.mxu0 0.0
  %2764 = vmatpush1.msra.mxu0 0.0
  %2765 = vmatprep.subr.mxu0 %v2233
  %2766 = vmatpush1.msra.mxu0 %v2232
  %2767 = vmatprep.subr.mxu0 %v2217
  %2768 = vmatpush1.msra.mxu0 %v2216
  %2769 = vmatprep.subr.mxu0 %v2201
  %2770 = vmatpush1.msra.mxu0 %v2200
  %2771 = vmatprep.subr.mxu0 %v2185
  %2772 = vmatpush1.msra.mxu0 %v2184
  %2773 = vmatprep.subr.mxu0 %v2169
  %2774 = vmatpush1.msra.mxu0 %v2168
  %2775 = vmatprep.subr.mxu0 %v2153
  %2776 = vmatpush1.msra.mxu0 %v2152
  %2777 = vmatprep.subr.mxu0 %v2137
  %2778 = vmatpush1.msra.mxu0 %v2136
  %2779 = vmatprep.subr.mxu0 %v2121
  %2780 = vmatpush1.msra.mxu0 %v2120
  %2781 = vmatprep.subr.mxu0 0.0
  %2782 = vmatpush2.msra.mxu0 0.0
  %2783 = vmatprep.subr.mxu0 0.0
  %2784 = vmatpush2.msra.mxu0 0.0
  %2785 = vmatprep.subr.mxu0 0.0
  %2786 = vmatpush2.msra.mxu0 0.0
  %2787 = vmatprep.subr.mxu0 0.0
  %2788 = vmatpush2.msra.mxu0 0.0
  %2789 = vmatprep.subr.mxu0 0.0
  %2790 = vmatpush2.msra.mxu0 0.0
  %2791 = vmatprep.subr.mxu0 0.0
  %2792 = vmatpush2.msra.mxu0 0.0
  %2793 = vmatprep.subr.mxu0 0.0
  %2794 = vmatpush2.msra.mxu0 0.0
  %2795 = vmatprep.subr.mxu0 0.0
  %2796 = vmatpush2.msra.mxu0 0.0
  %2797 = vmatprep.subr.mxu0 0.0
  %2798 = vmatpush2.msra.mxu0 0.0
  %2799 = vmatprep.subr.mxu0 0.0
  %2800 = vmatpush2.msra.mxu0 0.0
  %2801 = vmatprep.subr.mxu0 0.0
  %2802 = vmatpush2.msra.mxu0 0.0
  %2803 = vmatprep.subr.mxu0 0.0
  %2804 = vmatpush2.msra.mxu0 0.0
  %2805 = vmatprep.subr.mxu0 0.0
  %2806 = vmatpush2.msra.mxu0 0.0
  %2807 = vmatprep.subr.mxu0 0.0
  %2808 = vmatpush2.msra.mxu0 0.0
  %2809 = vmatprep.subr.mxu0 0.0
  %2810 = vmatpush2.msra.mxu0 0.0
  %2811 = vmatprep.subr.mxu0 0.0
  %2812 = vmatpush2.msra.mxu0 0.0
  %2813 = vmatprep.mubr.f32.mxu0 0.0
  %2814 = vmatmul.mubr.f32.gmra.mxu0 %v2321
  %v2815 = vpop.f32.mrf.mxu0
  %v2816 = vadd.f32 %v2291, %v2815
  %v2817 = vpop.f32.mrf.mxu0
  %v2818 = vadd.f32 %v2295, %v2817
  %2819 = vdwg.mxu0
  %2820 = vmatprep.subr.mxu0 0.0
  %2821 = vmatpush1.msra.mxu0 0.0
  %2822 = vmatprep.subr.mxu0 0.0
  %2823 = vmatpush1.msra.mxu0 0.0
  %2824 = vmatprep.subr.mxu0 0.0
  %2825 = vmatpush1.msra.mxu0 0.0
  %2826 = vmatprep.subr.mxu0 0.0
  %2827 = vmatpush1.msra.mxu0 0.0
  %2828 = vmatprep.subr.mxu0 0.0
  %2829 = vmatpush1.msra.mxu0 0.0
  %2830 = vmatprep.subr.mxu0 0.0
  %2831 = vmatpush1.msra.mxu0 0.0
  %2832 = vmatprep.subr.mxu0 0.0
  %2833 = vmatpush1.msra.mxu0 0.0
  %2834 = vmatprep.subr.mxu0 0.0
  %2835 = vmatpush1.msra.mxu0 0.0
  %2836 = vmatprep.subr.mxu0 %v2235
  %2837 = vmatpush1.msra.mxu0 %v2234
  %2838 = vmatprep.subr.mxu0 %v2219
  %2839 = vmatpush1.msra.mxu0 %v2218
  %2840 = vmatprep.subr.mxu0 %v2203
  %2841 = vmatpush1.msra.mxu0 %v2202
  %2842 = vmatprep.subr.mxu0 %v2187
  %2843 = vmatpush1.msra.mxu0 %v2186
  %2844 = vmatprep.subr.mxu0 %v2171
  %2845 = vmatpush1.msra.mxu0 %v2170
  %2846 = vmatprep.subr.mxu0 %v2155
  %2847 = vmatpush1.msra.mxu0 %v2154
  %2848 = vmatprep.subr.mxu0 %v2139
  %2849 = vmatpush1.msra.mxu0 %v2138
  %2850 = vmatprep.subr.mxu0 %v2123
  %2851 = vmatpush1.msra.mxu0 %v2122
  %2852 = vmatprep.subr.mxu0 0.0
  %2853 = vmatpush2.msra.mxu0 0.0
  %2854 = vmatprep.subr.mxu0 0.0
  %2855 = vmatpush2.msra.mxu0 0.0
  %2856 = vmatprep.subr.mxu0 0.0
  %2857 = vmatpush2.msra.mxu0 0.0
  %2858 = vmatprep.subr.mxu0 0.0
  %2859 = vmatpush2.msra.mxu0 0.0
  %2860 = vmatprep.subr.mxu0 0.0
  %2861 = vmatpush2.msra.mxu0 0.0
  %2862 = vmatprep.subr.mxu0 0.0
  %2863 = vmatpush2.msra.mxu0 0.0
  %2864 = vmatprep.subr.mxu0 0.0
  %2865 = vmatpush2.msra.mxu0 0.0
  %2866 = vmatprep.subr.mxu0 0.0
  %2867 = vmatpush2.msra.mxu0 0.0
  %2868 = vmatprep.subr.mxu0 0.0
  %2869 = vmatpush2.msra.mxu0 0.0
  %2870 = vmatprep.subr.mxu0 0.0
  %2871 = vmatpush2.msra.mxu0 0.0
  %2872 = vmatprep.subr.mxu0 0.0
  %2873 = vmatpush2.msra.mxu0 0.0
  %2874 = vmatprep.subr.mxu0 0.0
  %2875 = vmatpush2.msra.mxu0 0.0
  %2876 = vmatprep.subr.mxu0 0.0
  %2877 = vmatpush2.msra.mxu0 0.0
  %2878 = vmatprep.subr.mxu0 0.0
  %2879 = vmatpush2.msra.mxu0 0.0
  %2880 = vmatprep.subr.mxu0 0.0
  %2881 = vmatpush2.msra.mxu0 0.0
  %2882 = vmatprep.subr.mxu0 0.0
  %2883 = vmatpush2.msra.mxu0 0.0
  %2884 = vmatprep.mubr.f32.mxu0 0.0
  %2885 = vmatmul.mubr.f32.gmra.mxu0 %v2321
  %v2886 = vpop.f32.mrf.mxu0
  %v2887 = vadd.f32 %v2299, %v2886
  %v2888 = vpop.f32.mrf.mxu0
  %v2889 = vadd.f32 %v2303, %v2888
  %2890 = vdwg.mxu0
  %v2891 = vmax.f32 %v2390, 0.0
  %v2892 = vmax.f32 %v2392, 0.0
  %v2893 = vmax.f32 %v2461, 0.0
  %v2894 = vmax.f32 %v2463, 0.0
  %v2895 = vmax.f32 %v2532, 0.0
  %v2896 = vmax.f32 %v2534, 0.0
  %v2897 = vmax.f32 %v2603, 0.0
  %v2898 = vmax.f32 %v2605, 0.0
  %v2899 = vmax.f32 %v2674, 0.0
  %v2900 = vmax.f32 %v2676, 0.0
  %v2901 = vmax.f32 %v2745, 0.0
  %v2902 = vmax.f32 %v2747, 0.0
  %v2903 = vmax.f32 %v2816, 0.0
  %v2904 = vmax.f32 %v2818, 0.0
  %v2905 = vmax.f32 %v2887, 0.0
  %v2906 = vmax.f32 %v2889, 0.0
  %v2907 = vld [vmem:[%s39] sm:$0xff]
  %v2908 = vld [vmem:[%s39 + $0x8] sm:$0xff]
  %v2909 = vld [vmem:[%s39 + $0x10] sm:$0xff]
  %v2910 = vld [vmem:[%s39 + $0x18] sm:$0xff]
  %v2911 = vld [vmem:[%s39 + $0x20] sm:$0xff]
  %v2912 = vld [vmem:[%s39 + $0x28] sm:$0xff]
  %v2913 = vld [vmem:[%s39 + $0x30] sm:$0xff]
  %v2914 = vld [vmem:[%s39 + $0x38] sm:$0xff]
  %v2915 = vld [vmem:[%s39 + $0x40] sm:$0xff]
  %v2916 = vld [vmem:[%s39 + $0x48] sm:$0xff]
  %v2917 = vld [vmem:[%s39 + $0x50] sm:$0xff]
  %v2918 = vld [vmem:[%s39 + $0x58] sm:$0xff]
  %v2919 = vld [vmem:[%s39 + $0x60] sm:$0xff]
  %v2920 = vld [vmem:[%s39 + $0x68] sm:$0xff]
  %v2921 = vld [vmem:[%s39 + $0x70] sm:$0xff]
  %v2922 = vld [vmem:[%s39 + $0x78] sm:$0xff]
  %v2923 = vld [vmem:[%s39 + $0x80] sm:$0xff]
  %v2924 = vld [vmem:[%s39 + $0x88] sm:$0xff]
  %v2925 = vld [vmem:[%s39 + $0x90] sm:$0xff]
  %v2926 = vld [vmem:[%s39 + $0x98] sm:$0xff]
  %v2927 = vld [vmem:[%s39 + $0xa0] sm:$0xff]
  %v2928 = vld [vmem:[%s39 + $0xa8] sm:$0xff]
  %v2929 = vld [vmem:[%s39 + $0xb0] sm:$0xff]
  %v2930 = vld [vmem:[%s39 + $0xb8] sm:$0xff]
  %v2931 = vld [vmem:[%s39 + $0xc0] sm:$0xff]
  %v2932 = vld [vmem:[%s39 + $0xc8] sm:$0xff]
  %v2933 = vld [vmem:[%s39 + $0xd0] sm:$0xff]
  %v2934 = vld [vmem:[%s39 + $0xd8] sm:$0xff]
  %v2935 = vld [vmem:[%s39 + $0xe0] sm:$0xff]
  %v2936 = vld [vmem:[%s39 + $0xe8] sm:$0xff]
  %v2937 = vld [vmem:[%s39 + $0xf0] sm:$0xff]
  %v2938 = vld [vmem:[%s39 + $0xf8] sm:$0xff]
  %v2939 = vld [vmem:[%s39 + $0x100] sm:$0xff]
  %v2940 = vld [vmem:[%s39 + $0x108] sm:$0xff]
  %v2941 = vld [vmem:[%s39 + $0x110] sm:$0xff]
  %v2942 = vld [vmem:[%s39 + $0x118] sm:$0xff]
  %v2943 = vld [vmem:[%s39 + $0x120] sm:$0xff]
  %v2944 = vld [vmem:[%s39 + $0x128] sm:$0xff]
  %v2945 = vld [vmem:[%s39 + $0x130] sm:$0xff]
  %v2946 = vld [vmem:[%s39 + $0x138] sm:$0xff]
  %v2947 = vld [vmem:[%s39 + $0x140] sm:$0xff]
  %v2948 = vld [vmem:[%s39 + $0x148] sm:$0xff]
  %v2949 = vld [vmem:[%s39 + $0x150] sm:$0xff]
  %v2950 = vld [vmem:[%s39 + $0x158] sm:$0xff]
  %v2951 = vld [vmem:[%s39 + $0x160] sm:$0xff]
  %v2952 = vld [vmem:[%s39 + $0x168] sm:$0xff]
  %v2953 = vld [vmem:[%s39 + $0x170] sm:$0xff]
  %v2954 = vld [vmem:[%s39 + $0x178] sm:$0xff]
  %v2955 = vld [vmem:[%s39 + $0x180] sm:$0xff]
  %v2956 = vld [vmem:[%s39 + $0x188] sm:$0xff]
  %v2957 = vld [vmem:[%s39 + $0x190] sm:$0xff]
  %v2958 = vld [vmem:[%s39 + $0x198] sm:$0xff]
  %v2959 = vld [vmem:[%s39 + $0x1a0] sm:$0xff]
  %v2960 = vld [vmem:[%s39 + $0x1a8] sm:$0xff]
  %v2961 = vld [vmem:[%s39 + $0x1b0] sm:$0xff]
  %v2962 = vld [vmem:[%s39 + $0x1b8] sm:$0xff]
  %v2963 = vld [vmem:[%s39 + $0x1c0] sm:$0xff]
  %v2964 = vld [vmem:[%s39 + $0x1c8] sm:$0xff]
  %v2965 = vld [vmem:[%s39 + $0x1d0] sm:$0xff]
  %v2966 = vld [vmem:[%s39 + $0x1d8] sm:$0xff]
  %v2967 = vld [vmem:[%s39 + $0x1e0] sm:$0xff]
  %v2968 = vld [vmem:[%s39 + $0x1e8] sm:$0xff]
  %v2969 = vld [vmem:[%s39 + $0x1f0] sm:$0xff]
  %v2970 = vld [vmem:[%s39 + $0x1f8] sm:$0xff]
  %v2971 = vld [vmem:[%s39 + $0x200] sm:$0xff]
  %v2972 = vld [vmem:[%s39 + $0x208] sm:$0xff]
  %v2973 = vld [vmem:[%s39 + $0x210] sm:$0xff]
  %v2974 = vld [vmem:[%s39 + $0x218] sm:$0xff]
  %v2975 = vld [vmem:[%s39 + $0x220] sm:$0xff]
  %v2976 = vld [vmem:[%s39 + $0x228] sm:$0xff]
  %v2977 = vld [vmem:[%s39 + $0x230] sm:$0xff]
  %v2978 = vld [vmem:[%s39 + $0x238] sm:$0xff]
  %v2979 = vld [vmem:[%s39 + $0x240] sm:$0xff]
  %v2980 = vld [vmem:[%s39 + $0x248] sm:$0xff]
  %v2981 = vld [vmem:[%s39 + $0x250] sm:$0xff]
  %v2982 = vld [vmem:[%s39 + $0x258] sm:$0xff]
  %v2983 = vld [vmem:[%s39 + $0x260] sm:$0xff]
  %v2984 = vld [vmem:[%s39 + $0x268] sm:$0xff]
  %v2985 = vld [vmem:[%s39 + $0x270] sm:$0xff]
  %v2986 = vld [vmem:[%s39 + $0x278] sm:$0xff]
  %v2987 = vld [vmem:[%s39 + $0x280] sm:$0xff]
  %v2988 = vld [vmem:[%s39 + $0x288] sm:$0xff]
  %v2989 = vld [vmem:[%s39 + $0x290] sm:$0xff]
  %v2990 = vld [vmem:[%s39 + $0x298] sm:$0xff]
  %v2991 = vld [vmem:[%s39 + $0x2a0] sm:$0xff]
  %v2992 = vld [vmem:[%s39 + $0x2a8] sm:$0xff]
  %v2993 = vld [vmem:[%s39 + $0x2b0] sm:$0xff]
  %v2994 = vld [vmem:[%s39 + $0x2b8] sm:$0xff]
  %v2995 = vld [vmem:[%s39 + $0x2c0] sm:$0xff]
  %v2996 = vld [vmem:[%s39 + $0x2c8] sm:$0xff]
  %v2997 = vld [vmem:[%s39 + $0x2d0] sm:$0xff]
  %v2998 = vld [vmem:[%s39 + $0x2d8] sm:$0xff]
  %v2999 = vld [vmem:[%s39 + $0x2e0] sm:$0xff]
  %v3000 = vld [vmem:[%s39 + $0x2e8] sm:$0xff]
  %v3001 = vld [vmem:[%s39 + $0x2f0] sm:$0xff]
  %v3002 = vld [vmem:[%s39 + $0x2f8] sm:$0xff]
  %v3003 = vld [vmem:[%s39 + $0x300] sm:$0xff]
  %v3004 = vld [vmem:[%s39 + $0x308] sm:$0xff]
  %v3005 = vld [vmem:[%s39 + $0x310] sm:$0xff]
  %v3006 = vld [vmem:[%s39 + $0x318] sm:$0xff]
  %v3007 = vld [vmem:[%s39 + $0x320] sm:$0xff]
  %v3008 = vld [vmem:[%s39 + $0x328] sm:$0xff]
  %v3009 = vld [vmem:[%s39 + $0x330] sm:$0xff]
  %v3010 = vld [vmem:[%s39 + $0x338] sm:$0xff]
  %v3011 = vld [vmem:[%s39 + $0x340] sm:$0xff]
  %v3012 = vld [vmem:[%s39 + $0x348] sm:$0xff]
  %v3013 = vld [vmem:[%s39 + $0x350] sm:$0xff]
  %v3014 = vld [vmem:[%s39 + $0x358] sm:$0xff]
  %v3015 = vld [vmem:[%s39 + $0x360] sm:$0xff]
  %v3016 = vld [vmem:[%s39 + $0x368] sm:$0xff]
  %v3017 = vld [vmem:[%s39 + $0x370] sm:$0xff]
  %v3018 = vld [vmem:[%s39 + $0x378] sm:$0xff]
  %v3019 = vld [vmem:[%s39 + $0x380] sm:$0xff]
  %v3020 = vld [vmem:[%s39 + $0x388] sm:$0xff]
  %v3021 = vld [vmem:[%s39 + $0x390] sm:$0xff]
  %v3022 = vld [vmem:[%s39 + $0x398] sm:$0xff]
  %v3023 = vld [vmem:[%s39 + $0x3a0] sm:$0xff]
  %v3024 = vld [vmem:[%s39 + $0x3a8] sm:$0xff]
  %v3025 = vld [vmem:[%s39 + $0x3b0] sm:$0xff]
  %v3026 = vld [vmem:[%s39 + $0x3b8] sm:$0xff]
  %v3027 = vld [vmem:[%s39 + $0x3c0] sm:$0xff]
  %v3028 = vld [vmem:[%s39 + $0x3c8] sm:$0xff]
  %v3029 = vld [vmem:[%s39 + $0x3d0] sm:$0xff]
  %v3030 = vld [vmem:[%s39 + $0x3d8] sm:$0xff]
  %v3031 = vld [vmem:[%s39 + $0x3e0] sm:$0xff]
  %v3032 = vld [vmem:[%s39 + $0x3e8] sm:$0xff]
  %v3033 = vld [vmem:[%s39 + $0x3f0] sm:$0xff]
  %v3034 = vld [vmem:[%s39 + $0x3f8] sm:$0xff]
  %v3035 = vld [vmem:[%s39 + $0x400] sm:$0xff]
  %v3036 = vld [vmem:[%s39 + $0x408] sm:$0xff]
  %v3037 = vld [vmem:[%s39 + $0x410] sm:$0xff]
  %v3038 = vld [vmem:[%s39 + $0x418] sm:$0xff]
  %v3039 = vld [vmem:[%s39 + $0x420] sm:$0xff]
  %v3040 = vld [vmem:[%s39 + $0x428] sm:$0xff]
  %v3041 = vld [vmem:[%s39 + $0x430] sm:$0xff]
  %v3042 = vld [vmem:[%s39 + $0x438] sm:$0xff]
  %v3043 = vld [vmem:[%s39 + $0x440] sm:$0xff]
  %v3044 = vld [vmem:[%s39 + $0x448] sm:$0xff]
  %v3045 = vld [vmem:[%s39 + $0x450] sm:$0xff]
  %v3046 = vld [vmem:[%s39 + $0x458] sm:$0xff]
  %v3047 = vld [vmem:[%s39 + $0x460] sm:$0xff]
  %v3048 = vld [vmem:[%s39 + $0x468] sm:$0xff]
  %v3049 = vld [vmem:[%s39 + $0x470] sm:$0xff]
  %v3050 = vld [vmem:[%s39 + $0x478] sm:$0xff]
  %v3051 = vld [vmem:[%s39 + $0x480] sm:$0xff]
  %v3052 = vld [vmem:[%s39 + $0x488] sm:$0xff]
  %v3053 = vld [vmem:[%s39 + $0x490] sm:$0xff]
  %v3054 = vld [vmem:[%s39 + $0x498] sm:$0xff]
  %v3055 = vld [vmem:[%s39 + $0x4a0] sm:$0xff]
  %v3056 = vld [vmem:[%s39 + $0x4a8] sm:$0xff]
  %v3057 = vld [vmem:[%s39 + $0x4b0] sm:$0xff]
  %v3058 = vld [vmem:[%s39 + $0x4b8] sm:$0xff]
  %v3059 = vld [vmem:[%s39 + $0x4c0] sm:$0xff]
  %v3060 = vld [vmem:[%s39 + $0x4c8] sm:$0xff]
  %v3061 = vld [vmem:[%s39 + $0x4d0] sm:$0xff]
  %v3062 = vld [vmem:[%s39 + $0x4d8] sm:$0xff]
  %v3063 = vld [vmem:[%s39 + $0x4e0] sm:$0xff]
  %v3064 = vld [vmem:[%s39 + $0x4e8] sm:$0xff]
  %v3065 = vld [vmem:[%s39 + $0x4f0] sm:$0xff]
  %v3066 = vld [vmem:[%s39 + $0x4f8] sm:$0xff]
  %v3067 = vld [vmem:[%s39 + $0x500] sm:$0xff]
  %v3068 = vld [vmem:[%s39 + $0x508] sm:$0xff]
  %v3069 = vld [vmem:[%s39 + $0x510] sm:$0xff]
  %v3070 = vld [vmem:[%s39 + $0x518] sm:$0xff]
  %v3071 = vld [vmem:[%s39 + $0x520] sm:$0xff]
  %v3072 = vld [vmem:[%s39 + $0x528] sm:$0xff]
  %v3073 = vld [vmem:[%s39 + $0x530] sm:$0xff]
  %v3074 = vld [vmem:[%s39 + $0x538] sm:$0xff]
  %v3075 = vld [vmem:[%s39 + $0x540] sm:$0xff]
  %v3076 = vld [vmem:[%s39 + $0x548] sm:$0xff]
  %v3077 = vld [vmem:[%s39 + $0x550] sm:$0xff]
  %v3078 = vld [vmem:[%s39 + $0x558] sm:$0xff]
  %v3079 = vld [vmem:[%s39 + $0x560] sm:$0xff]
  %v3080 = vld [vmem:[%s39 + $0x568] sm:$0xff]
  %v3081 = vld [vmem:[%s39 + $0x570] sm:$0xff]
  %v3082 = vld [vmem:[%s39 + $0x578] sm:$0xff]
  %v3083 = vld [vmem:[%s39 + $0x580] sm:$0xff]
  %v3084 = vld [vmem:[%s39 + $0x588] sm:$0xff]
  %v3085 = vld [vmem:[%s39 + $0x590] sm:$0xff]
  %v3086 = vld [vmem:[%s39 + $0x598] sm:$0xff]
  %v3087 = vld [vmem:[%s39 + $0x5a0] sm:$0xff]
  %v3088 = vld [vmem:[%s39 + $0x5a8] sm:$0xff]
  %v3089 = vld [vmem:[%s39 + $0x5b0] sm:$0xff]
  %v3090 = vld [vmem:[%s39 + $0x5b8] sm:$0xff]
  %v3091 = vld [vmem:[%s39 + $0x5c0] sm:$0xff]
  %v3092 = vld [vmem:[%s39 + $0x5c8] sm:$0xff]
  %v3093 = vld [vmem:[%s39 + $0x5d0] sm:$0xff]
  %v3094 = vld [vmem:[%s39 + $0x5d8] sm:$0xff]
  %v3095 = vld [vmem:[%s39 + $0x5e0] sm:$0xff]
  %v3096 = vld [vmem:[%s39 + $0x5e8] sm:$0xff]
  %v3097 = vld [vmem:[%s39 + $0x5f0] sm:$0xff]
  %v3098 = vld [vmem:[%s39 + $0x5f8] sm:$0xff]
  %v3099 = vld [vmem:[%s39 + $0x600] sm:$0xff]
  %v3100 = vld [vmem:[%s39 + $0x608] sm:$0xff]
  %v3101 = vld [vmem:[%s39 + $0x610] sm:$0xff]
  %v3102 = vld [vmem:[%s39 + $0x618] sm:$0xff]
  %v3103 = vld [vmem:[%s39 + $0x620] sm:$0xff]
  %v3104 = vld [vmem:[%s39 + $0x628] sm:$0xff]
  %v3105 = vld [vmem:[%s39 + $0x630] sm:$0xff]
  %v3106 = vld [vmem:[%s39 + $0x638] sm:$0xff]
  %v3107 = vld [vmem:[%s39 + $0x640] sm:$0xff]
  %v3108 = vld [vmem:[%s39 + $0x648] sm:$0xff]
  %v3109 = vld [vmem:[%s39 + $0x650] sm:$0xff]
  %v3110 = vld [vmem:[%s39 + $0x658] sm:$0xff]
  %v3111 = vld [vmem:[%s39 + $0x660] sm:$0xff]
  %v3112 = vld [vmem:[%s39 + $0x668] sm:$0xff]
  %v3113 = vld [vmem:[%s39 + $0x670] sm:$0xff]
  %v3114 = vld [vmem:[%s39 + $0x678] sm:$0xff]
  %v3115 = vld [vmem:[%s39 + $0x680] sm:$0xff]
  %v3116 = vld [vmem:[%s39 + $0x688] sm:$0xff]
  %v3117 = vld [vmem:[%s39 + $0x690] sm:$0xff]
  %v3118 = vld [vmem:[%s39 + $0x698] sm:$0xff]
  %v3119 = vld [vmem:[%s39 + $0x6a0] sm:$0xff]
  %v3120 = vld [vmem:[%s39 + $0x6a8] sm:$0xff]
  %v3121 = vld [vmem:[%s39 + $0x6b0] sm:$0xff]
  %v3122 = vld [vmem:[%s39 + $0x6b8] sm:$0xff]
  %v3123 = vld [vmem:[%s39 + $0x6c0] sm:$0xff]
  %v3124 = vld [vmem:[%s39 + $0x6c8] sm:$0xff]
  %v3125 = vld [vmem:[%s39 + $0x6d0] sm:$0xff]
  %v3126 = vld [vmem:[%s39 + $0x6d8] sm:$0xff]
  %v3127 = vld [vmem:[%s39 + $0x6e0] sm:$0xff]
  %v3128 = vld [vmem:[%s39 + $0x6e8] sm:$0xff]
  %v3129 = vld [vmem:[%s39 + $0x6f0] sm:$0xff]
  %v3130 = vld [vmem:[%s39 + $0x6f8] sm:$0xff]
  %v3131 = vld [vmem:[%s39 + $0x700] sm:$0xff]
  %v3132 = vld [vmem:[%s39 + $0x708] sm:$0xff]
  %v3133 = vld [vmem:[%s39 + $0x710] sm:$0xff]
  %v3134 = vld [vmem:[%s39 + $0x718] sm:$0xff]
  %v3135 = vld [vmem:[%s39 + $0x720] sm:$0xff]
  %v3136 = vld [vmem:[%s39 + $0x728] sm:$0xff]
  %v3137 = vld [vmem:[%s39 + $0x730] sm:$0xff]
  %v3138 = vld [vmem:[%s39 + $0x738] sm:$0xff]
  %v3139 = vld [vmem:[%s39 + $0x740] sm:$0xff]
  %v3140 = vld [vmem:[%s39 + $0x748] sm:$0xff]
  %v3141 = vld [vmem:[%s39 + $0x750] sm:$0xff]
  %v3142 = vld [vmem:[%s39 + $0x758] sm:$0xff]
  %v3143 = vld [vmem:[%s39 + $0x760] sm:$0xff]
  %v3144 = vld [vmem:[%s39 + $0x768] sm:$0xff]
  %v3145 = vld [vmem:[%s39 + $0x770] sm:$0xff]
  %v3146 = vld [vmem:[%s39 + $0x778] sm:$0xff]
  %v3147 = vld [vmem:[%s39 + $0x780] sm:$0xff]
  %v3148 = vld [vmem:[%s39 + $0x788] sm:$0xff]
  %v3149 = vld [vmem:[%s39 + $0x790] sm:$0xff]
  %v3150 = vld [vmem:[%s39 + $0x798] sm:$0xff]
  %v3151 = vld [vmem:[%s39 + $0x7a0] sm:$0xff]
  %v3152 = vld [vmem:[%s39 + $0x7a8] sm:$0xff]
  %v3153 = vld [vmem:[%s39 + $0x7b0] sm:$0xff]
  %v3154 = vld [vmem:[%s39 + $0x7b8] sm:$0xff]
  %v3155 = vld [vmem:[%s39 + $0x7c0] sm:$0xff]
  %v3156 = vld [vmem:[%s39 + $0x7c8] sm:$0xff]
  %v3157 = vld [vmem:[%s39 + $0x7d0] sm:$0xff]
  %v3158 = vld [vmem:[%s39 + $0x7d8] sm:$0xff]
  %v3159 = vld [vmem:[%s39 + $0x7e0] sm:$0xff]
  %v3160 = vld [vmem:[%s39 + $0x7e8] sm:$0xff]
  %v3161 = vld [vmem:[%s39 + $0x7f0] sm:$0xff]
  %v3162 = vld [vmem:[%s39 + $0x7f8] sm:$0xff]
  %v3163 = vld [vmem:[%s41] sm:$0x1]
  %v3165 = vlaneseq
  %v3166 = vshrl.u32 %v3165, 7
  %v3167 = vsub.s32 0, %v3166
  %v3168 = vrot.slane %v3163, %v3167
  %3170 = vmatprep.subr.mxu0 0.0
  %3171 = vmatpush1.msra.mxu0 %v2922
  %3172 = vmatprep.subr.mxu0 0.0
  %3173 = vmatpush1.msra.mxu0 %v2921
  %3174 = vmatprep.subr.mxu0 0.0
  %3175 = vmatpush1.msra.mxu0 %v2920
  %3176 = vmatprep.subr.mxu0 0.0
  %3177 = vmatpush1.msra.mxu0 %v2919
  %3178 = vmatprep.subr.mxu0 0.0
  %3179 = vmatpush1.msra.mxu0 %v2918
  %3180 = vmatprep.subr.mxu0 0.0
  %3181 = vmatpush1.msra.mxu0 %v2917
  %3182 = vmatprep.subr.mxu0 0.0
  %3183 = vmatpush1.msra.mxu0 %v2916
  %3184 = vmatprep.subr.mxu0 0.0
  %3185 = vmatpush1.msra.mxu0 %v2915
  %3186 = vmatprep.subr.mxu0 0.0
  %3187 = vmatpush1.msra.mxu0 %v2914
  %3188 = vmatprep.subr.mxu0 0.0
  %3189 = vmatpush1.msra.mxu0 %v2913
  %3190 = vmatprep.subr.mxu0 0.0
  %3191 = vmatpush1.msra.mxu0 %v2912
  %3192 = vmatprep.subr.mxu0 0.0
  %3193 = vmatpush1.msra.mxu0 %v2911
  %3194 = vmatprep.subr.mxu0 0.0
  %3195 = vmatpush1.msra.mxu0 %v2910
  %3196 = vmatprep.subr.mxu0 0.0
  %3197 = vmatpush1.msra.mxu0 %v2909
  %3198 = vmatprep.subr.mxu0 0.0
  %3199 = vmatpush1.msra.mxu0 %v2908
  %3200 = vmatprep.subr.mxu0 0.0
  %3201 = vmatpush1.msra.mxu0 %v2907
  %3202 = vmatprep.subr.mxu0 0.0
  %3203 = vmatpush2.msra.mxu0 %v2938
  %3204 = vmatprep.subr.mxu0 0.0
  %3205 = vmatpush2.msra.mxu0 %v2937
  %3206 = vmatprep.subr.mxu0 0.0
  %3207 = vmatpush2.msra.mxu0 %v2936
  %3208 = vmatprep.subr.mxu0 0.0
  %3209 = vmatpush2.msra.mxu0 %v2935
  %3210 = vmatprep.subr.mxu0 0.0
  %3211 = vmatpush2.msra.mxu0 %v2934
  %3212 = vmatprep.subr.mxu0 0.0
  %3213 = vmatpush2.msra.mxu0 %v2933
  %3214 = vmatprep.subr.mxu0 0.0
  %3215 = vmatpush2.msra.mxu0 %v2932
  %3216 = vmatprep.subr.mxu0 0.0
  %3217 = vmatpush2.msra.mxu0 %v2931
  %3218 = vmatprep.subr.mxu0 0.0
  %3219 = vmatpush2.msra.mxu0 %v2930
  %3220 = vmatprep.subr.mxu0 0.0
  %3221 = vmatpush2.msra.mxu0 %v2929
  %3222 = vmatprep.subr.mxu0 0.0
  %3223 = vmatpush2.msra.mxu0 %v2928
  %3224 = vmatprep.subr.mxu0 0.0
  %3225 = vmatpush2.msra.mxu0 %v2927
  %3226 = vmatprep.subr.mxu0 0.0
  %3227 = vmatpush2.msra.mxu0 %v2926
  %3228 = vmatprep.subr.mxu0 0.0
  %3229 = vmatpush2.msra.mxu0 %v2925
  %3230 = vmatprep.subr.mxu0 0.0
  %3231 = vmatpush2.msra.mxu0 %v2924
  %3232 = vmatprep.subr.mxu0 0.0
  %3233 = vmatpush2.msra.mxu0 %v2923
  %3234 = vmatprep.mubr.f32.mxu0 %v2892
  %3235 = vmatmul.mubr.f32.gmra.mxu0 %v2891
  %v3236 = vpop.f32.mrf.mxu0
  %v3237 = vadd.f32 %v3168, %v3236
  %v3238 = vpop.f32.mrf.mxu0
  %3239 = vdwg.mxu0
  %3240 = vmatprep.subr.mxu0 0.0
  %3241 = vmatpush1.msra.mxu0 %v2954
  %3242 = vmatprep.subr.mxu0 0.0
  %3243 = vmatpush1.msra.mxu0 %v2953
  %3244 = vmatprep.subr.mxu0 0.0
  %3245 = vmatpush1.msra.mxu0 %v2952
  %3246 = vmatprep.subr.mxu0 0.0
  %3247 = vmatpush1.msra.mxu0 %v2951
  %3248 = vmatprep.subr.mxu0 0.0
  %3249 = vmatpush1.msra.mxu0 %v2950
  %3250 = vmatprep.subr.mxu0 0.0
  %3251 = vmatpush1.msra.mxu0 %v2949
  %3252 = vmatprep.subr.mxu0 0.0
  %3253 = vmatpush1.msra.mxu0 %v2948
  %3254 = vmatprep.subr.mxu0 0.0
  %3255 = vmatpush1.msra.mxu0 %v2947
  %3256 = vmatprep.subr.mxu0 0.0
  %3257 = vmatpush1.msra.mxu0 %v2946
  %3258 = vmatprep.subr.mxu0 0.0
  %3259 = vmatpush1.msra.mxu0 %v2945
  %3260 = vmatprep.subr.mxu0 0.0
  %3261 = vmatpush1.msra.mxu0 %v2944
  %3262 = vmatprep.subr.mxu0 0.0
  %3263 = vmatpush1.msra.mxu0 %v2943
  %3264 = vmatprep.subr.mxu0 0.0
  %3265 = vmatpush1.msra.mxu0 %v2942
  %3266 = vmatprep.subr.mxu0 0.0
  %3267 = vmatpush1.msra.mxu0 %v2941
  %3268 = vmatprep.subr.mxu0 0.0
  %3269 = vmatpush1.msra.mxu0 %v2940
  %3270 = vmatprep.subr.mxu0 0.0
  %3271 = vmatpush1.msra.mxu0 %v2939
  %3272 = vmatprep.subr.mxu0 0.0
  %3273 = vmatpush2.msra.mxu0 %v2970
  %3274 = vmatprep.subr.mxu0 0.0
  %3275 = vmatpush2.msra.mxu0 %v2969
  %3276 = vmatprep.subr.mxu0 0.0
  %3277 = vmatpush2.msra.mxu0 %v2968
  %3278 = vmatprep.subr.mxu0 0.0
  %3279 = vmatpush2.msra.mxu0 %v2967
  %3280 = vmatprep.subr.mxu0 0.0
  %3281 = vmatpush2.msra.mxu0 %v2966
  %3282 = vmatprep.subr.mxu0 0.0
  %3283 = vmatpush2.msra.mxu0 %v2965
  %3284 = vmatprep.subr.mxu0 0.0
  %3285 = vmatpush2.msra.mxu0 %v2964
  %3286 = vmatprep.subr.mxu0 0.0
  %3287 = vmatpush2.msra.mxu0 %v2963
  %3288 = vmatprep.subr.mxu0 0.0
  %3289 = vmatpush2.msra.mxu0 %v2962
  %3290 = vmatprep.subr.mxu0 0.0
  %3291 = vmatpush2.msra.mxu0 %v2961
  %3292 = vmatprep.subr.mxu0 0.0
  %3293 = vmatpush2.msra.mxu0 %v2960
  %3294 = vmatprep.subr.mxu0 0.0
  %3295 = vmatpush2.msra.mxu0 %v2959
  %3296 = vmatprep.subr.mxu0 0.0
  %3297 = vmatpush2.msra.mxu0 %v2958
  %3298 = vmatprep.subr.mxu0 0.0
  %3299 = vmatpush2.msra.mxu0 %v2957
  %3300 = vmatprep.subr.mxu0 0.0
  %3301 = vmatpush2.msra.mxu0 %v2956
  %3302 = vmatprep.subr.mxu0 0.0
  %3303 = vmatpush2.msra.mxu0 %v2955
  %3304 = vmatprep.mubr.f32.mxu0 %v2894
  %3305 = vmatmul.mubr.f32.gmra.mxu0 %v2893
  %v3306 = vpop.f32.mrf.mxu0
  %v3307 = vadd.f32 %v3237, %v3306
  %v3308 = vpop.f32.mrf.mxu0
  %3309 = vdwg.mxu0
  %3310 = vmatprep.subr.mxu0 0.0
  %3311 = vmatpush1.msra.mxu0 %v2986
  %3312 = vmatprep.subr.mxu0 0.0
  %3313 = vmatpush1.msra.mxu0 %v2985
  %3314 = vmatprep.subr.mxu0 0.0
  %3315 = vmatpush1.msra.mxu0 %v2984
  %3316 = vmatprep.subr.mxu0 0.0
  %3317 = vmatpush1.msra.mxu0 %v2983
  %3318 = vmatprep.subr.mxu0 0.0
  %3319 = vmatpush1.msra.mxu0 %v2982
  %3320 = vmatprep.subr.mxu0 0.0
  %3321 = vmatpush1.msra.mxu0 %v2981
  %3322 = vmatprep.subr.mxu0 0.0
  %3323 = vmatpush1.msra.mxu0 %v2980
  %3324 = vmatprep.subr.mxu0 0.0
  %3325 = vmatpush1.msra.mxu0 %v2979
  %3326 = vmatprep.subr.mxu0 0.0
  %3327 = vmatpush1.msra.mxu0 %v2978
  %3328 = vmatprep.subr.mxu0 0.0
  %3329 = vmatpush1.msra.mxu0 %v2977
  %3330 = vmatprep.subr.mxu0 0.0
  %3331 = vmatpush1.msra.mxu0 %v2976
  %3332 = vmatprep.subr.mxu0 0.0
  %3333 = vmatpush1.msra.mxu0 %v2975
  %3334 = vmatprep.subr.mxu0 0.0
  %3335 = vmatpush1.msra.mxu0 %v2974
  %3336 = vmatprep.subr.mxu0 0.0
  %3337 = vmatpush1.msra.mxu0 %v2973
  %3338 = vmatprep.subr.mxu0 0.0
  %3339 = vmatpush1.msra.mxu0 %v2972
  %3340 = vmatprep.subr.mxu0 0.0
  %3341 = vmatpush1.msra.mxu0 %v2971
  %3342 = vmatprep.subr.mxu0 0.0
  %3343 = vmatpush2.msra.mxu0 %v3002
  %3344 = vmatprep.subr.mxu0 0.0
  %3345 = vmatpush2.msra.mxu0 %v3001
  %3346 = vmatprep.subr.mxu0 0.0
  %3347 = vmatpush2.msra.mxu0 %v3000
  %3348 = vmatprep.subr.mxu0 0.0
  %3349 = vmatpush2.msra.mxu0 %v2999
  %3350 = vmatprep.subr.mxu0 0.0
  %3351 = vmatpush2.msra.mxu0 %v2998
  %3352 = vmatprep.subr.mxu0 0.0
  %3353 = vmatpush2.msra.mxu0 %v2997
  %3354 = vmatprep.subr.mxu0 0.0
  %3355 = vmatpush2.msra.mxu0 %v2996
  %3356 = vmatprep.subr.mxu0 0.0
  %3357 = vmatpush2.msra.mxu0 %v2995
  %3358 = vmatprep.subr.mxu0 0.0
  %3359 = vmatpush2.msra.mxu0 %v2994
  %3360 = vmatprep.subr.mxu0 0.0
  %3361 = vmatpush2.msra.mxu0 %v2993
  %3362 = vmatprep.subr.mxu0 0.0
  %3363 = vmatpush2.msra.mxu0 %v2992
  %3364 = vmatprep.subr.mxu0 0.0
  %3365 = vmatpush2.msra.mxu0 %v2991
  %3366 = vmatprep.subr.mxu0 0.0
  %3367 = vmatpush2.msra.mxu0 %v2990
  %3368 = vmatprep.subr.mxu0 0.0
  %3369 = vmatpush2.msra.mxu0 %v2989
  %3370 = vmatprep.subr.mxu0 0.0
  %3371 = vmatpush2.msra.mxu0 %v2988
  %3372 = vmatprep.subr.mxu0 0.0
  %3373 = vmatpush2.msra.mxu0 %v2987
  %3374 = vmatprep.mubr.f32.mxu0 %v2896
  %3375 = vmatmul.mubr.f32.gmra.mxu0 %v2895
  %v3376 = vpop.f32.mrf.mxu0
  %v3377 = vadd.f32 %v3307, %v3376
  %v3378 = vpop.f32.mrf.mxu0
  %3379 = vdwg.mxu0
  %3380 = vmatprep.subr.mxu0 0.0
  %3381 = vmatpush1.msra.mxu0 %v3018
  %3382 = vmatprep.subr.mxu0 0.0
  %3383 = vmatpush1.msra.mxu0 %v3017
  %3384 = vmatprep.subr.mxu0 0.0
  %3385 = vmatpush1.msra.mxu0 %v3016
  %3386 = vmatprep.subr.mxu0 0.0
  %3387 = vmatpush1.msra.mxu0 %v3015
  %3388 = vmatprep.subr.mxu0 0.0
  %3389 = vmatpush1.msra.mxu0 %v3014
  %3390 = vmatprep.subr.mxu0 0.0
  %3391 = vmatpush1.msra.mxu0 %v3013
  %3392 = vmatprep.subr.mxu0 0.0
  %3393 = vmatpush1.msra.mxu0 %v3012
  %3394 = vmatprep.subr.mxu0 0.0
  %3395 = vmatpush1.msra.mxu0 %v3011
  %3396 = vmatprep.subr.mxu0 0.0
  %3397 = vmatpush1.msra.mxu0 %v3010
  %3398 = vmatprep.subr.mxu0 0.0
  %3399 = vmatpush1.msra.mxu0 %v3009
  %3400 = vmatprep.subr.mxu0 0.0
  %3401 = vmatpush1.msra.mxu0 %v3008
  %3402 = vmatprep.subr.mxu0 0.0
  %3403 = vmatpush1.msra.mxu0 %v3007
  %3404 = vmatprep.subr.mxu0 0.0
  %3405 = vmatpush1.msra.mxu0 %v3006
  %3406 = vmatprep.subr.mxu0 0.0
  %3407 = vmatpush1.msra.mxu0 %v3005
  %3408 = vmatprep.subr.mxu0 0.0
  %3409 = vmatpush1.msra.mxu0 %v3004
  %3410 = vmatprep.subr.mxu0 0.0
  %3411 = vmatpush1.msra.mxu0 %v3003
  %3412 = vmatprep.subr.mxu0 0.0
  %3413 = vmatpush2.msra.mxu0 %v3034
  %3414 = vmatprep.subr.mxu0 0.0
  %3415 = vmatpush2.msra.mxu0 %v3033
  %3416 = vmatprep.subr.mxu0 0.0
  %3417 = vmatpush2.msra.mxu0 %v3032
  %3418 = vmatprep.subr.mxu0 0.0
  %3419 = vmatpush2.msra.mxu0 %v3031
  %3420 = vmatprep.subr.mxu0 0.0
  %3421 = vmatpush2.msra.mxu0 %v3030
  %3422 = vmatprep.subr.mxu0 0.0
  %3423 = vmatpush2.msra.mxu0 %v3029
  %3424 = vmatprep.subr.mxu0 0.0
  %3425 = vmatpush2.msra.mxu0 %v3028
  %3426 = vmatprep.subr.mxu0 0.0
  %3427 = vmatpush2.msra.mxu0 %v3027
  %3428 = vmatprep.subr.mxu0 0.0
  %3429 = vmatpush2.msra.mxu0 %v3026
  %3430 = vmatprep.subr.mxu0 0.0
  %3431 = vmatpush2.msra.mxu0 %v3025
  %3432 = vmatprep.subr.mxu0 0.0
  %3433 = vmatpush2.msra.mxu0 %v3024
  %3434 = vmatprep.subr.mxu0 0.0
  %3435 = vmatpush2.msra.mxu0 %v3023
  %3436 = vmatprep.subr.mxu0 0.0
  %3437 = vmatpush2.msra.mxu0 %v3022
  %3438 = vmatprep.subr.mxu0 0.0
  %3439 = vmatpush2.msra.mxu0 %v3021
  %3440 = vmatprep.subr.mxu0 0.0
  %3441 = vmatpush2.msra.mxu0 %v3020
  %3442 = vmatprep.subr.mxu0 0.0
  %3443 = vmatpush2.msra.mxu0 %v3019
  %3444 = vmatprep.mubr.f32.mxu0 %v2898
  %3445 = vmatmul.mubr.f32.gmra.mxu0 %v2897
  %v3446 = vpop.f32.mrf.mxu0
  %v3447 = vadd.f32 %v3377, %v3446
  %v3448 = vpop.f32.mrf.mxu0
  %3449 = vdwg.mxu0
  %3450 = vmatprep.subr.mxu0 0.0
  %3451 = vmatpush1.msra.mxu0 %v3050
  %3452 = vmatprep.subr.mxu0 0.0
  %3453 = vmatpush1.msra.mxu0 %v3049
  %3454 = vmatprep.subr.mxu0 0.0
  %3455 = vmatpush1.msra.mxu0 %v3048
  %3456 = vmatprep.subr.mxu0 0.0
  %3457 = vmatpush1.msra.mxu0 %v3047
  %3458 = vmatprep.subr.mxu0 0.0
  %3459 = vmatpush1.msra.mxu0 %v3046
  %3460 = vmatprep.subr.mxu0 0.0
  %3461 = vmatpush1.msra.mxu0 %v3045
  %3462 = vmatprep.subr.mxu0 0.0
  %3463 = vmatpush1.msra.mxu0 %v3044
  %3464 = vmatprep.subr.mxu0 0.0
  %3465 = vmatpush1.msra.mxu0 %v3043
  %3466 = vmatprep.subr.mxu0 0.0
  %3467 = vmatpush1.msra.mxu0 %v3042
  %3468 = vmatprep.subr.mxu0 0.0
  %3469 = vmatpush1.msra.mxu0 %v3041
  %3470 = vmatprep.subr.mxu0 0.0
  %3471 = vmatpush1.msra.mxu0 %v3040
  %3472 = vmatprep.subr.mxu0 0.0
  %3473 = vmatpush1.msra.mxu0 %v3039
  %3474 = vmatprep.subr.mxu0 0.0
  %3475 = vmatpush1.msra.mxu0 %v3038
  %3476 = vmatprep.subr.mxu0 0.0
  %3477 = vmatpush1.msra.mxu0 %v3037
  %3478 = vmatprep.subr.mxu0 0.0
  %3479 = vmatpush1.msra.mxu0 %v3036
  %3480 = vmatprep.subr.mxu0 0.0
  %3481 = vmatpush1.msra.mxu0 %v3035
  %3482 = vmatprep.subr.mxu0 0.0
  %3483 = vmatpush2.msra.mxu0 %v3066
  %3484 = vmatprep.subr.mxu0 0.0
  %3485 = vmatpush2.msra.mxu0 %v3065
  %3486 = vmatprep.subr.mxu0 0.0
  %3487 = vmatpush2.msra.mxu0 %v3064
  %3488 = vmatprep.subr.mxu0 0.0
  %3489 = vmatpush2.msra.mxu0 %v3063
  %3490 = vmatprep.subr.mxu0 0.0
  %3491 = vmatpush2.msra.mxu0 %v3062
  %3492 = vmatprep.subr.mxu0 0.0
  %3493 = vmatpush2.msra.mxu0 %v3061
  %3494 = vmatprep.subr.mxu0 0.0
  %3495 = vmatpush2.msra.mxu0 %v3060
  %3496 = vmatprep.subr.mxu0 0.0
  %3497 = vmatpush2.msra.mxu0 %v3059
  %3498 = vmatprep.subr.mxu0 0.0
  %3499 = vmatpush2.msra.mxu0 %v3058
  %3500 = vmatprep.subr.mxu0 0.0
  %3501 = vmatpush2.msra.mxu0 %v3057
  %3502 = vmatprep.subr.mxu0 0.0
  %3503 = vmatpush2.msra.mxu0 %v3056
  %3504 = vmatprep.subr.mxu0 0.0
  %3505 = vmatpush2.msra.mxu0 %v3055
  %3506 = vmatprep.subr.mxu0 0.0
  %3507 = vmatpush2.msra.mxu0 %v3054
  %3508 = vmatprep.subr.mxu0 0.0
  %3509 = vmatpush2.msra.mxu0 %v3053
  %3510 = vmatprep.subr.mxu0 0.0
  %3511 = vmatpush2.msra.mxu0 %v3052
  %3512 = vmatprep.subr.mxu0 0.0
  %3513 = vmatpush2.msra.mxu0 %v3051
  %3514 = vmatprep.mubr.f32.mxu0 %v2900
  %3515 = vmatmul.mubr.f32.gmra.mxu0 %v2899
  %v3516 = vpop.f32.mrf.mxu0
  %v3517 = vadd.f32 %v3447, %v3516
  %v3518 = vpop.f32.mrf.mxu0
  %3519 = vdwg.mxu0
  %3520 = vmatprep.subr.mxu0 0.0
  %3521 = vmatpush1.msra.mxu0 %v3082
  %3522 = vmatprep.subr.mxu0 0.0
  %3523 = vmatpush1.msra.mxu0 %v3081
  %3524 = vmatprep.subr.mxu0 0.0
  %3525 = vmatpush1.msra.mxu0 %v3080
  %3526 = vmatprep.subr.mxu0 0.0
  %3527 = vmatpush1.msra.mxu0 %v3079
  %3528 = vmatprep.subr.mxu0 0.0
  %3529 = vmatpush1.msra.mxu0 %v3078
  %3530 = vmatprep.subr.mxu0 0.0
  %3531 = vmatpush1.msra.mxu0 %v3077
  %3532 = vmatprep.subr.mxu0 0.0
  %3533 = vmatpush1.msra.mxu0 %v3076
  %3534 = vmatprep.subr.mxu0 0.0
  %3535 = vmatpush1.msra.mxu0 %v3075
  %3536 = vmatprep.subr.mxu0 0.0
  %3537 = vmatpush1.msra.mxu0 %v3074
  %3538 = vmatprep.subr.mxu0 0.0
  %3539 = vmatpush1.msra.mxu0 %v3073
  %3540 = vmatprep.subr.mxu0 0.0
  %3541 = vmatpush1.msra.mxu0 %v3072
  %3542 = vmatprep.subr.mxu0 0.0
  %3543 = vmatpush1.msra.mxu0 %v3071
  %3544 = vmatprep.subr.mxu0 0.0
  %3545 = vmatpush1.msra.mxu0 %v3070
  %3546 = vmatprep.subr.mxu0 0.0
  %3547 = vmatpush1.msra.mxu0 %v3069
  %3548 = vmatprep.subr.mxu0 0.0
  %3549 = vmatpush1.msra.mxu0 %v3068
  %3550 = vmatprep.subr.mxu0 0.0
  %3551 = vmatpush1.msra.mxu0 %v3067
  %3552 = vmatprep.subr.mxu0 0.0
  %3553 = vmatpush2.msra.mxu0 %v3098
  %3554 = vmatprep.subr.mxu0 0.0
  %3555 = vmatpush2.msra.mxu0 %v3097
  %3556 = vmatprep.subr.mxu0 0.0
  %3557 = vmatpush2.msra.mxu0 %v3096
  %3558 = vmatprep.subr.mxu0 0.0
  %3559 = vmatpush2.msra.mxu0 %v3095
  %3560 = vmatprep.subr.mxu0 0.0
  %3561 = vmatpush2.msra.mxu0 %v3094
  %3562 = vmatprep.subr.mxu0 0.0
  %3563 = vmatpush2.msra.mxu0 %v3093
  %3564 = vmatprep.subr.mxu0 0.0
  %3565 = vmatpush2.msra.mxu0 %v3092
  %3566 = vmatprep.subr.mxu0 0.0
  %3567 = vmatpush2.msra.mxu0 %v3091
  %3568 = vmatprep.subr.mxu0 0.0
  %3569 = vmatpush2.msra.mxu0 %v3090
  %3570 = vmatprep.subr.mxu0 0.0
  %3571 = vmatpush2.msra.mxu0 %v3089
  %3572 = vmatprep.subr.mxu0 0.0
  %3573 = vmatpush2.msra.mxu0 %v3088
  %3574 = vmatprep.subr.mxu0 0.0
  %3575 = vmatpush2.msra.mxu0 %v3087
  %3576 = vmatprep.subr.mxu0 0.0
  %3577 = vmatpush2.msra.mxu0 %v3086
  %3578 = vmatprep.subr.mxu0 0.0
  %3579 = vmatpush2.msra.mxu0 %v3085
  %3580 = vmatprep.subr.mxu0 0.0
  %3581 = vmatpush2.msra.mxu0 %v3084
  %3582 = vmatprep.subr.mxu0 0.0
  %3583 = vmatpush2.msra.mxu0 %v3083
  %3584 = vmatprep.mubr.f32.mxu0 %v2902
  %3585 = vmatmul.mubr.f32.gmra.mxu0 %v2901
  %v3586 = vpop.f32.mrf.mxu0
  %v3587 = vadd.f32 %v3517, %v3586
  %v3588 = vpop.f32.mrf.mxu0
  %3589 = vdwg.mxu0
  %3590 = vmatprep.subr.mxu0 0.0
  %3591 = vmatpush1.msra.mxu0 %v3114
  %3592 = vmatprep.subr.mxu0 0.0
  %3593 = vmatpush1.msra.mxu0 %v3113
  %3594 = vmatprep.subr.mxu0 0.0
  %3595 = vmatpush1.msra.mxu0 %v3112
  %3596 = vmatprep.subr.mxu0 0.0
  %3597 = vmatpush1.msra.mxu0 %v3111
  %3598 = vmatprep.subr.mxu0 0.0
  %3599 = vmatpush1.msra.mxu0 %v3110
  %3600 = vmatprep.subr.mxu0 0.0
  %3601 = vmatpush1.msra.mxu0 %v3109
  %3602 = vmatprep.subr.mxu0 0.0
  %3603 = vmatpush1.msra.mxu0 %v3108
  %3604 = vmatprep.subr.mxu0 0.0
  %3605 = vmatpush1.msra.mxu0 %v3107
  %3606 = vmatprep.subr.mxu0 0.0
  %3607 = vmatpush1.msra.mxu0 %v3106
  %3608 = vmatprep.subr.mxu0 0.0
  %3609 = vmatpush1.msra.mxu0 %v3105
  %3610 = vmatprep.subr.mxu0 0.0
  %3611 = vmatpush1.msra.mxu0 %v3104
  %3612 = vmatprep.subr.mxu0 0.0
  %3613 = vmatpush1.msra.mxu0 %v3103
  %3614 = vmatprep.subr.mxu0 0.0
  %3615 = vmatpush1.msra.mxu0 %v3102
  %3616 = vmatprep.subr.mxu0 0.0
  %3617 = vmatpush1.msra.mxu0 %v3101
  %3618 = vmatprep.subr.mxu0 0.0
  %3619 = vmatpush1.msra.mxu0 %v3100
  %3620 = vmatprep.subr.mxu0 0.0
  %3621 = vmatpush1.msra.mxu0 %v3099
  %3622 = vmatprep.subr.mxu0 0.0
  %3623 = vmatpush2.msra.mxu0 %v3130
  %3624 = vmatprep.subr.mxu0 0.0
  %3625 = vmatpush2.msra.mxu0 %v3129
  %3626 = vmatprep.subr.mxu0 0.0
  %3627 = vmatpush2.msra.mxu0 %v3128
  %3628 = vmatprep.subr.mxu0 0.0
  %3629 = vmatpush2.msra.mxu0 %v3127
  %3630 = vmatprep.subr.mxu0 0.0
  %3631 = vmatpush2.msra.mxu0 %v3126
  %3632 = vmatprep.subr.mxu0 0.0
  %3633 = vmatpush2.msra.mxu0 %v3125
  %3634 = vmatprep.subr.mxu0 0.0
  %3635 = vmatpush2.msra.mxu0 %v3124
  %3636 = vmatprep.subr.mxu0 0.0
  %3637 = vmatpush2.msra.mxu0 %v3123
  %3638 = vmatprep.subr.mxu0 0.0
  %3639 = vmatpush2.msra.mxu0 %v3122
  %3640 = vmatprep.subr.mxu0 0.0
  %3641 = vmatpush2.msra.mxu0 %v3121
  %3642 = vmatprep.subr.mxu0 0.0
  %3643 = vmatpush2.msra.mxu0 %v3120
  %3644 = vmatprep.subr.mxu0 0.0
  %3645 = vmatpush2.msra.mxu0 %v3119
  %3646 = vmatprep.subr.mxu0 0.0
  %3647 = vmatpush2.msra.mxu0 %v3118
  %3648 = vmatprep.subr.mxu0 0.0
  %3649 = vmatpush2.msra.mxu0 %v3117
  %3650 = vmatprep.subr.mxu0 0.0
  %3651 = vmatpush2.msra.mxu0 %v3116
  %3652 = vmatprep.subr.mxu0 0.0
  %3653 = vmatpush2.msra.mxu0 %v3115
  %3654 = vmatprep.mubr.f32.mxu0 %v2904
  %3655 = vmatmul.mubr.f32.gmra.mxu0 %v2903
  %v3656 = vpop.f32.mrf.mxu0
  %v3657 = vadd.f32 %v3587, %v3656
  %v3658 = vpop.f32.mrf.mxu0
  %3659 = vdwg.mxu0
  %3660 = vmatprep.subr.mxu0 0.0
  %3661 = vmatpush1.msra.mxu0 %v3146
  %3662 = vmatprep.subr.mxu0 0.0
  %3663 = vmatpush1.msra.mxu0 %v3145
  %3664 = vmatprep.subr.mxu0 0.0
  %3665 = vmatpush1.msra.mxu0 %v3144
  %3666 = vmatprep.subr.mxu0 0.0
  %3667 = vmatpush1.msra.mxu0 %v3143
  %3668 = vmatprep.subr.mxu0 0.0
  %3669 = vmatpush1.msra.mxu0 %v3142
  %3670 = vmatprep.subr.mxu0 0.0
  %3671 = vmatpush1.msra.mxu0 %v3141
  %3672 = vmatprep.subr.mxu0 0.0
  %3673 = vmatpush1.msra.mxu0 %v3140
  %3674 = vmatprep.subr.mxu0 0.0
  %3675 = vmatpush1.msra.mxu0 %v3139
  %3676 = vmatprep.subr.mxu0 0.0
  %3677 = vmatpush1.msra.mxu0 %v3138
  %3678 = vmatprep.subr.mxu0 0.0
  %3679 = vmatpush1.msra.mxu0 %v3137
  %3680 = vmatprep.subr.mxu0 0.0
  %3681 = vmatpush1.msra.mxu0 %v3136
  %3682 = vmatprep.subr.mxu0 0.0
  %3683 = vmatpush1.msra.mxu0 %v3135
  %3684 = vmatprep.subr.mxu0 0.0
  %3685 = vmatpush1.msra.mxu0 %v3134
  %3686 = vmatprep.subr.mxu0 0.0
  %3687 = vmatpush1.msra.mxu0 %v3133
  %3688 = vmatprep.subr.mxu0 0.0
  %3689 = vmatpush1.msra.mxu0 %v3132
  %3690 = vmatprep.subr.mxu0 0.0
  %3691 = vmatpush1.msra.mxu0 %v3131
  %3692 = vmatprep.subr.mxu0 0.0
  %3693 = vmatpush2.msra.mxu0 %v3162
  %3694 = vmatprep.subr.mxu0 0.0
  %3695 = vmatpush2.msra.mxu0 %v3161
  %3696 = vmatprep.subr.mxu0 0.0
  %3697 = vmatpush2.msra.mxu0 %v3160
  %3698 = vmatprep.subr.mxu0 0.0
  %3699 = vmatpush2.msra.mxu0 %v3159
  %3700 = vmatprep.subr.mxu0 0.0
  %3701 = vmatpush2.msra.mxu0 %v3158
  %3702 = vmatprep.subr.mxu0 0.0
  %3703 = vmatpush2.msra.mxu0 %v3157
  %3704 = vmatprep.subr.mxu0 0.0
  %3705 = vmatpush2.msra.mxu0 %v3156
  %3706 = vmatprep.subr.mxu0 0.0
  %3707 = vmatpush2.msra.mxu0 %v3155
  %3708 = vmatprep.subr.mxu0 0.0
  %3709 = vmatpush2.msra.mxu0 %v3154
  %3710 = vmatprep.subr.mxu0 0.0
  %3711 = vmatpush2.msra.mxu0 %v3153
  %3712 = vmatprep.subr.mxu0 0.0
  %3713 = vmatpush2.msra.mxu0 %v3152
  %3714 = vmatprep.subr.mxu0 0.0
  %3715 = vmatpush2.msra.mxu0 %v3151
  %3716 = vmatprep.subr.mxu0 0.0
  %3717 = vmatpush2.msra.mxu0 %v3150
  %3718 = vmatprep.subr.mxu0 0.0
  %3719 = vmatpush2.msra.mxu0 %v3149
  %3720 = vmatprep.subr.mxu0 0.0
  %3721 = vmatpush2.msra.mxu0 %v3148
  %3722 = vmatprep.subr.mxu0 0.0
  %3723 = vmatpush2.msra.mxu0 %v3147
  %3724 = vmatprep.mubr.f32.mxu0 %v2906
  %3725 = vmatmul.mubr.f32.gmra.mxu0 %v2905
  %v3726 = vpop.f32.mrf.mxu0
  %v3727 = vadd.f32 %v3657, %v3726
  %v3728 = vpop.f32.mrf.mxu0
  %3729 = vdwg.mxu0
  %v3730 = vadd.f32 %v2107, %v3727
  %v3731 = vld [vmem:[%s43] sm:$0x1]
  %v3732 = vld [vmem:[%s45] sm:$0x1]
  %v3733 = vsel %vm233, %v3730, 0.0
  %3734 = vadd.xlane.f32.xlu0 %v3733
  %v3735 = vpop.xlane.xlu0 %3734
  %v3736 = vmul.f32 %v3735, %v313
  %v3737 = vsub.f32 %v3730, %v3736
  %v3738 = vmul.f32 %v3737, %v3737
  %v3739 = vsel %vm233, %v3738, 0.0
  %3740 = vadd.xlane.f32.xlu0 %v3739
  %v3741 = vpop.xlane.xlu0 %3740
  %v3742 = vmul.f32 %v3741, %v313
  %v3743 = vadd.f32 %v3742, 1e-05
  %v3744 = vrsqrt.pop %v3743
  %v3745 = vmul.f32 %v3737, %v3744
  %v3747 = vlaneseq
  %v3748 = vshrl.u32 %v3747, 7
  %v3749 = vsub.s32 0, %v3748
  %v3750 = vrot.slane %v3731, %v3749
  %v3752 = vmul.f32 %v3745, %v3750
  %v3754 = vlaneseq
  %v3755 = vshrl.u32 %v3754, 7
  %v3756 = vsub.s32 0, %v3755
  %v3757 = vrot.slane %v3732, %v3756
  %v3759 = vadd.f32 %v3752, %v3757
  %v3760 = vld [vmem:[%s47] sm:$0xff]
  %v3761 = vld [vmem:[%s47 + $0x8] sm:$0xff]
  %v3762 = vld [vmem:[%s47 + $0x10] sm:$0xff]
  %v3763 = vld [vmem:[%s47 + $0x18] sm:$0xff]
  %v3764 = vld [vmem:[%s47 + $0x20] sm:$0xff]
  %v3765 = vld [vmem:[%s47 + $0x28] sm:$0xff]
  %v3766 = vld [vmem:[%s47 + $0x30] sm:$0xff]
  %v3767 = vld [vmem:[%s47 + $0x38] sm:$0xff]
  %v3768 = vld [vmem:[%s49] sm:$0x1]
  %v3770 = vlaneseq
  %v3771 = vshrl.u32 %v3770, 7
  %v3772 = vsub.s32 0, %v3771
  %v3773 = vrot.slane %v3768, %v3772
  %v3776 = vsel %vm233, %v3759, 0
  %3778 = vmatprep.subr.mxu0 0.0
  %3779 = vmatpush1.msra.mxu0 0.0
  %3780 = vmatprep.subr.mxu0 0.0
  %3781 = vmatpush1.msra.mxu0 0.0
  %3782 = vmatprep.subr.mxu0 0.0
  %3783 = vmatpush1.msra.mxu0 0.0
  %3784 = vmatprep.subr.mxu0 0.0
  %3785 = vmatpush1.msra.mxu0 0.0
  %3786 = vmatprep.subr.mxu0 0.0
  %3787 = vmatpush1.msra.mxu0 0.0
  %3788 = vmatprep.subr.mxu0 0.0
  %3789 = vmatpush1.msra.mxu0 0.0
  %3790 = vmatprep.subr.mxu0 0.0
  %3791 = vmatpush1.msra.mxu0 0.0
  %3792 = vmatprep.subr.mxu0 0.0
  %3793 = vmatpush1.msra.mxu0 0.0
  %3794 = vmatprep.subr.mxu0 0.0
  %3795 = vmatpush1.msra.mxu0 %v3767
  %3796 = vmatprep.subr.mxu0 0.0
  %3797 = vmatpush1.msra.mxu0 %v3766
  %3798 = vmatprep.subr.mxu0 0.0
  %3799 = vmatpush1.msra.mxu0 %v3765
  %3800 = vmatprep.subr.mxu0 0.0
  %3801 = vmatpush1.msra.mxu0 %v3764
  %3802 = vmatprep.subr.mxu0 0.0
  %3803 = vmatpush1.msra.mxu0 %v3763
  %3804 = vmatprep.subr.mxu0 0.0
  %3805 = vmatpush1.msra.mxu0 %v3762
  %3806 = vmatprep.subr.mxu0 0.0
  %3807 = vmatpush1.msra.mxu0 %v3761
  %3808 = vmatprep.subr.mxu0 0.0
  %3809 = vmatpush1.msra.mxu0 %v3760
  %3810 = vmatprep.subr.mxu0 0.0
  %3811 = vmatpush2.msra.mxu0 0.0
  %3812 = vmatprep.subr.mxu0 0.0
  %3813 = vmatpush2.msra.mxu0 0.0
  %3814 = vmatprep.subr.mxu0 0.0
  %3815 = vmatpush2.msra.mxu0 0.0
  %3816 = vmatprep.subr.mxu0 0.0
  %3817 = vmatpush2.msra.mxu0 0.0
  %3818 = vmatprep.subr.mxu0 0.0
  %3819 = vmatpush2.msra.mxu0 0.0
  %3820 = vmatprep.subr.mxu0 0.0
  %3821 = vmatpush2.msra.mxu0 0.0
  %3822 = vmatprep.subr.mxu0 0.0
  %3823 = vmatpush2.msra.mxu0 0.0
  %3824 = vmatprep.subr.mxu0 0.0
  %3825 = vmatpush2.msra.mxu0 0.0
  %3826 = vmatprep.subr.mxu0 0.0
  %3827 = vmatpush2.msra.mxu0 0.0
  %3828 = vmatprep.subr.mxu0 0.0
  %3829 = vmatpush2.msra.mxu0 0.0
  %3830 = vmatprep.subr.mxu0 0.0
  %3831 = vmatpush2.msra.mxu0 0.0
  %3832 = vmatprep.subr.mxu0 0.0
  %3833 = vmatpush2.msra.mxu0 0.0
  %3834 = vmatprep.subr.mxu0 0.0
  %3835 = vmatpush2.msra.mxu0 0.0
  %3836 = vmatprep.subr.mxu0 0.0
  %3837 = vmatpush2.msra.mxu0 0.0
  %3838 = vmatprep.subr.mxu0 0.0
  %3839 = vmatpush2.msra.mxu0 0.0
  %3840 = vmatprep.subr.mxu0 0.0
  %3841 = vmatpush2.msra.mxu0 0.0
  %3842 = vmatprep.mubr.f32.mxu0 0.0
  %3843 = vmatmul.mubr.f32.gmra.mxu0 %v3776
  %v3844 = vpop.f32.mrf.mxu0
  %v3845 = vadd.f32 %v3773, %v3844
  %v3846 = vpop.f32.mrf.mxu0
  %3847 = vdwg.mxu0
  %v3848 = vmax.f32 %v3845, 0.0
  %v3849 = vld [vmem:[%s51] sm:$0xff]
  %v3850 = vld [vmem:[%s51 + $0x8] sm:$0xff]
  %v3851 = vld [vmem:[%s51 + $0x10] sm:$0xff]
  %v3852 = vld [vmem:[%s51 + $0x18] sm:$0xff]
  %v3853 = vld [vmem:[%s51 + $0x20] sm:$0xff]
  %v3854 = vld [vmem:[%s51 + $0x28] sm:$0xff]
  %v3855 = vld [vmem:[%s51 + $0x30] sm:$0xff]
  %v3856 = vld [vmem:[%s51 + $0x38] sm:$0xff]
  %v3857 = vld [vmem:[%s53] sm:$0x1]
  %v3859 = vlaneseq
  %v3860 = vshrl.u32 %v3859, 7
  %v3861 = vsub.s32 0, %v3860
  %v3862 = vrot.slane %v3857, %v3861
  %v3865 = vsel %vm233, %v3848, 0
  %3867 = vmatprep.subr.mxu0 0.0
  %3868 = vmatpush1.msra.mxu0 0.0
  %3869 = vmatprep.subr.mxu0 0.0
  %3870 = vmatpush1.msra.mxu0 0.0
  %3871 = vmatprep.subr.mxu0 0.0
  %3872 = vmatpush1.msra.mxu0 0.0
  %3873 = vmatprep.subr.mxu0 0.0
  %3874 = vmatpush1.msra.mxu0 0.0
  %3875 = vmatprep.subr.mxu0 0.0
  %3876 = vmatpush1.msra.mxu0 0.0
  %3877 = vmatprep.subr.mxu0 0.0
  %3878 = vmatpush1.msra.mxu0 0.0
  %3879 = vmatprep.subr.mxu0 0.0
  %3880 = vmatpush1.msra.mxu0 0.0
  %3881 = vmatprep.subr.mxu0 0.0
  %3882 = vmatpush1.msra.mxu0 0.0
  %3883 = vmatprep.subr.mxu0 0.0
  %3884 = vmatpush1.msra.mxu0 %v3856
  %3885 = vmatprep.subr.mxu0 0.0
  %3886 = vmatpush1.msra.mxu0 %v3855
  %3887 = vmatprep.subr.mxu0 0.0
  %3888 = vmatpush1.msra.mxu0 %v3854
  %3889 = vmatprep.subr.mxu0 0.0
  %3890 = vmatpush1.msra.mxu0 %v3853
  %3891 = vmatprep.subr.mxu0 0.0
  %3892 = vmatpush1.msra.mxu0 %v3852
  %3893 = vmatprep.subr.mxu0 0.0
  %3894 = vmatpush1.msra.mxu0 %v3851
  %3895 = vmatprep.subr.mxu0 0.0
  %3896 = vmatpush1.msra.mxu0 %v3850
  %3897 = vmatprep.subr.mxu0 0.0
  %3898 = vmatpush1.msra.mxu0 %v3849
  %3899 = vmatprep.subr.mxu0 0.0
  %3900 = vmatpush2.msra.mxu0 0.0
  %3901 = vmatprep.subr.mxu0 0.0
  %3902 = vmatpush2.msra.mxu0 0.0
  %3903 = vmatprep.subr.mxu0 0.0
  %3904 = vmatpush2.msra.mxu0 0.0
  %3905 = vmatprep.subr.mxu0 0.0
  %3906 = vmatpush2.msra.mxu0 0.0
  %3907 = vmatprep.subr.mxu0 0.0
  %3908 = vmatpush2.msra.mxu0 0.0
  %3909 = vmatprep.subr.mxu0 0.0
  %3910 = vmatpush2.msra.mxu0 0.0
  %3911 = vmatprep.subr.mxu0 0.0
  %3912 = vmatpush2.msra.mxu0 0.0
  %3913 = vmatprep.subr.mxu0 0.0
  %3914 = vmatpush2.msra.mxu0 0.0
  %3915 = vmatprep.subr.mxu0 0.0
  %3916 = vmatpush2.msra.mxu0 0.0
  %3917 = vmatprep.subr.mxu0 0.0
  %3918 = vmatpush2.msra.mxu0 0.0
  %3919 = vmatprep.subr.mxu0 0.0
  %3920 = vmatpush2.msra.mxu0 0.0
  %3921 = vmatprep.subr.mxu0 0.0
  %3922 = vmatpush2.msra.mxu0 0.0
  %3923 = vmatprep.subr.mxu0 0.0
  %3924 = vmatpush2.msra.mxu0 0.0
  %3925 = vmatprep.subr.mxu0 0.0
  %3926 = vmatpush2.msra.mxu0 0.0
  %3927 = vmatprep.subr.mxu0 0.0
  %3928 = vmatpush2.msra.mxu0 0.0
  %3929 = vmatprep.subr.mxu0 0.0
  %3930 = vmatpush2.msra.mxu0 0.0
  %3931 = vmatprep.mubr.f32.mxu0 0.0
  %3932 = vmatmul.mubr.f32.gmra.mxu0 %v3865
  %v3933 = vpop.f32.mrf.mxu0
  %v3934 = vadd.f32 %v3862, %v3933
  %v3935 = vpop.f32.mrf.mxu0
  %3936 = vdwg.mxu0
  %v3937 = vmax.f32 %v3934, 0.0
  %v3938 = vld [vmem:[%s55] sm:$0xff]
  %v3939 = vld [vmem:[%s55 + $0x8] sm:$0xff]
  %v3940 = vld [vmem:[%s55 + $0x10] sm:$0xff]
  %v3941 = vld [vmem:[%s55 + $0x18] sm:$0xff]
  %v3942 = vld [vmem:[%s57] sm:$0x1]
  %v3944 = vlaneseq
  %v3945 = vshrl.u32 %v3944, 7
  %v3946 = vsub.s32 0, %v3945
  %v3947 = vrot.slane %v3942, %v3946
  %v3950 = vsel %vm144, %v3937, 0
  %3952 = vmatprep.subr.mxu0 0.0
  %3953 = vmatpush1.msra.mxu0 0.0
  %3954 = vmatprep.subr.mxu0 0.0
  %3955 = vmatpush1.msra.mxu0 0.0
  %3956 = vmatprep.subr.mxu0 0.0
  %3957 = vmatpush1.msra.mxu0 0.0
  %3958 = vmatprep.subr.mxu0 0.0
  %3959 = vmatpush1.msra.mxu0 0.0
  %3960 = vmatprep.subr.mxu0 0.0
  %3961 = vmatpush1.msra.mxu0 0.0
  %3962 = vmatprep.subr.mxu0 0.0
  %3963 = vmatpush1.msra.mxu0 0.0
  %3964 = vmatprep.subr.mxu0 0.0
  %3965 = vmatpush1.msra.mxu0 0.0
  %3966 = vmatprep.subr.mxu0 0.0
  %3967 = vmatpush1.msra.mxu0 0.0
  %3968 = vmatprep.subr.mxu0 0.0
  %3969 = vmatpush1.msra.mxu0 0.0
  %3970 = vmatprep.subr.mxu0 0.0
  %3971 = vmatpush1.msra.mxu0 0.0
  %3972 = vmatprep.subr.mxu0 0.0
  %3973 = vmatpush1.msra.mxu0 0.0
  %3974 = vmatprep.subr.mxu0 0.0
  %3975 = vmatpush1.msra.mxu0 0.0
  %3976 = vmatprep.subr.mxu0 0.0
  %3977 = vmatpush1.msra.mxu0 %v3941
  %3978 = vmatprep.subr.mxu0 0.0
  %3979 = vmatpush1.msra.mxu0 %v3940
  %3980 = vmatprep.subr.mxu0 0.0
  %3981 = vmatpush1.msra.mxu0 %v3939
  %3982 = vmatprep.subr.mxu0 0.0
  %3983 = vmatpush1.msra.mxu0 %v3938
  %3984 = vmatprep.subr.mxu0 0.0
  %3985 = vmatpush2.msra.mxu0 0.0
  %3986 = vmatprep.subr.mxu0 0.0
  %3987 = vmatpush2.msra.mxu0 0.0
  %3988 = vmatprep.subr.mxu0 0.0
  %3989 = vmatpush2.msra.mxu0 0.0
  %3990 = vmatprep.subr.mxu0 0.0
  %3991 = vmatpush2.msra.mxu0 0.0
  %3992 = vmatprep.subr.mxu0 0.0
  %3993 = vmatpush2.msra.mxu0 0.0
  %3994 = vmatprep.subr.mxu0 0.0
  %3995 = vmatpush2.msra.mxu0 0.0
  %3996 = vmatprep.subr.mxu0 0.0
  %3997 = vmatpush2.msra.mxu0 0.0
  %3998 = vmatprep.subr.mxu0 0.0
  %3999 = vmatpush2.msra.mxu0 0.0
  %4000 = vmatprep.subr.mxu0 0.0
  %4001 = vmatpush2.msra.mxu0 0.0
  %4002 = vmatprep.subr.mxu0 0.0
  %4003 = vmatpush2.msra.mxu0 0.0
  %4004 = vmatprep.subr.mxu0 0.0
  %4005 = vmatpush2.msra.mxu0 0.0
  %4006 = vmatprep.subr.mxu0 0.0
  %4007 = vmatpush2.msra.mxu0 0.0
  %4008 = vmatprep.subr.mxu0 0.0
  %4009 = vmatpush2.msra.mxu0 0.0
  %4010 = vmatprep.subr.mxu0 0.0
  %4011 = vmatpush2.msra.mxu0 0.0
  %4012 = vmatprep.subr.mxu0 0.0
  %4013 = vmatpush2.msra.mxu0 0.0
  %4014 = vmatprep.subr.mxu0 0.0
  %4015 = vmatpush2.msra.mxu0 0.0
  %4016 = vmatprep.mubr.f32.mxu0 0.0
  %4017 = vmatmul.mubr.f32.gmra.mxu0 %v3950
  %v4018 = vpop.f32.mrf.mxu0
  %v4019 = vadd.f32 %v3947, %v4018
  %v4020 = vpop.f32.mrf.mxu0
  %4021 = vdwg.mxu0
  %v4022 = vmax.f32 %v4019, 0.0
  %v4023 = vld [vmem:[%s59] sm:$0xff]
  %v4024 = vld [vmem:[%s59 + $0x8] sm:$0xff]
  %v4025 = vld [vmem:[#allocation2] sm:$0x1]
  %v4027 = vlaneseq
  %v4028 = vshrl.u32 %v4027, 7
  %v4029 = vsub.s32 0, %v4028
  %v4030 = vrot.slane %v4025, %v4029
  %vm4032 = vcmask 130048
  %v4034 = vsel %vm4032, %v4022, 0
  %4036 = vmatprep.subr.mxu0 0.0
  %4037 = vmatpush1.msra.mxu0 0.0
  %4038 = vmatprep.subr.mxu0 0.0
  %4039 = vmatpush1.msra.mxu0 0.0
  %4040 = vmatprep.subr.mxu0 0.0
  %4041 = vmatpush1.msra.mxu0 0.0
  %4042 = vmatprep.subr.mxu0 0.0
  %4043 = vmatpush1.msra.mxu0 0.0
  %4044 = vmatprep.subr.mxu0 0.0
  %4045 = vmatpush1.msra.mxu0 0.0
  %4046 = vmatprep.subr.mxu0 0.0
  %4047 = vmatpush1.msra.mxu0 0.0
  %4048 = vmatprep.subr.mxu0 0.0
  %4049 = vmatpush1.msra.mxu0 0.0
  %4050 = vmatprep.subr.mxu0 0.0
  %4051 = vmatpush1.msra.mxu0 0.0
  %4052 = vmatprep.subr.mxu0 0.0
  %4053 = vmatpush1.msra.mxu0 0.0
  %4054 = vmatprep.subr.mxu0 0.0
  %4055 = vmatpush1.msra.mxu0 0.0
  %4056 = vmatprep.subr.mxu0 0.0
  %4057 = vmatpush1.msra.mxu0 0.0
  %4058 = vmatprep.subr.mxu0 0.0
  %4059 = vmatpush1.msra.mxu0 0.0
  %4060 = vmatprep.subr.mxu0 0.0
  %4061 = vmatpush1.msra.mxu0 0.0
  %4062 = vmatprep.subr.mxu0 0.0
  %4063 = vmatpush1.msra.mxu0 0.0
  %4064 = vmatprep.subr.mxu0 0.0
  %4065 = vmatpush1.msra.mxu0 %v4024
  %4066 = vmatprep.subr.mxu0 0.0
  %4067 = vmatpush1.msra.mxu0 %v4023
  %4068 = vmatprep.subr.mxu0 0.0
  %4069 = vmatpush2.msra.mxu0 0.0
  %4070 = vmatprep.subr.mxu0 0.0
  %4071 = vmatpush2.msra.mxu0 0.0
  %4072 = vmatprep.subr.mxu0 0.0
  %4073 = vmatpush2.msra.mxu0 0.0
  %4074 = vmatprep.subr.mxu0 0.0
  %4075 = vmatpush2.msra.mxu0 0.0
  %4076 = vmatprep.subr.mxu0 0.0
  %4077 = vmatpush2.msra.mxu0 0.0
  %4078 = vmatprep.subr.mxu0 0.0
  %4079 = vmatpush2.msra.mxu0 0.0
  %4080 = vmatprep.subr.mxu0 0.0
  %4081 = vmatpush2.msra.mxu0 0.0
  %4082 = vmatprep.subr.mxu0 0.0
  %4083 = vmatpush2.msra.mxu0 0.0
  %4084 = vmatprep.subr.mxu0 0.0
  %4085 = vmatpush2.msra.mxu0 0.0
  %4086 = vmatprep.subr.mxu0 0.0
  %4087 = vmatpush2.msra.mxu0 0.0
  %4088 = vmatprep.subr.mxu0 0.0
  %4089 = vmatpush2.msra.mxu0 0.0
  %4090 = vmatprep.subr.mxu0 0.0
  %4091 = vmatpush2.msra.mxu0 0.0
  %4092 = vmatprep.subr.mxu0 0.0
  %4093 = vmatpush2.msra.mxu0 0.0
  %4094 = vmatprep.subr.mxu0 0.0
  %4095 = vmatpush2.msra.mxu0 0.0
  %4096 = vmatprep.subr.mxu0 0.0
  %4097 = vmatpush2.msra.mxu0 0.0
  %4098 = vmatprep.subr.mxu0 0.0
  %4099 = vmatpush2.msra.mxu0 0.0
  %4100 = vmatprep.mubr.f32.mxu0 0.0
  %4101 = vmatmul.mubr.f32.gmra.mxu0 %v4034
  %v4102 = vpop.f32.mrf.mxu0
  %v4103 = vadd.f32 %v4030, %v4102
  %v4104 = vpop.f32.mrf.mxu0
  %4105 = vdwg.mxu0
  %vm4106 = vcmask 7168
  %4107 = vst.msk [vmem:[%s63] sm:$0xff] %vm4106, %v4103
  // Predicated region
  $region126: #{tpu_custom_call.1} parent=0 // pred_check
    _
  $region127: #{tpu_custom_call.1} parent=0 // pred_check_branch
    %4109 = sbr.rel (0) target = $region129
  $region128: #{tpu_custom_call.1} parent=0 // pred_region
    _
  $region129: #{tpu_custom_call.1} parent=0 // pred_fallthru
    _
  // Predicated region
  $region130: #{tpu_custom_call.1} parent=0 // pred_check
    _
  $region131: #{tpu_custom_call.1} parent=0 // pred_check_branch
    %4111 = sbr.rel (0) target = $region133
  $region132: #{tpu_custom_call.1} parent=0 // pred_region
    _
  $region133: #{tpu_custom_call.1} parent=0 // pred_fallthru
    _

</llo_original>
